<compile_context>
chip_gen: v5e
topology: v5e:2x2
jax: 0.10.0
libtpu: 0.0.40
codegen_flags: <defaults>
</compile_context>

<pallas_src>
import math
from functools import partial

import jax
import jax.numpy as jnp
from jax.experimental import pallas as pl
from jax.experimental.pallas import tpu as pltpu

# ----------------------------------------------------------------------------
# Symbolic architecture
# ----------------------------------------------------------------------------
# TODO(synk): get_sym_arch(arch_index) is not provided in the source file; a
# fixed, representative 3-layer architecture over the same base-op set
# [mul, lim_div, lim_log, lim_exp, sin, cos, identity, ifelse] is used instead.
OP_IN = [2, 2, 1, 1, 1, 1, 1, 3]          # arity of each base op
ARCH = [
    [0, 2, 3, 6],   # layer 0: mul, lim_log, lim_exp, identity
    [4, 5, 1],      # layer 1: sin, cos, lim_div
    [0, 6, 7],      # layer 2: mul, identity, ifelse
]

LOG_SIG_MIN, LOG_SIG_MAX = -20.0, 2.0
MU_MIN, MU_MAX = -1e10, 1e10


def _arch_shapes(feat0):
    """wshape / bshape exactly as computed in EQL.__init__."""
    wshape, bshape, f = 0, 0, feat0
    for layer in ARCH:
        inall = sum(OP_IN[o] for o in layer)
        bshape += inall
        wshape += f * inall
        f += len(layer)
    wshape += f
    bshape += 1
    return wshape, bshape, f


# ----------------------------------------------------------------------------
# Symbolic base ops (lane-dense (1, bt) rows; exact JAX equivalents of torch ops)
# ----------------------------------------------------------------------------
def _apply_op(op_idx, args):
    if op_idx == 0:      # mul
        a, b = args
        return jnp.clip(a, -100.0, 100.0) * jnp.clip(b, -100.0, 100.0)
    if op_idx == 1:      # lim_div  (gate b < 0.01, matches torch masked_fill)
        a, b = args
        denom = jnp.where(b < 0.01, 0.01, b)
        return jnp.where(b < 0.01, 0.0, a / denom)
    if op_idx == 2:      # lim_log
        return jnp.log(jnp.maximum(args[0], 0.001))
    if op_idx == 3:      # lim_exp
        return jnp.exp(jnp.clip(args[0], -10.0, 4.0))
    if op_idx == 4:      # sin
        return jnp.sin(args[0])
    if op_idx == 5:      # cos
        return jnp.cos(args[0])
    if op_idx == 6:      # identity
        return args[0]
    if op_idx == 7:      # ifelse
        c, a, b = args
        cond = jax.nn.sigmoid(c)
        return cond * a + (1.0 - cond) * b
    raise ValueError(op_idx)


# ----------------------------------------------------------------------------
# Fused EQL + stdnet Pallas kernel
# ----------------------------------------------------------------------------
def fused_kernel(obs_ref, w_ref, b_ref, *rest, feat0, action_dim, n_std):
    """Grid = (batch_tiles, action_dim); batch tile on the lane axis.

    obs_ref : (input_size, bt)   obs rows for this batch tile (shared across actions)
    w_ref   : (wshape, bt)       per-(action, batch-row) flattened symbolic weights
    b_ref   : (bshape, bt)       per-(action, batch-row) flattened symbolic biases
    rest    : 2*n_std stdnet weight/bias refs (pre-transposed: (dout, din), (dout, 1)),
              then outputs eql_ref (2, bt) and std_slab_ref (2*action_dim, bt).
    """
    std_refs = rest[:2 * n_std]
    eql_ref, std_slab_ref = rest[2 * n_std], rest[2 * n_std + 1]

    a_idx = pl.program_id(1)

    # ---- stdnet: run once per batch tile (action index 0); its output block
    #      index ignores the action axis so the write persists across actions.
    @pl.when(a_idx == 0)
    def _():
        h = obs_ref[...]                       # (input_size, bt), batch on lanes
        for li in range(n_std):
            wt = std_refs[2 * li][...]         # (dout, din)
            bi = std_refs[2 * li + 1][...]     # (dout, 1) -> broadcast over lanes
            h = jnp.dot(wt, h, preferred_element_type=jnp.float32) + bi
            if li < n_std - 1:
                h = jnp.maximum(h, 0.0)
        ls = jnp.clip(h, LOG_SIG_MIN, LOG_SIG_MAX)          # (action_dim, bt)
        std_slab_ref[...] = jnp.concatenate([ls, jnp.exp(ls)], axis=0)

    # ---- EQL symbolic network: every op is a lane-dense (1, bt) VPU op.
    cols = [obs_ref[k:k + 1, :] for k in range(feat0)]
    woff, boff = 0, 0
    for layer in ARCH:
        fcur = len(cols)
        inall = sum(OP_IN[o] for o in layer)
        # hidden = bmm(w, x) + b   (per-lane mat-vec, fully unrolled; weights
        # differ per lane so the MXU is not applicable — pure VPU work)
        hidden = []
        for j in range(inall):
            acc = b_ref[boff + j:boff + j + 1, :]
            base = woff + j * fcur
            for k in range(fcur):
                acc = acc + w_ref[base + k:base + k + 1, :] * cols[k]
            hidden.append(acc)
        woff += inall * fcur
        boff += inall
        off = 0
        for o in layer:
            n = OP_IN[o]
            cols.append(_apply_op(o, hidden[off:off + n]))
            off += n
    # final linear readout
    fcur = len(cols)
    out = b_ref[boff:boff + 1, :]
    for k in range(fcur):
        out = out + w_ref[woff + k:woff + k + 1, :] * cols[k]
    mean = jnp.clip(out, MU_MIN, MU_MAX)
    eql_ref[...] = jnp.concatenate([mean, jnp.tanh(mean)], axis=0)


# ----------------------------------------------------------------------------
# Wrapper: TanhGaussianSymbolic.forward (deterministic branch, mode=0)
# ----------------------------------------------------------------------------
def tanh_gaussian_symbolic_forward(obs, constw, constb, std_params,
                                   latent_dim, action_dim):
    batch, input_size = obs.shape
    feat0 = input_size - latent_dim
    wshape = constw.shape[-1]
    bshape = constb.shape[-1]
    n_std = len(std_params)

    # Lane-dense layouts: batch on the last (lane) axis.  Transposes are done
    # once here in the wrapper (layout plumbing, not compute).
    obs_t = obs.T                                 # (input_size, B)
    constw_t = jnp.transpose(constw, (1, 2, 0))   # (A, wshape, B)
    constb_t = jnp.transpose(constb, (1, 2, 0))   # (A, bshape, B)
    flat_std = []
    for (w, bia) in std_params:
        flat_std.extend([w.T, bia.T])             # (dout, din), (dout, 1)

    # Batch tile: largest lane-aligned tile <= 256 so the live column set
    # (18 cols + accumulators, 2 vregs each at bt=256) stays under the 64-vreg
    # file and the double-buffered constw block (~0.4 MiB) fits VMEM everywhere.
    if batch % 256 == 0:
        bt = 256
    elif batch % 128 == 0:
        bt = 128
    else:
        bt = batch          # small / unaligned batches: single full-extent tile
    n_bt = batch // bt

    in_specs = [
        # obs block is independent of the action axis -> fetched once per tile
        pl.BlockSpec((input_size, bt), lambda j, a: (0, j)),
        pl.BlockSpec((None, wshape, bt), lambda j, a: (a, 0, j)),
        pl.BlockSpec((None, bshape, bt), lambda j, a: (a, 0, j)),
    ]
    for arr in flat_std:
        # stdnet weights: constant index map -> resident in VMEM, sent once
        in_specs.append(pl.BlockSpec(arr.shape, lambda j, a: (0, 0)))

    out_shape = [
        jax.ShapeDtypeStruct((action_dim, 2, batch), jnp.float32),   # EQL slab
        jax.ShapeDtypeStruct((2 * action_dim, batch), jnp.float32),  # [log_std; std]
    ]
    out_specs = [
        pl.BlockSpec((None, 2, bt), lambda j, a: (a, 0, j)),
        pl.BlockSpec((2 * action_dim, bt), lambda j, a: (0, j)),
    ]

    kernel = partial(fused_kernel, feat0=feat0, action_dim=action_dim, n_std=n_std)
    eql_out, std_slab = pl.pallas_call(
        kernel,
        grid=(n_bt, action_dim),
        in_specs=in_specs,
        out_specs=out_specs,
        out_shape=out_shape,
        compiler_params=pltpu.CompilerParams(
            dimension_semantics=("parallel", "arbitrary")),
    )(obs_t, constw_t, constb_t, *flat_std)

    mean = eql_out[:, 0, :].T            # (B, A) pre-tanh mean (already clipped)
    action = eql_out[:, 1, :].T          # tanh(mean), deterministic branch
    log_std = std_slab[:action_dim, :].T
    std = std_slab[action_dim:, :].T

    # TODO(synk): stochastic TanhNormal sampling / log_prob path
    # (deterministic=False, return_log_prob=True) not implemented here.
    log_prob = None
    expected_log_prob = None
    mean_action_log_prob = None
    pre_tanh_value = None
    return (action, mean, log_std, log_prob, expected_log_prob, std,
            mean_action_log_prob, pre_tanh_value)


# ----------------------------------------------------------------------------
# Plain-JAX glue: deterministic parameter init + EnsembleMLP state prep
# ----------------------------------------------------------------------------
def init_ensemble_mlp(key, num_members, in_size, hidden_size, out_size):
    """EnsembleMLP(layer_num=3): in->hidden, hidden->hidden, hidden->out."""
    dims = [(in_size, hidden_size), (hidden_size, hidden_size), (hidden_size, out_size)]
    params = []
    for (din, dout) in dims:
        key, kw, kb = jax.random.split(key, 3)
        bound = 1.0 / math.sqrt(din)
        w = jax.random.uniform(kw, (num_members, din, dout), jnp.float32, -bound, bound)
        b = jax.random.uniform(kb, (num_members, 1, dout), jnp.float32, -bound, bound)
        params.append((w, b))
    return params


def ensemble_mlp_apply(params, x):
    """x: (B, in) -> (B, num_members, out); matches EnsembleMLP.forward."""
    h = x[:, None, None, :]                       # (B, 1, 1, in)
    for li, (w, b) in enumerate(params):
        h = jnp.matmul(h, w) + b                  # (B, M, 1, out)
        if li < len(params) - 1:
            h = jnp.maximum(h, 0.0)
    return h[:, :, 0, :]                          # squeeze(-2)


def init_linear(key, din, dout):
    kw, kb = jax.random.split(key)
    bound = 1.0 / math.sqrt(din)
    w = jax.random.uniform(kw, (din, dout), jnp.float32, -bound, bound)
    b = jax.random.uniform(kb, (1, dout), jnp.float32, -bound, bound)
    return w, b


# ----------------------------------------------------------------------------
# Pure-JAX reference (for a sanity check of the Pallas kernel)
# ----------------------------------------------------------------------------
def _reference_forward(obs, constw, constb, std_params, latent_dim, action_dim):
    batch, input_size = obs.shape
    feat0 = input_size - latent_dim
    x = obs[:, :feat0]
    x_rep = jnp.broadcast_to(x[:, None, :], (batch, action_dim, feat0)
                             ).reshape(batch * action_dim, feat0)
    w = constw.reshape(batch * action_dim, -1)
    b = constb.reshape(batch * action_dim, -1)
    cols = [x_rep[:, k] for k in range(feat0)]
    woff, boff = 0, 0
    for layer in ARCH:
        fcur = len(cols)
        inall = sum(OP_IN[o] for o in layer)
        hidden = []
        for j in range(inall):
            acc = b[:, boff + j]
            base = woff + j * fcur
            for k in range(fcur):
                acc = acc + w[:, base + k] * cols[k]
            hidden.append(acc)
        woff += inall * fcur
        boff += inall
        off = 0
        for o in layer:
            n = OP_IN[o]
            cols.append(_apply_op(o, hidden[off:off + n]))
            off += n
    out = b[:, boff]
    for k in range(len(cols)):
        out = out + w[:, woff + k] * cols[k]
    mean = jnp.clip(out, MU_MIN, MU_MAX).reshape(batch, action_dim)
    h = obs
    for li, (wl, bl) in enumerate(std_params):
        h = jnp.dot(h, wl, preferred_element_type=jnp.float32) + bl
        if li < len(std_params) - 1:
            h = jnp.maximum(h, 0.0)
    log_std = jnp.clip(h, LOG_SIG_MIN, LOG_SIG_MAX)
    return jnp.tanh(mean), mean, log_std, jnp.exp(log_std)


# ----------------------------------------------------------------------------
if __name__ == "__main__":
    key = jax.random.PRNGKey(0)
    keys = jax.random.split(key, 8)

    batch = 8
    input_size = 12          # obs dim (num_inputs)
    latent_dim = 4
    action_dim = 3           # num_outputs
    std_hidden_dim = 32
    context_hidden_dim = 32
    feat0 = input_size - latent_dim

    wshape, bshape, _ = _arch_shapes(feat0)

    obs = jax.random.normal(keys[0], (batch, input_size), jnp.float32)

    # deterministic parameter init (shapes from __init__)
    p_constw = init_ensemble_mlp(keys[1], action_dim, latent_dim, context_hidden_dim, wshape)
    p_constb = init_ensemble_mlp(keys[2], action_dim, latent_dim, context_hidden_dim, bshape)
    p_score = init_ensemble_mlp(keys[3], action_dim, latent_dim, context_hidden_dim, wshape)
    w_last, b_last = p_score[-1]
    p_score[-1] = (w_last, jnp.full_like(b_last, 3.0))   # latent2score last bias = 3

    std_dims = [(input_size, std_hidden_dim), (std_hidden_dim, std_hidden_dim),
                (std_hidden_dim, std_hidden_dim), (std_hidden_dim, action_dim)]
    std_keys = jax.random.split(keys[4], len(std_dims))
    std_params = [init_linear(k, din, dout) for k, (din, dout) in zip(std_keys, std_dims)]

    # EQL.update_const(latent) + sample_sparse_constw(0)  (module state prep)
    latent = obs[:, -latent_dim:]
    constw_base = ensemble_mlp_apply(p_constw, latent)   # (B, A, wshape)
    constb = ensemble_mlp_apply(p_constb, latent)        # (B, A, bshape)
    scores = ensemble_mlp_apply(p_score, latent)         # (B, A, wshape)
    mask = (jax.random.uniform(keys[5], scores.shape)
            < jax.nn.sigmoid(scores)).astype(jnp.float32)
    constw = constw_base * mask

    outputs = tanh_gaussian_symbolic_forward(
        obs, constw, constb, std_params, latent_dim, action_dim)
    action, mean, log_std, _, _, std, _, _ = outputs
    jax.block_until_ready((action, mean, log_std, std))

    assert action.shape == (batch, action_dim)
    assert mean.shape == (batch, action_dim)
    assert log_std.shape == (batch, action_dim)
    assert std.shape == (batch, action_dim)

    # sanity check against a pure-JAX reference
    ref_action, ref_mean, ref_log_std, ref_std = _reference_forward(
        obs, constw, constb, std_params, latent_dim, action_dim)
    assert jnp.allclose(mean, ref_mean, rtol=1e-2, atol=1e-2)
    assert jnp.allclose(action, ref_action, rtol=1e-2, atol=1e-2)
    assert jnp.allclose(log_std, ref_log_std, rtol=1e-2, atol=1e-2)
    assert jnp.allclose(std, ref_std, rtol=1e-2, atol=1e-2)

    print("KERNEL_OK")
</pallas_src>

<mosaic_0001>
module attributes {stable_mosaic.version = 11 : i64} {
  func.func @fused_kernel(%arg0: i32, %arg1: i32, %arg2: memref<12x8xf32, #tpu.memory_space<vmem>>, %arg3: memref<1x196x8xf32, #tpu.memory_space<vmem>>, %arg4: memref<1x16x8xf32, #tpu.memory_space<vmem>>, %arg5: memref<32x12xf32, #tpu.memory_space<vmem>>, %arg6: memref<32x1xf32, #tpu.memory_space<vmem>>, %arg7: memref<32x32xf32, #tpu.memory_space<vmem>>, %arg8: memref<32x1xf32, #tpu.memory_space<vmem>>, %arg9: memref<32x32xf32, #tpu.memory_space<vmem>>, %arg10: memref<32x1xf32, #tpu.memory_space<vmem>>, %arg11: memref<3x32xf32, #tpu.memory_space<vmem>>, %arg12: memref<3x1xf32, #tpu.memory_space<vmem>>, %arg13: memref<1x2x8xf32, #tpu.memory_space<vmem>>, %arg14: memref<6x8xf32, #tpu.memory_space<vmem>>) attributes {dimension_semantics = [#tpu.dimension_semantics<parallel>, #tpu.dimension_semantics<arbitrary>], iteration_bounds = array<i64: 1, 3>, scalar_prefetch = 0 : i64, scratch_operands = 0 : i64, tpu.core_type = #tpu.core_type<tc>, window_params = [{transform_indices = @transform_0, window_bounds = array<i64: 12, 8>}, {transform_indices = @transform_1, window_bounds = array<i64: 1, 196, 8>}, {transform_indices = @transform_2, window_bounds = array<i64: 1, 16, 8>}, {pipeline_mode = #tpu.pipeline_mode<synchronous>, transform_indices = @transform_3, window_bounds = array<i64: 32, 12>}, {pipeline_mode = #tpu.pipeline_mode<synchronous>, transform_indices = @transform_4, window_bounds = array<i64: 32, 1>}, {pipeline_mode = #tpu.pipeline_mode<synchronous>, transform_indices = @transform_5, window_bounds = array<i64: 32, 32>}, {pipeline_mode = #tpu.pipeline_mode<synchronous>, transform_indices = @transform_6, window_bounds = array<i64: 32, 1>}, {pipeline_mode = #tpu.pipeline_mode<synchronous>, transform_indices = @transform_7, window_bounds = array<i64: 32, 32>}, {pipeline_mode = #tpu.pipeline_mode<synchronous>, transform_indices = @transform_8, window_bounds = array<i64: 32, 1>}, {pipeline_mode = #tpu.pipeline_mode<synchronous>, transform_indices = @transform_9, window_bounds = array<i64: 3, 32>}, {pipeline_mode = #tpu.pipeline_mode<synchronous>, transform_indices = @transform_10, window_bounds = array<i64: 3, 1>}, {transform_indices = @transform_11, window_bounds = array<i64: 1, 2, 8>}, {transform_indices = @transform_12, window_bounds = array<i64: 6, 8>}]} {
    %c0_i32 = arith.constant 0 : i32
    %0 = arith.cmpi eq, %arg1, %c0_i32 : i32
    %1 = arith.extui %0 : i1 to i32
    %c0_i32_0 = arith.constant 0 : i32
    %2 = arith.cmpi ne, %1, %c0_i32_0 : i32
    scf.if %2 {
      %c0_478 = arith.constant 0 : index
      %c0_479 = arith.constant 0 : index
      %883 = vector.load %arg2[%c0_478, %c0_479] : memref<12x8xf32, #tpu.memory_space<vmem>>, vector<12x8xf32>
      %c0_480 = arith.constant 0 : index
      %c0_481 = arith.constant 0 : index
      %884 = vector.load %arg5[%c0_480, %c0_481] : memref<32x12xf32, #tpu.memory_space<vmem>>, vector<32x12xf32>
      %c0_482 = arith.constant 0 : index
      %c0_483 = arith.constant 0 : index
      %885 = vector.load %arg6[%c0_482, %c0_483] : memref<32x1xf32, #tpu.memory_space<vmem>>, vector<32x1xf32>
      %cst_484 = arith.constant dense<0.000000e+00> : vector<32x8xf32>
      %886 = tpu.matmul %884, %883, %cst_484 {dimension_numbers = #tpu.dot_dimension_numbers<[1], [0], [0], [1], [0, 0, 1, 1], [], []>} : vector<32x12xf32>, vector<12x8xf32>, vector<32x8xf32> -> vector<32x8xf32>
      %887 = vector.broadcast %885 : vector<32x1xf32> to vector<32x8xf32>
      %888 = arith.addf %886, %887 : vector<32x8xf32>
      %cst_485 = arith.constant 0.000000e+00 : f32
      %889 = vector.broadcast %cst_485 : f32 to vector<32x8xf32>
      %890 = arith.maximumf %888, %889 : vector<32x8xf32>
      %c0_486 = arith.constant 0 : index
      %c0_487 = arith.constant 0 : index
      %891 = vector.load %arg7[%c0_486, %c0_487] : memref<32x32xf32, #tpu.memory_space<vmem>>, vector<32x32xf32>
      %c0_488 = arith.constant 0 : index
      %c0_489 = arith.constant 0 : index
      %892 = vector.load %arg8[%c0_488, %c0_489] : memref<32x1xf32, #tpu.memory_space<vmem>>, vector<32x1xf32>
      %cst_490 = arith.constant dense<0.000000e+00> : vector<32x8xf32>
      %893 = tpu.matmul %891, %890, %cst_490 {dimension_numbers = #tpu.dot_dimension_numbers<[1], [0], [0], [1], [0, 0, 1, 1], [], []>} : vector<32x32xf32>, vector<32x8xf32>, vector<32x8xf32> -> vector<32x8xf32>
      %894 = vector.broadcast %892 : vector<32x1xf32> to vector<32x8xf32>
      %895 = arith.addf %893, %894 : vector<32x8xf32>
      %cst_491 = arith.constant 0.000000e+00 : f32
      %896 = vector.broadcast %cst_491 : f32 to vector<32x8xf32>
      %897 = arith.maximumf %895, %896 : vector<32x8xf32>
      %c0_492 = arith.constant 0 : index
      %c0_493 = arith.constant 0 : index
      %898 = vector.load %arg9[%c0_492, %c0_493] : memref<32x32xf32, #tpu.memory_space<vmem>>, vector<32x32xf32>
      %c0_494 = arith.constant 0 : index
      %c0_495 = arith.constant 0 : index
      %899 = vector.load %arg10[%c0_494, %c0_495] : memref<32x1xf32, #tpu.memory_space<vmem>>, vector<32x1xf32>
      %cst_496 = arith.constant dense<0.000000e+00> : vector<32x8xf32>
      %900 = tpu.matmul %898, %897, %cst_496 {dimension_numbers = #tpu.dot_dimension_numbers<[1], [0], [0], [1], [0, 0, 1, 1], [], []>} : vector<32x32xf32>, vector<32x8xf32>, vector<32x8xf32> -> vector<32x8xf32>
      %901 = vector.broadcast %899 : vector<32x1xf32> to vector<32x8xf32>
      %902 = arith.addf %900, %901 : vector<32x8xf32>
      %cst_497 = arith.constant 0.000000e+00 : f32
      %903 = vector.broadcast %cst_497 : f32 to vector<32x8xf32>
      %904 = arith.maximumf %902, %903 : vector<32x8xf32>
      %c0_498 = arith.constant 0 : index
      %c0_499 = arith.constant 0 : index
      %905 = vector.load %arg11[%c0_498, %c0_499] : memref<3x32xf32, #tpu.memory_space<vmem>>, vector<3x32xf32>
      %c0_500 = arith.constant 0 : index
      %c0_501 = arith.constant 0 : index
      %906 = vector.load %arg12[%c0_500, %c0_501] : memref<3x1xf32, #tpu.memory_space<vmem>>, vector<3x1xf32>
      %cst_502 = arith.constant dense<0.000000e+00> : vector<3x8xf32>
      %907 = tpu.matmul %905, %904, %cst_502 {dimension_numbers = #tpu.dot_dimension_numbers<[1], [0], [0], [1], [0, 0, 1, 1], [], []>} : vector<3x32xf32>, vector<32x8xf32>, vector<3x8xf32> -> vector<3x8xf32>
      %908 = vector.broadcast %906 : vector<3x1xf32> to vector<3x8xf32>
      %909 = arith.addf %907, %908 : vector<3x8xf32>
      %cst_503 = arith.constant -2.000000e+01 : f32
      %cst_504 = arith.constant 2.000000e+00 : f32
      %910 = vector.broadcast %cst_503 : f32 to vector<3x8xf32>
      %911 = arith.maximumf %910, %909 : vector<3x8xf32>
      %912 = vector.broadcast %cst_504 : f32 to vector<3x8xf32>
      %913 = arith.minimumf %912, %911 : vector<3x8xf32>
      %914 = math.exp %913 : vector<3x8xf32>
      %915 = tpu.concatenate %913, %914 in 0 : vector<3x8xf32>, vector<3x8xf32> -> vector<6x8xf32>
      %c0_505 = arith.constant 0 : index
      %c0_506 = arith.constant 0 : index
      %916 = vector.load %arg14[%c0_505, %c0_506] : memref<6x8xf32, #tpu.memory_space<vmem>>, vector<6x8xf32>
      tpu.vector_store %arg14[%c0_505, %c0_506], %915 {strides = array<i32>} : memref<6x8xf32, #tpu.memory_space<vmem>>, vector<6x8xf32>,
    } else {
    }
    %c0 = arith.constant 0 : index
    %c0_1 = arith.constant 0 : index
    %3 = vector.load %arg2[%c0, %c0_1] : memref<12x8xf32, #tpu.memory_space<vmem>>, vector<1x8xf32>
    %c1 = arith.constant 1 : index
    %c0_2 = arith.constant 0 : index
    %4 = vector.load %arg2[%c1, %c0_2] : memref<12x8xf32, #tpu.memory_space<vmem>>, vector<1x8xf32>
    %c2 = arith.constant 2 : index
    %c0_3 = arith.constant 0 : index
    %5 = vector.load %arg2[%c2, %c0_3] : memref<12x8xf32, #tpu.memory_space<vmem>>, vector<1x8xf32>
    %c3 = arith.constant 3 : index
    %c0_4 = arith.constant 0 : index
    %6 = vector.load %arg2[%c3, %c0_4] : memref<12x8xf32, #tpu.memory_space<vmem>>, vector<1x8xf32>
    %c4 = arith.constant 4 : index
    %c0_5 = arith.constant 0 : index
    %7 = vector.load %arg2[%c4, %c0_5] : memref<12x8xf32, #tpu.memory_space<vmem>>, vector<1x8xf32>
    %c5 = arith.constant 5 : index
    %c0_6 = arith.constant 0 : index
    %8 = vector.load %arg2[%c5, %c0_6] : memref<12x8xf32, #tpu.memory_space<vmem>>, vector<1x8xf32>
    %c6 = arith.constant 6 : index
    %c0_7 = arith.constant 0 : index
    %9 = vector.load %arg2[%c6, %c0_7] : memref<12x8xf32, #tpu.memory_space<vmem>>, vector<1x8xf32>
    %c7 = arith.constant 7 : index
    %c0_8 = arith.constant 0 : index
    %10 = vector.load %arg2[%c7, %c0_8] : memref<12x8xf32, #tpu.memory_space<vmem>>, vector<1x8xf32>
    %c0_9 = arith.constant 0 : index
    %c0_10 = arith.constant 0 : index
    %c0_11 = arith.constant 0 : index
    %11 = vector.load %arg4[%c0_9, %c0_10, %c0_11] : memref<1x16x8xf32, #tpu.memory_space<vmem>>, vector<1x1x8xf32>
    %12 = vector.shape_cast %11 : vector<1x1x8xf32> to vector<1x8xf32>
    %c0_12 = arith.constant 0 : index
    %c0_13 = arith.constant 0 : index
    %c0_14 = arith.constant 0 : index
    %13 = vector.load %arg3[%c0_12, %c0_13, %c0_14] : memref<1x196x8xf32, #tpu.memory_space<vmem>>, vector<1x1x8xf32>
    %14 = vector.shape_cast %13 : vector<1x1x8xf32> to vector<1x8xf32>
    %15 = arith.mulf %14, %3 : vector<1x8xf32>
    %16 = arith.addf %12, %15 : vector<1x8xf32>
    %c0_15 = arith.constant 0 : index
    %c1_16 = arith.constant 1 : index
    %c0_17 = arith.constant 0 : index
    %17 = vector.load %arg3[%c0_15, %c1_16, %c0_17] : memref<1x196x8xf32, #tpu.memory_space<vmem>>, vector<1x1x8xf32>
    %18 = vector.shape_cast %17 : vector<1x1x8xf32> to vector<1x8xf32>
    %19 = arith.mulf %18, %4 : vector<1x8xf32>
    %20 = arith.addf %16, %19 : vector<1x8xf32>
    %c0_18 = arith.constant 0 : index
    %c2_19 = arith.constant 2 : index
    %c0_20 = arith.constant 0 : index
    %21 = vector.load %arg3[%c0_18, %c2_19, %c0_20] : memref<1x196x8xf32, #tpu.memory_space<vmem>>, vector<1x1x8xf32>
    %22 = vector.shape_cast %21 : vector<1x1x8xf32> to vector<1x8xf32>
    %23 = arith.mulf %22, %5 : vector<1x8xf32>
    %24 = arith.addf %20, %23 : vector<1x8xf32>
    %c0_21 = arith.constant 0 : index
    %c3_22 = arith.constant 3 : index
    %c0_23 = arith.constant 0 : index
    %25 = vector.load %arg3[%c0_21, %c3_22, %c0_23] : memref<1x196x8xf32, #tpu.memory_space<vmem>>, vector<1x1x8xf32>
    %26 = vector.shape_cast %25 : vector<1x1x8xf32> to vector<1x8xf32>
    %27 = arith.mulf %26, %6 : vector<1x8xf32>
    %28 = arith.addf %24, %27 : vector<1x8xf32>
    %c0_24 = arith.constant 0 : index
    %c4_25 = arith.constant 4 : index
    %c0_26 = arith.constant 0 : index
    %29 = vector.load %arg3[%c0_24, %c4_25, %c0_26] : memref<1x196x8xf32, #tpu.memory_space<vmem>>, vector<1x1x8xf32>
    %30 = vector.shape_cast %29 : vector<1x1x8xf32> to vector<1x8xf32>
    %31 = arith.mulf %30, %7 : vector<1x8xf32>
    %32 = arith.addf %28, %31 : vector<1x8xf32>
    %c0_27 = arith.constant 0 : index
    %c5_28 = arith.constant 5 : index
    %c0_29 = arith.constant 0 : index
    %33 = vector.load %arg3[%c0_27, %c5_28, %c0_29] : memref<1x196x8xf32, #tpu.memory_space<vmem>>, vector<1x1x8xf32>
    %34 = vector.shape_cast %33 : vector<1x1x8xf32> to vector<1x8xf32>
    %35 = arith.mulf %34, %8 : vector<1x8xf32>
    %36 = arith.addf %32, %35 : vector<1x8xf32>
    %c0_30 = arith.constant 0 : index
    %c6_31 = arith.constant 6 : index
    %c0_32 = arith.constant 0 : index
    %37 = vector.load %arg3[%c0_30, %c6_31, %c0_32] : memref<1x196x8xf32, #tpu.memory_space<vmem>>, vector<1x1x8xf32>
    %38 = vector.shape_cast %37 : vector<1x1x8xf32> to vector<1x8xf32>
    %39 = arith.mulf %38, %9 : vector<1x8xf32>
    %40 = arith.addf %36, %39 : vector<1x8xf32>
    %c0_33 = arith.constant 0 : index
    %c7_34 = arith.constant 7 : index
    %c0_35 = arith.constant 0 : index
    %41 = vector.load %arg3[%c0_33, %c7_34, %c0_35] : memref<1x196x8xf32, #tpu.memory_space<vmem>>, vector<1x1x8xf32>
    %42 = vector.shape_cast %41 : vector<1x1x8xf32> to vector<1x8xf32>
    %43 = arith.mulf %42, %10 : vector<1x8xf32>
    %44 = arith.addf %40, %43 : vector<1x8xf32>
    %c0_36 = arith.constant 0 : index
    %c1_37 = arith.constant 1 : index
    %c0_38 = arith.constant 0 : index
    %45 = vector.load %arg4[%c0_36, %c1_37, %c0_38] : memref<1x16x8xf32, #tpu.memory_space<vmem>>, vector<1x1x8xf32>
    %46 = vector.shape_cast %45 : vector<1x1x8xf32> to vector<1x8xf32>
    %c0_39 = arith.constant 0 : index
    %c8 = arith.constant 8 : index
    %c0_40 = arith.constant 0 : index
    %47 = vector.load %arg3[%c0_39, %c8, %c0_40] : memref<1x196x8xf32, #tpu.memory_space<vmem>>, vector<1x1x8xf32>
    %48 = vector.shape_cast %47 : vector<1x1x8xf32> to vector<1x8xf32>
    %49 = arith.mulf %48, %3 : vector<1x8xf32>
    %50 = arith.addf %46, %49 : vector<1x8xf32>
    %c0_41 = arith.constant 0 : index
    %c9 = arith.constant 9 : index
    %c0_42 = arith.constant 0 : index
    %51 = vector.load %arg3[%c0_41, %c9, %c0_42] : memref<1x196x8xf32, #tpu.memory_space<vmem>>, vector<1x1x8xf32>
    %52 = vector.shape_cast %51 : vector<1x1x8xf32> to vector<1x8xf32>
    %53 = arith.mulf %52, %4 : vector<1x8xf32>
    %54 = arith.addf %50, %53 : vector<1x8xf32>
    %c0_43 = arith.constant 0 : index
    %c10 = arith.constant 10 : index
    %c0_44 = arith.constant 0 : index
    %55 = vector.load %arg3[%c0_43, %c10, %c0_44] : memref<1x196x8xf32, #tpu.memory_space<vmem>>, vector<1x1x8xf32>
    %56 = vector.shape_cast %55 : vector<1x1x8xf32> to vector<1x8xf32>
    %57 = arith.mulf %56, %5 : vector<1x8xf32>
    %58 = arith.addf %54, %57 : vector<1x8xf32>
    %c0_45 = arith.constant 0 : index
    %c11 = arith.constant 11 : index
    %c0_46 = arith.constant 0 : index
    %59 = vector.load %arg3[%c0_45, %c11, %c0_46] : memref<1x196x8xf32, #tpu.memory_space<vmem>>, vector<1x1x8xf32>
    %60 = vector.shape_cast %59 : vector<1x1x8xf32> to vector<1x8xf32>
    %61 = arith.mulf %60, %6 : vector<1x8xf32>
    %62 = arith.addf %58, %61 : vector<1x8xf32>
    %c0_47 = arith.constant 0 : index
    %c12 = arith.constant 12 : index
    %c0_48 = arith.constant 0 : index
    %63 = vector.load %arg3[%c0_47, %c12, %c0_48] : memref<1x196x8xf32, #tpu.memory_space<vmem>>, vector<1x1x8xf32>
    %64 = vector.shape_cast %63 : vector<1x1x8xf32> to vector<1x8xf32>
    %65 = arith.mulf %64, %7 : vector<1x8xf32>
    %66 = arith.addf %62, %65 : vector<1x8xf32>
    %c0_49 = arith.constant 0 : index
    %c13 = arith.constant 13 : index
    %c0_50 = arith.constant 0 : index
    %67 = vector.load %arg3[%c0_49, %c13, %c0_50] : memref<1x196x8xf32, #tpu.memory_space<vmem>>, vector<1x1x8xf32>
    %68 = vector.shape_cast %67 : vector<1x1x8xf32> to vector<1x8xf32>
    %69 = arith.mulf %68, %8 : vector<1x8xf32>
    %70 = arith.addf %66, %69 : vector<1x8xf32>
    %c0_51 = arith.constant 0 : index
    %c14 = arith.constant 14 : index
    %c0_52 = arith.constant 0 : index
    %71 = vector.load %arg3[%c0_51, %c14, %c0_52] : memref<1x196x8xf32, #tpu.memory_space<vmem>>, vector<1x1x8xf32>
    %72 = vector.shape_cast %71 : vector<1x1x8xf32> to vector<1x8xf32>
    %73 = arith.mulf %72, %9 : vector<1x8xf32>
    %74 = arith.addf %70, %73 : vector<1x8xf32>
    %c0_53 = arith.constant 0 : index
    %c15 = arith.constant 15 : index
    %c0_54 = arith.constant 0 : index
    %75 = vector.load %arg3[%c0_53, %c15, %c0_54] : memref<1x196x8xf32, #tpu.memory_space<vmem>>, vector<1x1x8xf32>
    %76 = vector.shape_cast %75 : vector<1x1x8xf32> to vector<1x8xf32>
    %77 = arith.mulf %76, %10 : vector<1x8xf32>
    %78 = arith.addf %74, %77 : vector<1x8xf32>
    %c0_55 = arith.constant 0 : index
    %c2_56 = arith.constant 2 : index
    %c0_57 = arith.constant 0 : index
    %79 = vector.load %arg4[%c0_55, %c2_56, %c0_57] : memref<1x16x8xf32, #tpu.memory_space<vmem>>, vector<1x1x8xf32>
    %80 = vector.shape_cast %79 : vector<1x1x8xf32> to vector<1x8xf32>
    %c0_58 = arith.constant 0 : index
    %c16 = arith.constant 16 : index
    %c0_59 = arith.constant 0 : index
    %81 = vector.load %arg3[%c0_58, %c16, %c0_59] : memref<1x196x8xf32, #tpu.memory_space<vmem>>, vector<1x1x8xf32>
    %82 = vector.shape_cast %81 : vector<1x1x8xf32> to vector<1x8xf32>
    %83 = arith.mulf %82, %3 : vector<1x8xf32>
    %84 = arith.addf %80, %83 : vector<1x8xf32>
    %c0_60 = arith.constant 0 : index
    %c17 = arith.constant 17 : index
    %c0_61 = arith.constant 0 : index
    %85 = vector.load %arg3[%c0_60, %c17, %c0_61] : memref<1x196x8xf32, #tpu.memory_space<vmem>>, vector<1x1x8xf32>
    %86 = vector.shape_cast %85 : vector<1x1x8xf32> to vector<1x8xf32>
    %87 = arith.mulf %86, %4 : vector<1x8xf32>
    %88 = arith.addf %84, %87 : vector<1x8xf32>
    %c0_62 = arith.constant 0 : index
    %c18 = arith.constant 18 : index
    %c0_63 = arith.constant 0 : index
    %89 = vector.load %arg3[%c0_62, %c18, %c0_63] : memref<1x196x8xf32, #tpu.memory_space<vmem>>, vector<1x1x8xf32>
    %90 = vector.shape_cast %89 : vector<1x1x8xf32> to vector<1x8xf32>
    %91 = arith.mulf %90, %5 : vector<1x8xf32>
    %92 = arith.addf %88, %91 : vector<1x8xf32>
    %c0_64 = arith.constant 0 : index
    %c19 = arith.constant 19 : index
    %c0_65 = arith.constant 0 : index
    %93 = vector.load %arg3[%c0_64, %c19, %c0_65] : memref<1x196x8xf32, #tpu.memory_space<vmem>>, vector<1x1x8xf32>
    %94 = vector.shape_cast %93 : vector<1x1x8xf32> to vector<1x8xf32>
    %95 = arith.mulf %94, %6 : vector<1x8xf32>
    %96 = arith.addf %92, %95 : vector<1x8xf32>
    %c0_66 = arith.constant 0 : index
    %c20 = arith.constant 20 : index
    %c0_67 = arith.constant 0 : index
    %97 = vector.load %arg3[%c0_66, %c20, %c0_67] : memref<1x196x8xf32, #tpu.memory_space<vmem>>, vector<1x1x8xf32>
    %98 = vector.shape_cast %97 : vector<1x1x8xf32> to vector<1x8xf32>
    %99 = arith.mulf %98, %7 : vector<1x8xf32>
    %100 = arith.addf %96, %99 : vector<1x8xf32>
    %c0_68 = arith.constant 0 : index
    %c21 = arith.constant 21 : index
    %c0_69 = arith.constant 0 : index
    %101 = vector.load %arg3[%c0_68, %c21, %c0_69] : memref<1x196x8xf32, #tpu.memory_space<vmem>>, vector<1x1x8xf32>
    %102 = vector.shape_cast %101 : vector<1x1x8xf32> to vector<1x8xf32>
    %103 = arith.mulf %102, %8 : vector<1x8xf32>
    %104 = arith.addf %100, %103 : vector<1x8xf32>
    %c0_70 = arith.constant 0 : index
    %c22 = arith.constant 22 : index
    %c0_71 = arith.constant 0 : index
    %105 = vector.load %arg3[%c0_70, %c22, %c0_71] : memref<1x196x8xf32, #tpu.memory_space<vmem>>, vector<1x1x8xf32>
    %106 = vector.shape_cast %105 : vector<1x1x8xf32> to vector<1x8xf32>
    %107 = arith.mulf %106, %9 : vector<1x8xf32>
    %108 = arith.addf %104, %107 : vector<1x8xf32>
    %c0_72 = arith.constant 0 : index
    %c23 = arith.constant 23 : index
    %c0_73 = arith.constant 0 : index
    %109 = vector.load %arg3[%c0_72, %c23, %c0_73] : memref<1x196x8xf32, #tpu.memory_space<vmem>>, vector<1x1x8xf32>
    %110 = vector.shape_cast %109 : vector<1x1x8xf32> to vector<1x8xf32>
    %111 = arith.mulf %110, %10 : vector<1x8xf32>
    %112 = arith.addf %108, %111 : vector<1x8xf32>
    %c0_74 = arith.constant 0 : index
    %c3_75 = arith.constant 3 : index
    %c0_76 = arith.constant 0 : index
    %113 = vector.load %arg4[%c0_74, %c3_75, %c0_76] : memref<1x16x8xf32, #tpu.memory_space<vmem>>, vector<1x1x8xf32>
    %114 = vector.shape_cast %113 : vector<1x1x8xf32> to vector<1x8xf32>
    %c0_77 = arith.constant 0 : index
    %c24 = arith.constant 24 : index
    %c0_78 = arith.constant 0 : index
    %115 = vector.load %arg3[%c0_77, %c24, %c0_78] : memref<1x196x8xf32, #tpu.memory_space<vmem>>, vector<1x1x8xf32>
    %116 = vector.shape_cast %115 : vector<1x1x8xf32> to vector<1x8xf32>
    %117 = arith.mulf %116, %3 : vector<1x8xf32>
    %118 = arith.addf %114, %117 : vector<1x8xf32>
    %c0_79 = arith.constant 0 : index
    %c25 = arith.constant 25 : index
    %c0_80 = arith.constant 0 : index
    %119 = vector.load %arg3[%c0_79, %c25, %c0_80] : memref<1x196x8xf32, #tpu.memory_space<vmem>>, vector<1x1x8xf32>
    %120 = vector.shape_cast %119 : vector<1x1x8xf32> to vector<1x8xf32>
    %121 = arith.mulf %120, %4 : vector<1x8xf32>
    %122 = arith.addf %118, %121 : vector<1x8xf32>
    %c0_81 = arith.constant 0 : index
    %c26 = arith.constant 26 : index
    %c0_82 = arith.constant 0 : index
    %123 = vector.load %arg3[%c0_81, %c26, %c0_82] : memref<1x196x8xf32, #tpu.memory_space<vmem>>, vector<1x1x8xf32>
    %124 = vector.shape_cast %123 : vector<1x1x8xf32> to vector<1x8xf32>
    %125 = arith.mulf %124, %5 : vector<1x8xf32>
    %126 = arith.addf %122, %125 : vector<1x8xf32>
    %c0_83 = arith.constant 0 : index
    %c27 = arith.constant 27 : index
    %c0_84 = arith.constant 0 : index
    %127 = vector.load %arg3[%c0_83, %c27, %c0_84] : memref<1x196x8xf32, #tpu.memory_space<vmem>>, vector<1x1x8xf32>
    %128 = vector.shape_cast %127 : vector<1x1x8xf32> to vector<1x8xf32>
    %129 = arith.mulf %128, %6 : vector<1x8xf32>
    %130 = arith.addf %126, %129 : vector<1x8xf32>
    %c0_85 = arith.constant 0 : index
    %c28 = arith.constant 28 : index
    %c0_86 = arith.constant 0 : index
    %131 = vector.load %arg3[%c0_85, %c28, %c0_86] : memref<1x196x8xf32, #tpu.memory_space<vmem>>, vector<1x1x8xf32>
    %132 = vector.shape_cast %131 : vector<1x1x8xf32> to vector<1x8xf32>
    %133 = arith.mulf %132, %7 : vector<1x8xf32>
    %134 = arith.addf %130, %133 : vector<1x8xf32>
    %c0_87 = arith.constant 0 : index
    %c29 = arith.constant 29 : index
    %c0_88 = arith.constant 0 : index
    %135 = vector.load %arg3[%c0_87, %c29, %c0_88] : memref<1x196x8xf32, #tpu.memory_space<vmem>>, vector<1x1x8xf32>
    %136 = vector.shape_cast %135 : vector<1x1x8xf32> to vector<1x8xf32>
    %137 = arith.mulf %136, %8 : vector<1x8xf32>
    %138 = arith.addf %134, %137 : vector<1x8xf32>
    %c0_89 = arith.constant 0 : index
    %c30 = arith.constant 30 : index
    %c0_90 = arith.constant 0 : index
    %139 = vector.load %arg3[%c0_89, %c30, %c0_90] : memref<1x196x8xf32, #tpu.memory_space<vmem>>, vector<1x1x8xf32>
    %140 = vector.shape_cast %139 : vector<1x1x8xf32> to vector<1x8xf32>
    %141 = arith.mulf %140, %9 : vector<1x8xf32>
    %142 = arith.addf %138, %141 : vector<1x8xf32>
    %c0_91 = arith.constant 0 : index
    %c31 = arith.constant 31 : index
    %c0_92 = arith.constant 0 : index
    %143 = vector.load %arg3[%c0_91, %c31, %c0_92] : memref<1x196x8xf32, #tpu.memory_space<vmem>>, vector<1x1x8xf32>
    %144 = vector.shape_cast %143 : vector<1x1x8xf32> to vector<1x8xf32>
    %145 = arith.mulf %144, %10 : vector<1x8xf32>
    %146 = arith.addf %142, %145 : vector<1x8xf32>
    %c0_93 = arith.constant 0 : index
    %c4_94 = arith.constant 4 : index
    %c0_95 = arith.constant 0 : index
    %147 = vector.load %arg4[%c0_93, %c4_94, %c0_95] : memref<1x16x8xf32, #tpu.memory_space<vmem>>, vector<1x1x8xf32>
    %148 = vector.shape_cast %147 : vector<1x1x8xf32> to vector<1x8xf32>
    %c0_96 = arith.constant 0 : index
    %c32 = arith.constant 32 : index
    %c0_97 = arith.constant 0 : index
    %149 = vector.load %arg3[%c0_96, %c32, %c0_97] : memref<1x196x8xf32, #tpu.memory_space<vmem>>, vector<1x1x8xf32>
    %150 = vector.shape_cast %149 : vector<1x1x8xf32> to vector<1x8xf32>
    %151 = arith.mulf %150, %3 : vector<1x8xf32>
    %152 = arith.addf %148, %151 : vector<1x8xf32>
    %c0_98 = arith.constant 0 : index
    %c33 = arith.constant 33 : index
    %c0_99 = arith.constant 0 : index
    %153 = vector.load %arg3[%c0_98, %c33, %c0_99] : memref<1x196x8xf32, #tpu.memory_space<vmem>>, vector<1x1x8xf32>
    %154 = vector.shape_cast %153 : vector<1x1x8xf32> to vector<1x8xf32>
    %155 = arith.mulf %154, %4 : vector<1x8xf32>
    %156 = arith.addf %152, %155 : vector<1x8xf32>
    %c0_100 = arith.constant 0 : index
    %c34 = arith.constant 34 : index
    %c0_101 = arith.constant 0 : index
    %157 = vector.load %arg3[%c0_100, %c34, %c0_101] : memref<1x196x8xf32, #tpu.memory_space<vmem>>, vector<1x1x8xf32>
    %158 = vector.shape_cast %157 : vector<1x1x8xf32> to vector<1x8xf32>
    %159 = arith.mulf %158, %5 : vector<1x8xf32>
    %160 = arith.addf %156, %159 : vector<1x8xf32>
    %c0_102 = arith.constant 0 : index
    %c35 = arith.constant 35 : index
    %c0_103 = arith.constant 0 : index
    %161 = vector.load %arg3[%c0_102, %c35, %c0_103] : memref<1x196x8xf32, #tpu.memory_space<vmem>>, vector<1x1x8xf32>
    %162 = vector.shape_cast %161 : vector<1x1x8xf32> to vector<1x8xf32>
    %163 = arith.mulf %162, %6 : vector<1x8xf32>
    %164 = arith.addf %160, %163 : vector<1x8xf32>
    %c0_104 = arith.constant 0 : index
    %c36 = arith.constant 36 : index
    %c0_105 = arith.constant 0 : index
    %165 = vector.load %arg3[%c0_104, %c36, %c0_105] : memref<1x196x8xf32, #tpu.memory_space<vmem>>, vector<1x1x8xf32>
    %166 = vector.shape_cast %165 : vector<1x1x8xf32> to vector<1x8xf32>
    %167 = arith.mulf %166, %7 : vector<1x8xf32>
    %168 = arith.addf %164, %167 : vector<1x8xf32>
    %c0_106 = arith.constant 0 : index
    %c37 = arith.constant 37 : index
    %c0_107 = arith.constant 0 : index
    %169 = vector.load %arg3[%c0_106, %c37, %c0_107] : memref<1x196x8xf32, #tpu.memory_space<vmem>>, vector<1x1x8xf32>
    %170 = vector.shape_cast %169 : vector<1x1x8xf32> to vector<1x8xf32>
    %171 = arith.mulf %170, %8 : vector<1x8xf32>
    %172 = arith.addf %168, %171 : vector<1x8xf32>
    %c0_108 = arith.constant 0 : index
    %c38 = arith.constant 38 : index
    %c0_109 = arith.constant 0 : index
    %173 = vector.load %arg3[%c0_108, %c38, %c0_109] : memref<1x196x8xf32, #tpu.memory_space<vmem>>, vector<1x1x8xf32>
    %174 = vector.shape_cast %173 : vector<1x1x8xf32> to vector<1x8xf32>
    %175 = arith.mulf %174, %9 : vector<1x8xf32>
    %176 = arith.addf %172, %175 : vector<1x8xf32>
    %c0_110 = arith.constant 0 : index
    %c39 = arith.constant 39 : index
    %c0_111 = arith.constant 0 : index
    %177 = vector.load %arg3[%c0_110, %c39, %c0_111] : memref<1x196x8xf32, #tpu.memory_space<vmem>>, vector<1x1x8xf32>
    %178 = vector.shape_cast %177 : vector<1x1x8xf32> to vector<1x8xf32>
    %179 = arith.mulf %178, %10 : vector<1x8xf32>
    %180 = arith.addf %176, %179 : vector<1x8xf32>
    %cst = arith.constant -1.000000e+02 : f32
    %cst_112 = arith.constant 1.000000e+02 : f32
    %181 = vector.broadcast %cst : f32 to vector<1x8xf32>
    %182 = arith.maximumf %181, %44 : vector<1x8xf32>
    %183 = vector.broadcast %cst_112 : f32 to vector<1x8xf32>
    %184 = arith.minimumf %183, %182 : vector<1x8xf32>
    %cst_113 = arith.constant -1.000000e+02 : f32
    %cst_114 = arith.constant 1.000000e+02 : f32
    %185 = vector.broadcast %cst_113 : f32 to vector<1x8xf32>
    %186 = arith.maximumf %185, %78 : vector<1x8xf32>
    %187 = vector.broadcast %cst_114 : f32 to vector<1x8xf32>
    %188 = arith.minimumf %187, %186 : vector<1x8xf32>
    %189 = arith.mulf %184, %188 : vector<1x8xf32>
    %cst_115 = arith.constant 1.000000e-03 : f32
    %190 = vector.broadcast %cst_115 : f32 to vector<1x8xf32>
    %191 = arith.maximumf %112, %190 : vector<1x8xf32>
    %192 = math.log %191 : vector<1x8xf32>
    %cst_116 = arith.constant -1.000000e+01 : f32
    %cst_117 = arith.constant 4.000000e+00 : f32
    %193 = vector.broadcast %cst_116 : f32 to vector<1x8xf32>
    %194 = arith.maximumf %193, %146 : vector<1x8xf32>
    %195 = vector.broadcast %cst_117 : f32 to vector<1x8xf32>
    %196 = arith.minimumf %195, %194 : vector<1x8xf32>
    %197 = math.exp %196 : vector<1x8xf32>
    %c0_118 = arith.constant 0 : index
    %c5_119 = arith.constant 5 : index
    %c0_120 = arith.constant 0 : index
    %198 = vector.load %arg4[%c0_118, %c5_119, %c0_120] : memref<1x16x8xf32, #tpu.memory_space<vmem>>, vector<1x1x8xf32>
    %199 = vector.shape_cast %198 : vector<1x1x8xf32> to vector<1x8xf32>
    %c0_121 = arith.constant 0 : index
    %c40 = arith.constant 40 : index
    %c0_122 = arith.constant 0 : index
    %200 = vector.load %arg3[%c0_121, %c40, %c0_122] : memref<1x196x8xf32, #tpu.memory_space<vmem>>, vector<1x1x8xf32>
    %201 = vector.shape_cast %200 : vector<1x1x8xf32> to vector<1x8xf32>
    %202 = arith.mulf %201, %3 : vector<1x8xf32>
    %203 = arith.addf %199, %202 : vector<1x8xf32>
    %c0_123 = arith.constant 0 : index
    %c41 = arith.constant 41 : index
    %c0_124 = arith.constant 0 : index
    %204 = vector.load %arg3[%c0_123, %c41, %c0_124] : memref<1x196x8xf32, #tpu.memory_space<vmem>>, vector<1x1x8xf32>
    %205 = vector.shape_cast %204 : vector<1x1x8xf32> to vector<1x8xf32>
    %206 = arith.mulf %205, %4 : vector<1x8xf32>
    %207 = arith.addf %203, %206 : vector<1x8xf32>
    %c0_125 = arith.constant 0 : index
    %c42 = arith.constant 42 : index
    %c0_126 = arith.constant 0 : index
    %208 = vector.load %arg3[%c0_125, %c42, %c0_126] : memref<1x196x8xf32, #tpu.memory_space<vmem>>, vector<1x1x8xf32>
    %209 = vector.shape_cast %208 : vector<1x1x8xf32> to vector<1x8xf32>
    %210 = arith.mulf %209, %5 : vector<1x8xf32>
    %211 = arith.addf %207, %210 : vector<1x8xf32>
    %c0_127 = arith.constant 0 : index
    %c43 = arith.constant 43 : index
    %c0_128 = arith.constant 0 : index
    %212 = vector.load %arg3[%c0_127, %c43, %c0_128] : memref<1x196x8xf32, #tpu.memory_space<vmem>>, vector<1x1x8xf32>
    %213 = vector.shape_cast %212 : vector<1x1x8xf32> to vector<1x8xf32>
    %214 = arith.mulf %213, %6 : vector<1x8xf32>
    %215 = arith.addf %211, %214 : vector<1x8xf32>
    %c0_129 = arith.constant 0 : index
    %c44 = arith.constant 44 : index
    %c0_130 = arith.constant 0 : index
    %216 = vector.load %arg3[%c0_129, %c44, %c0_130] : memref<1x196x8xf32, #tpu.memory_space<vmem>>, vector<1x1x8xf32>
    %217 = vector.shape_cast %216 : vector<1x1x8xf32> to vector<1x8xf32>
    %218 = arith.mulf %217, %7 : vector<1x8xf32>
    %219 = arith.addf %215, %218 : vector<1x8xf32>
    %c0_131 = arith.constant 0 : index
    %c45 = arith.constant 45 : index
    %c0_132 = arith.constant 0 : index
    %220 = vector.load %arg3[%c0_131, %c45, %c0_132] : memref<1x196x8xf32, #tpu.memory_space<vmem>>, vector<1x1x8xf32>
    %221 = vector.shape_cast %220 : vector<1x1x8xf32> to vector<1x8xf32>
    %222 = arith.mulf %221, %8 : vector<1x8xf32>
    %223 = arith.addf %219, %222 : vector<1x8xf32>
    %c0_133 = arith.constant 0 : index
    %c46 = arith.constant 46 : index
    %c0_134 = arith.constant 0 : index
    %224 = vector.load %arg3[%c0_133, %c46, %c0_134] : memref<1x196x8xf32, #tpu.memory_space<vmem>>, vector<1x1x8xf32>
    %225 = vector.shape_cast %224 : vector<1x1x8xf32> to vector<1x8xf32>
    %226 = arith.mulf %225, %9 : vector<1x8xf32>
    %227 = arith.addf %223, %226 : vector<1x8xf32>
    %c0_135 = arith.constant 0 : index
    %c47 = arith.constant 47 : index
    %c0_136 = arith.constant 0 : index
    %228 = vector.load %arg3[%c0_135, %c47, %c0_136] : memref<1x196x8xf32, #tpu.memory_space<vmem>>, vector<1x1x8xf32>
    %229 = vector.shape_cast %228 : vector<1x1x8xf32> to vector<1x8xf32>
    %230 = arith.mulf %229, %10 : vector<1x8xf32>
    %231 = arith.addf %227, %230 : vector<1x8xf32>
    %c0_137 = arith.constant 0 : index
    %c48 = arith.constant 48 : index
    %c0_138 = arith.constant 0 : index
    %232 = vector.load %arg3[%c0_137, %c48, %c0_138] : memref<1x196x8xf32, #tpu.memory_space<vmem>>, vector<1x1x8xf32>
    %233 = vector.shape_cast %232 : vector<1x1x8xf32> to vector<1x8xf32>
    %234 = arith.mulf %233, %189 : vector<1x8xf32>
    %235 = arith.addf %231, %234 : vector<1x8xf32>
    %c0_139 = arith.constant 0 : index
    %c49 = arith.constant 49 : index
    %c0_140 = arith.constant 0 : index
    %236 = vector.load %arg3[%c0_139, %c49, %c0_140] : memref<1x196x8xf32, #tpu.memory_space<vmem>>, vector<1x1x8xf32>
    %237 = vector.shape_cast %236 : vector<1x1x8xf32> to vector<1x8xf32>
    %238 = arith.mulf %237, %192 : vector<1x8xf32>
    %239 = arith.addf %235, %238 : vector<1x8xf32>
    %c0_141 = arith.constant 0 : index
    %c50 = arith.constant 50 : index
    %c0_142 = arith.constant 0 : index
    %240 = vector.load %arg3[%c0_141, %c50, %c0_142] : memref<1x196x8xf32, #tpu.memory_space<vmem>>, vector<1x1x8xf32>
    %241 = vector.shape_cast %240 : vector<1x1x8xf32> to vector<1x8xf32>
    %242 = arith.mulf %241, %197 : vector<1x8xf32>
    %243 = arith.addf %239, %242 : vector<1x8xf32>
    %c0_143 = arith.constant 0 : index
    %c51 = arith.constant 51 : index
    %c0_144 = arith.constant 0 : index
    %244 = vector.load %arg3[%c0_143, %c51, %c0_144] : memref<1x196x8xf32, #tpu.memory_space<vmem>>, vector<1x1x8xf32>
    %245 = vector.shape_cast %244 : vector<1x1x8xf32> to vector<1x8xf32>
    %246 = arith.mulf %245, %180 : vector<1x8xf32>
    %247 = arith.addf %243, %246 : vector<1x8xf32>
    %c0_145 = arith.constant 0 : index
    %c6_146 = arith.constant 6 : index
    %c0_147 = arith.constant 0 : index
    %248 = vector.load %arg4[%c0_145, %c6_146, %c0_147] : memref<1x16x8xf32, #tpu.memory_space<vmem>>, vector<1x1x8xf32>
    %249 = vector.shape_cast %248 : vector<1x1x8xf32> to vector<1x8xf32>
    %c0_148 = arith.constant 0 : index
    %c52 = arith.constant 52 : index
    %c0_149 = arith.constant 0 : index
    %250 = vector.load %arg3[%c0_148, %c52, %c0_149] : memref<1x196x8xf32, #tpu.memory_space<vmem>>, vector<1x1x8xf32>
    %251 = vector.shape_cast %250 : vector<1x1x8xf32> to vector<1x8xf32>
    %252 = arith.mulf %251, %3 : vector<1x8xf32>
    %253 = arith.addf %249, %252 : vector<1x8xf32>
    %c0_150 = arith.constant 0 : index
    %c53 = arith.constant 53 : index
    %c0_151 = arith.constant 0 : index
    %254 = vector.load %arg3[%c0_150, %c53, %c0_151] : memref<1x196x8xf32, #tpu.memory_space<vmem>>, vector<1x1x8xf32>
    %255 = vector.shape_cast %254 : vector<1x1x8xf32> to vector<1x8xf32>
    %256 = arith.mulf %255, %4 : vector<1x8xf32>
    %257 = arith.addf %253, %256 : vector<1x8xf32>
    %c0_152 = arith.constant 0 : index
    %c54 = arith.constant 54 : index
    %c0_153 = arith.constant 0 : index
    %258 = vector.load %arg3[%c0_152, %c54, %c0_153] : memref<1x196x8xf32, #tpu.memory_space<vmem>>, vector<1x1x8xf32>
    %259 = vector.shape_cast %258 : vector<1x1x8xf32> to vector<1x8xf32>
    %260 = arith.mulf %259, %5 : vector<1x8xf32>
    %261 = arith.addf %257, %260 : vector<1x8xf32>
    %c0_154 = arith.constant 0 : index
    %c55 = arith.constant 55 : index
    %c0_155 = arith.constant 0 : index
    %262 = vector.load %arg3[%c0_154, %c55, %c0_155] : memref<1x196x8xf32, #tpu.memory_space<vmem>>, vector<1x1x8xf32>
    %263 = vector.shape_cast %262 : vector<1x1x8xf32> to vector<1x8xf32>
    %264 = arith.mulf %263, %6 : vector<1x8xf32>
    %265 = arith.addf %261, %264 : vector<1x8xf32>
    %c0_156 = arith.constant 0 : index
    %c56 = arith.constant 56 : index
    %c0_157 = arith.constant 0 : index
    %266 = vector.load %arg3[%c0_156, %c56, %c0_157] : memref<1x196x8xf32, #tpu.memory_space<vmem>>, vector<1x1x8xf32>
    %267 = vector.shape_cast %266 : vector<1x1x8xf32> to vector<1x8xf32>
    %268 = arith.mulf %267, %7 : vector<1x8xf32>
    %269 = arith.addf %265, %268 : vector<1x8xf32>
    %c0_158 = arith.constant 0 : index
    %c57 = arith.constant 57 : index
    %c0_159 = arith.constant 0 : index
    %270 = vector.load %arg3[%c0_158, %c57, %c0_159] : memref<1x196x8xf32, #tpu.memory_space<vmem>>, vector<1x1x8xf32>
    %271 = vector.shape_cast %270 : vector<1x1x8xf32> to vector<1x8xf32>
    %272 = arith.mulf %271, %8 : vector<1x8xf32>
    %273 = arith.addf %269, %272 : vector<1x8xf32>
    %c0_160 = arith.constant 0 : index
    %c58 = arith.constant 58 : index
    %c0_161 = arith.constant 0 : index
    %274 = vector.load %arg3[%c0_160, %c58, %c0_161] : memref<1x196x8xf32, #tpu.memory_space<vmem>>, vector<1x1x8xf32>
    %275 = vector.shape_cast %274 : vector<1x1x8xf32> to vector<1x8xf32>
    %276 = arith.mulf %275, %9 : vector<1x8xf32>
    %277 = arith.addf %273, %276 : vector<1x8xf32>
    %c0_162 = arith.constant 0 : index
    %c59 = arith.constant 59 : index
    %c0_163 = arith.constant 0 : index
    %278 = vector.load %arg3[%c0_162, %c59, %c0_163] : memref<1x196x8xf32, #tpu.memory_space<vmem>>, vector<1x1x8xf32>
    %279 = vector.shape_cast %278 : vector<1x1x8xf32> to vector<1x8xf32>
    %280 = arith.mulf %279, %10 : vector<1x8xf32>
    %281 = arith.addf %277, %280 : vector<1x8xf32>
    %c0_164 = arith.constant 0 : index
    %c60 = arith.constant 60 : index
    %c0_165 = arith.constant 0 : index
    %282 = vector.load %arg3[%c0_164, %c60, %c0_165] : memref<1x196x8xf32, #tpu.memory_space<vmem>>, vector<1x1x8xf32>
    %283 = vector.shape_cast %282 : vector<1x1x8xf32> to vector<1x8xf32>
    %284 = arith.mulf %283, %189 : vector<1x8xf32>
    %285 = arith.addf %281, %284 : vector<1x8xf32>
    %c0_166 = arith.constant 0 : index
    %c61 = arith.constant 61 : index
    %c0_167 = arith.constant 0 : index
    %286 = vector.load %arg3[%c0_166, %c61, %c0_167] : memref<1x196x8xf32, #tpu.memory_space<vmem>>, vector<1x1x8xf32>
    %287 = vector.shape_cast %286 : vector<1x1x8xf32> to vector<1x8xf32>
    %288 = arith.mulf %287, %192 : vector<1x8xf32>
    %289 = arith.addf %285, %288 : vector<1x8xf32>
    %c0_168 = arith.constant 0 : index
    %c62 = arith.constant 62 : index
    %c0_169 = arith.constant 0 : index
    %290 = vector.load %arg3[%c0_168, %c62, %c0_169] : memref<1x196x8xf32, #tpu.memory_space<vmem>>, vector<1x1x8xf32>
    %291 = vector.shape_cast %290 : vector<1x1x8xf32> to vector<1x8xf32>
    %292 = arith.mulf %291, %197 : vector<1x8xf32>
    %293 = arith.addf %289, %292 : vector<1x8xf32>
    %c0_170 = arith.constant 0 : index
    %c63 = arith.constant 63 : index
    %c0_171 = arith.constant 0 : index
    %294 = vector.load %arg3[%c0_170, %c63, %c0_171] : memref<1x196x8xf32, #tpu.memory_space<vmem>>, vector<1x1x8xf32>
    %295 = vector.shape_cast %294 : vector<1x1x8xf32> to vector<1x8xf32>
    %296 = arith.mulf %295, %180 : vector<1x8xf32>
    %297 = arith.addf %293, %296 : vector<1x8xf32>
    %c0_172 = arith.constant 0 : index
    %c7_173 = arith.constant 7 : index
    %c0_174 = arith.constant 0 : index
    %298 = vector.load %arg4[%c0_172, %c7_173, %c0_174] : memref<1x16x8xf32, #tpu.memory_space<vmem>>, vector<1x1x8xf32>
    %299 = vector.shape_cast %298 : vector<1x1x8xf32> to vector<1x8xf32>
    %c0_175 = arith.constant 0 : index
    %c64 = arith.constant 64 : index
    %c0_176 = arith.constant 0 : index
    %300 = vector.load %arg3[%c0_175, %c64, %c0_176] : memref<1x196x8xf32, #tpu.memory_space<vmem>>, vector<1x1x8xf32>
    %301 = vector.shape_cast %300 : vector<1x1x8xf32> to vector<1x8xf32>
    %302 = arith.mulf %301, %3 : vector<1x8xf32>
    %303 = arith.addf %299, %302 : vector<1x8xf32>
    %c0_177 = arith.constant 0 : index
    %c65 = arith.constant 65 : index
    %c0_178 = arith.constant 0 : index
    %304 = vector.load %arg3[%c0_177, %c65, %c0_178] : memref<1x196x8xf32, #tpu.memory_space<vmem>>, vector<1x1x8xf32>
    %305 = vector.shape_cast %304 : vector<1x1x8xf32> to vector<1x8xf32>
    %306 = arith.mulf %305, %4 : vector<1x8xf32>
    %307 = arith.addf %303, %306 : vector<1x8xf32>
    %c0_179 = arith.constant 0 : index
    %c66 = arith.constant 66 : index
    %c0_180 = arith.constant 0 : index
    %308 = vector.load %arg3[%c0_179, %c66, %c0_180] : memref<1x196x8xf32, #tpu.memory_space<vmem>>, vector<1x1x8xf32>
    %309 = vector.shape_cast %308 : vector<1x1x8xf32> to vector<1x8xf32>
    %310 = arith.mulf %309, %5 : vector<1x8xf32>
    %311 = arith.addf %307, %310 : vector<1x8xf32>
    %c0_181 = arith.constant 0 : index
    %c67 = arith.constant 67 : index
    %c0_182 = arith.constant 0 : index
    %312 = vector.load %arg3[%c0_181, %c67, %c0_182] : memref<1x196x8xf32, #tpu.memory_space<vmem>>, vector<1x1x8xf32>
    %313 = vector.shape_cast %312 : vector<1x1x8xf32> to vector<1x8xf32>
    %314 = arith.mulf %313, %6 : vector<1x8xf32>
    %315 = arith.addf %311, %314 : vector<1x8xf32>
    %c0_183 = arith.constant 0 : index
    %c68 = arith.constant 68 : index
    %c0_184 = arith.constant 0 : index
    %316 = vector.load %arg3[%c0_183, %c68, %c0_184] : memref<1x196x8xf32, #tpu.memory_space<vmem>>, vector<1x1x8xf32>
    %317 = vector.shape_cast %316 : vector<1x1x8xf32> to vector<1x8xf32>
    %318 = arith.mulf %317, %7 : vector<1x8xf32>
    %319 = arith.addf %315, %318 : vector<1x8xf32>
    %c0_185 = arith.constant 0 : index
    %c69 = arith.constant 69 : index
    %c0_186 = arith.constant 0 : index
    %320 = vector.load %arg3[%c0_185, %c69, %c0_186] : memref<1x196x8xf32, #tpu.memory_space<vmem>>, vector<1x1x8xf32>
    %321 = vector.shape_cast %320 : vector<1x1x8xf32> to vector<1x8xf32>
    %322 = arith.mulf %321, %8 : vector<1x8xf32>
    %323 = arith.addf %319, %322 : vector<1x8xf32>
    %c0_187 = arith.constant 0 : index
    %c70 = arith.constant 70 : index
    %c0_188 = arith.constant 0 : index
    %324 = vector.load %arg3[%c0_187, %c70, %c0_188] : memref<1x196x8xf32, #tpu.memory_space<vmem>>, vector<1x1x8xf32>
    %325 = vector.shape_cast %324 : vector<1x1x8xf32> to vector<1x8xf32>
    %326 = arith.mulf %325, %9 : vector<1x8xf32>
    %327 = arith.addf %323, %326 : vector<1x8xf32>
    %c0_189 = arith.constant 0 : index
    %c71 = arith.constant 71 : index
    %c0_190 = arith.constant 0 : index
    %328 = vector.load %arg3[%c0_189, %c71, %c0_190] : memref<1x196x8xf32, #tpu.memory_space<vmem>>, vector<1x1x8xf32>
    %329 = vector.shape_cast %328 : vector<1x1x8xf32> to vector<1x8xf32>
    %330 = arith.mulf %329, %10 : vector<1x8xf32>
    %331 = arith.addf %327, %330 : vector<1x8xf32>
    %c0_191 = arith.constant 0 : index
    %c72 = arith.constant 72 : index
    %c0_192 = arith.constant 0 : index
    %332 = vector.load %arg3[%c0_191, %c72, %c0_192] : memref<1x196x8xf32, #tpu.memory_space<vmem>>, vector<1x1x8xf32>
    %333 = vector.shape_cast %332 : vector<1x1x8xf32> to vector<1x8xf32>
    %334 = arith.mulf %333, %189 : vector<1x8xf32>
    %335 = arith.addf %331, %334 : vector<1x8xf32>
    %c0_193 = arith.constant 0 : index
    %c73 = arith.constant 73 : index
    %c0_194 = arith.constant 0 : index
    %336 = vector.load %arg3[%c0_193, %c73, %c0_194] : memref<1x196x8xf32, #tpu.memory_space<vmem>>, vector<1x1x8xf32>
    %337 = vector.shape_cast %336 : vector<1x1x8xf32> to vector<1x8xf32>
    %338 = arith.mulf %337, %192 : vector<1x8xf32>
    %339 = arith.addf %335, %338 : vector<1x8xf32>
    %c0_195 = arith.constant 0 : index
    %c74 = arith.constant 74 : index
    %c0_196 = arith.constant 0 : index
    %340 = vector.load %arg3[%c0_195, %c74, %c0_196] : memref<1x196x8xf32, #tpu.memory_space<vmem>>, vector<1x1x8xf32>
    %341 = vector.shape_cast %340 : vector<1x1x8xf32> to vector<1x8xf32>
    %342 = arith.mulf %341, %197 : vector<1x8xf32>
    %343 = arith.addf %339, %342 : vector<1x8xf32>
    %c0_197 = arith.constant 0 : index
    %c75 = arith.constant 75 : index
    %c0_198 = arith.constant 0 : index
    %344 = vector.load %arg3[%c0_197, %c75, %c0_198] : memref<1x196x8xf32, #tpu.memory_space<vmem>>, vector<1x1x8xf32>
    %345 = vector.shape_cast %344 : vector<1x1x8xf32> to vector<1x8xf32>
    %346 = arith.mulf %345, %180 : vector<1x8xf32>
    %347 = arith.addf %343, %346 : vector<1x8xf32>
    %c0_199 = arith.constant 0 : index
    %c8_200 = arith.constant 8 : index
    %c0_201 = arith.constant 0 : index
    %348 = vector.load %arg4[%c0_199, %c8_200, %c0_201] : memref<1x16x8xf32, #tpu.memory_space<vmem>>, vector<1x1x8xf32>
    %349 = vector.shape_cast %348 : vector<1x1x8xf32> to vector<1x8xf32>
    %c0_202 = arith.constant 0 : index
    %c76 = arith.constant 76 : index
    %c0_203 = arith.constant 0 : index
    %350 = vector.load %arg3[%c0_202, %c76, %c0_203] : memref<1x196x8xf32, #tpu.memory_space<vmem>>, vector<1x1x8xf32>
    %351 = vector.shape_cast %350 : vector<1x1x8xf32> to vector<1x8xf32>
    %352 = arith.mulf %351, %3 : vector<1x8xf32>
    %353 = arith.addf %349, %352 : vector<1x8xf32>
    %c0_204 = arith.constant 0 : index
    %c77 = arith.constant 77 : index
    %c0_205 = arith.constant 0 : index
    %354 = vector.load %arg3[%c0_204, %c77, %c0_205] : memref<1x196x8xf32, #tpu.memory_space<vmem>>, vector<1x1x8xf32>
    %355 = vector.shape_cast %354 : vector<1x1x8xf32> to vector<1x8xf32>
    %356 = arith.mulf %355, %4 : vector<1x8xf32>
    %357 = arith.addf %353, %356 : vector<1x8xf32>
    %c0_206 = arith.constant 0 : index
    %c78 = arith.constant 78 : index
    %c0_207 = arith.constant 0 : index
    %358 = vector.load %arg3[%c0_206, %c78, %c0_207] : memref<1x196x8xf32, #tpu.memory_space<vmem>>, vector<1x1x8xf32>
    %359 = vector.shape_cast %358 : vector<1x1x8xf32> to vector<1x8xf32>
    %360 = arith.mulf %359, %5 : vector<1x8xf32>
    %361 = arith.addf %357, %360 : vector<1x8xf32>
    %c0_208 = arith.constant 0 : index
    %c79 = arith.constant 79 : index
    %c0_209 = arith.constant 0 : index
    %362 = vector.load %arg3[%c0_208, %c79, %c0_209] : memref<1x196x8xf32, #tpu.memory_space<vmem>>, vector<1x1x8xf32>
    %363 = vector.shape_cast %362 : vector<1x1x8xf32> to vector<1x8xf32>
    %364 = arith.mulf %363, %6 : vector<1x8xf32>
    %365 = arith.addf %361, %364 : vector<1x8xf32>
    %c0_210 = arith.constant 0 : index
    %c80 = arith.constant 80 : index
    %c0_211 = arith.constant 0 : index
    %366 = vector.load %arg3[%c0_210, %c80, %c0_211] : memref<1x196x8xf32, #tpu.memory_space<vmem>>, vector<1x1x8xf32>
    %367 = vector.shape_cast %366 : vector<1x1x8xf32> to vector<1x8xf32>
    %368 = arith.mulf %367, %7 : vector<1x8xf32>
    %369 = arith.addf %365, %368 : vector<1x8xf32>
    %c0_212 = arith.constant 0 : index
    %c81 = arith.constant 81 : index
    %c0_213 = arith.constant 0 : index
    %370 = vector.load %arg3[%c0_212, %c81, %c0_213] : memref<1x196x8xf32, #tpu.memory_space<vmem>>, vector<1x1x8xf32>
    %371 = vector.shape_cast %370 : vector<1x1x8xf32> to vector<1x8xf32>
    %372 = arith.mulf %371, %8 : vector<1x8xf32>
    %373 = arith.addf %369, %372 : vector<1x8xf32>
    %c0_214 = arith.constant 0 : index
    %c82 = arith.constant 82 : index
    %c0_215 = arith.constant 0 : index
    %374 = vector.load %arg3[%c0_214, %c82, %c0_215] : memref<1x196x8xf32, #tpu.memory_space<vmem>>, vector<1x1x8xf32>
    %375 = vector.shape_cast %374 : vector<1x1x8xf32> to vector<1x8xf32>
    %376 = arith.mulf %375, %9 : vector<1x8xf32>
    %377 = arith.addf %373, %376 : vector<1x8xf32>
    %c0_216 = arith.constant 0 : index
    %c83 = arith.constant 83 : index
    %c0_217 = arith.constant 0 : index
    %378 = vector.load %arg3[%c0_216, %c83, %c0_217] : memref<1x196x8xf32, #tpu.memory_space<vmem>>, vector<1x1x8xf32>
    %379 = vector.shape_cast %378 : vector<1x1x8xf32> to vector<1x8xf32>
    %380 = arith.mulf %379, %10 : vector<1x8xf32>
    %381 = arith.addf %377, %380 : vector<1x8xf32>
    %c0_218 = arith.constant 0 : index
    %c84 = arith.constant 84 : index
    %c0_219 = arith.constant 0 : index
    %382 = vector.load %arg3[%c0_218, %c84, %c0_219] : memref<1x196x8xf32, #tpu.memory_space<vmem>>, vector<1x1x8xf32>
    %383 = vector.shape_cast %382 : vector<1x1x8xf32> to vector<1x8xf32>
    %384 = arith.mulf %383, %189 : vector<1x8xf32>
    %385 = arith.addf %381, %384 : vector<1x8xf32>
    %c0_220 = arith.constant 0 : index
    %c85 = arith.constant 85 : index
    %c0_221 = arith.constant 0 : index
    %386 = vector.load %arg3[%c0_220, %c85, %c0_221] : memref<1x196x8xf32, #tpu.memory_space<vmem>>, vector<1x1x8xf32>
    %387 = vector.shape_cast %386 : vector<1x1x8xf32> to vector<1x8xf32>
    %388 = arith.mulf %387, %192 : vector<1x8xf32>
    %389 = arith.addf %385, %388 : vector<1x8xf32>
    %c0_222 = arith.constant 0 : index
    %c86 = arith.constant 86 : index
    %c0_223 = arith.constant 0 : index
    %390 = vector.load %arg3[%c0_222, %c86, %c0_223] : memref<1x196x8xf32, #tpu.memory_space<vmem>>, vector<1x1x8xf32>
    %391 = vector.shape_cast %390 : vector<1x1x8xf32> to vector<1x8xf32>
    %392 = arith.mulf %391, %197 : vector<1x8xf32>
    %393 = arith.addf %389, %392 : vector<1x8xf32>
    %c0_224 = arith.constant 0 : index
    %c87 = arith.constant 87 : index
    %c0_225 = arith.constant 0 : index
    %394 = vector.load %arg3[%c0_224, %c87, %c0_225] : memref<1x196x8xf32, #tpu.memory_space<vmem>>, vector<1x1x8xf32>
    %395 = vector.shape_cast %394 : vector<1x1x8xf32> to vector<1x8xf32>
    %396 = arith.mulf %395, %180 : vector<1x8xf32>
    %397 = arith.addf %393, %396 : vector<1x8xf32>
    %398 = math.sin %247 : vector<1x8xf32>
    %399 = math.cos %297 : vector<1x8xf32>
    %cst_226 = arith.constant 0.00999999977 : f32
    %400 = vector.broadcast %cst_226 : f32 to vector<1x8xf32>
    %401 = arith.cmpf olt, %397, %400 : vector<1x8xf32>
    %cst_227 = arith.constant 0.00999999977 : f32
    %402 = vector.broadcast %cst_227 : f32 to vector<1x8xf32>
    %403 = arith.select %401, %402, %397 : vector<1x8xi1>, vector<1x8xf32>
    %cst_228 = arith.constant 0.00999999977 : f32
    %404 = vector.broadcast %cst_228 : f32 to vector<1x8xf32>
    %405 = arith.cmpf olt, %397, %404 : vector<1x8xf32>
    %406 = arith.divf %347, %403 : vector<1x8xf32>
    %cst_229 = arith.constant 0.000000e+00 : f32
    %407 = vector.broadcast %cst_229 : f32 to vector<1x8xf32>
    %408 = arith.select %405, %407, %406 : vector<1x8xi1>, vector<1x8xf32>
    %c0_230 = arith.constant 0 : index
    %c9_231 = arith.constant 9 : index
    %c0_232 = arith.constant 0 : index
    %409 = vector.load %arg4[%c0_230, %c9_231, %c0_232] : memref<1x16x8xf32, #tpu.memory_space<vmem>>, vector<1x1x8xf32>
    %410 = vector.shape_cast %409 : vector<1x1x8xf32> to vector<1x8xf32>
    %c0_233 = arith.constant 0 : index
    %c88 = arith.constant 88 : index
    %c0_234 = arith.constant 0 : index
    %411 = vector.load %arg3[%c0_233, %c88, %c0_234] : memref<1x196x8xf32, #tpu.memory_space<vmem>>, vector<1x1x8xf32>
    %412 = vector.shape_cast %411 : vector<1x1x8xf32> to vector<1x8xf32>
    %413 = arith.mulf %412, %3 : vector<1x8xf32>
    %414 = arith.addf %410, %413 : vector<1x8xf32>
    %c0_235 = arith.constant 0 : index
    %c89 = arith.constant 89 : index
    %c0_236 = arith.constant 0 : index
    %415 = vector.load %arg3[%c0_235, %c89, %c0_236] : memref<1x196x8xf32, #tpu.memory_space<vmem>>, vector<1x1x8xf32>
    %416 = vector.shape_cast %415 : vector<1x1x8xf32> to vector<1x8xf32>
    %417 = arith.mulf %416, %4 : vector<1x8xf32>
    %418 = arith.addf %414, %417 : vector<1x8xf32>
    %c0_237 = arith.constant 0 : index
    %c90 = arith.constant 90 : index
    %c0_238 = arith.constant 0 : index
    %419 = vector.load %arg3[%c0_237, %c90, %c0_238] : memref<1x196x8xf32, #tpu.memory_space<vmem>>, vector<1x1x8xf32>
    %420 = vector.shape_cast %419 : vector<1x1x8xf32> to vector<1x8xf32>
    %421 = arith.mulf %420, %5 : vector<1x8xf32>
    %422 = arith.addf %418, %421 : vector<1x8xf32>
    %c0_239 = arith.constant 0 : index
    %c91 = arith.constant 91 : index
    %c0_240 = arith.constant 0 : index
    %423 = vector.load %arg3[%c0_239, %c91, %c0_240] : memref<1x196x8xf32, #tpu.memory_space<vmem>>, vector<1x1x8xf32>
    %424 = vector.shape_cast %423 : vector<1x1x8xf32> to vector<1x8xf32>
    %425 = arith.mulf %424, %6 : vector<1x8xf32>
    %426 = arith.addf %422, %425 : vector<1x8xf32>
    %c0_241 = arith.constant 0 : index
    %c92 = arith.constant 92 : index
    %c0_242 = arith.constant 0 : index
    %427 = vector.load %arg3[%c0_241, %c92, %c0_242] : memref<1x196x8xf32, #tpu.memory_space<vmem>>, vector<1x1x8xf32>
    %428 = vector.shape_cast %427 : vector<1x1x8xf32> to vector<1x8xf32>
    %429 = arith.mulf %428, %7 : vector<1x8xf32>
    %430 = arith.addf %426, %429 : vector<1x8xf32>
    %c0_243 = arith.constant 0 : index
    %c93 = arith.constant 93 : index
    %c0_244 = arith.constant 0 : index
    %431 = vector.load %arg3[%c0_243, %c93, %c0_244] : memref<1x196x8xf32, #tpu.memory_space<vmem>>, vector<1x1x8xf32>
    %432 = vector.shape_cast %431 : vector<1x1x8xf32> to vector<1x8xf32>
    %433 = arith.mulf %432, %8 : vector<1x8xf32>
    %434 = arith.addf %430, %433 : vector<1x8xf32>
    %c0_245 = arith.constant 0 : index
    %c94 = arith.constant 94 : index
    %c0_246 = arith.constant 0 : index
    %435 = vector.load %arg3[%c0_245, %c94, %c0_246] : memref<1x196x8xf32, #tpu.memory_space<vmem>>, vector<1x1x8xf32>
    %436 = vector.shape_cast %435 : vector<1x1x8xf32> to vector<1x8xf32>
    %437 = arith.mulf %436, %9 : vector<1x8xf32>
    %438 = arith.addf %434, %437 : vector<1x8xf32>
    %c0_247 = arith.constant 0 : index
    %c95 = arith.constant 95 : index
    %c0_248 = arith.constant 0 : index
    %439 = vector.load %arg3[%c0_247, %c95, %c0_248] : memref<1x196x8xf32, #tpu.memory_space<vmem>>, vector<1x1x8xf32>
    %440 = vector.shape_cast %439 : vector<1x1x8xf32> to vector<1x8xf32>
    %441 = arith.mulf %440, %10 : vector<1x8xf32>
    %442 = arith.addf %438, %441 : vector<1x8xf32>
    %c0_249 = arith.constant 0 : index
    %c96 = arith.constant 96 : index
    %c0_250 = arith.constant 0 : index
    %443 = vector.load %arg3[%c0_249, %c96, %c0_250] : memref<1x196x8xf32, #tpu.memory_space<vmem>>, vector<1x1x8xf32>
    %444 = vector.shape_cast %443 : vector<1x1x8xf32> to vector<1x8xf32>
    %445 = arith.mulf %444, %189 : vector<1x8xf32>
    %446 = arith.addf %442, %445 : vector<1x8xf32>
    %c0_251 = arith.constant 0 : index
    %c97 = arith.constant 97 : index
    %c0_252 = arith.constant 0 : index
    %447 = vector.load %arg3[%c0_251, %c97, %c0_252] : memref<1x196x8xf32, #tpu.memory_space<vmem>>, vector<1x1x8xf32>
    %448 = vector.shape_cast %447 : vector<1x1x8xf32> to vector<1x8xf32>
    %449 = arith.mulf %448, %192 : vector<1x8xf32>
    %450 = arith.addf %446, %449 : vector<1x8xf32>
    %c0_253 = arith.constant 0 : index
    %c98 = arith.constant 98 : index
    %c0_254 = arith.constant 0 : index
    %451 = vector.load %arg3[%c0_253, %c98, %c0_254] : memref<1x196x8xf32, #tpu.memory_space<vmem>>, vector<1x1x8xf32>
    %452 = vector.shape_cast %451 : vector<1x1x8xf32> to vector<1x8xf32>
    %453 = arith.mulf %452, %197 : vector<1x8xf32>
    %454 = arith.addf %450, %453 : vector<1x8xf32>
    %c0_255 = arith.constant 0 : index
    %c99 = arith.constant 99 : index
    %c0_256 = arith.constant 0 : index
    %455 = vector.load %arg3[%c0_255, %c99, %c0_256] : memref<1x196x8xf32, #tpu.memory_space<vmem>>, vector<1x1x8xf32>
    %456 = vector.shape_cast %455 : vector<1x1x8xf32> to vector<1x8xf32>
    %457 = arith.mulf %456, %180 : vector<1x8xf32>
    %458 = arith.addf %454, %457 : vector<1x8xf32>
    %c0_257 = arith.constant 0 : index
    %c100 = arith.constant 100 : index
    %c0_258 = arith.constant 0 : index
    %459 = vector.load %arg3[%c0_257, %c100, %c0_258] : memref<1x196x8xf32, #tpu.memory_space<vmem>>, vector<1x1x8xf32>
    %460 = vector.shape_cast %459 : vector<1x1x8xf32> to vector<1x8xf32>
    %461 = arith.mulf %460, %398 : vector<1x8xf32>
    %462 = arith.addf %458, %461 : vector<1x8xf32>
    %c0_259 = arith.constant 0 : index
    %c101 = arith.constant 101 : index
    %c0_260 = arith.constant 0 : index
    %463 = vector.load %arg3[%c0_259, %c101, %c0_260] : memref<1x196x8xf32, #tpu.memory_space<vmem>>, vector<1x1x8xf32>
    %464 = vector.shape_cast %463 : vector<1x1x8xf32> to vector<1x8xf32>
    %465 = arith.mulf %464, %399 : vector<1x8xf32>
    %466 = arith.addf %462, %465 : vector<1x8xf32>
    %c0_261 = arith.constant 0 : index
    %c102 = arith.constant 102 : index
    %c0_262 = arith.constant 0 : index
    %467 = vector.load %arg3[%c0_261, %c102, %c0_262] : memref<1x196x8xf32, #tpu.memory_space<vmem>>, vector<1x1x8xf32>
    %468 = vector.shape_cast %467 : vector<1x1x8xf32> to vector<1x8xf32>
    %469 = arith.mulf %468, %408 : vector<1x8xf32>
    %470 = arith.addf %466, %469 : vector<1x8xf32>
    %c0_263 = arith.constant 0 : index
    %c10_264 = arith.constant 10 : index
    %c0_265 = arith.constant 0 : index
    %471 = vector.load %arg4[%c0_263, %c10_264, %c0_265] : memref<1x16x8xf32, #tpu.memory_space<vmem>>, vector<1x1x8xf32>
    %472 = vector.shape_cast %471 : vector<1x1x8xf32> to vector<1x8xf32>
    %c0_266 = arith.constant 0 : index
    %c103 = arith.constant 103 : index
    %c0_267 = arith.constant 0 : index
    %473 = vector.load %arg3[%c0_266, %c103, %c0_267] : memref<1x196x8xf32, #tpu.memory_space<vmem>>, vector<1x1x8xf32>
    %474 = vector.shape_cast %473 : vector<1x1x8xf32> to vector<1x8xf32>
    %475 = arith.mulf %474, %3 : vector<1x8xf32>
    %476 = arith.addf %472, %475 : vector<1x8xf32>
    %c0_268 = arith.constant 0 : index
    %c104 = arith.constant 104 : index
    %c0_269 = arith.constant 0 : index
    %477 = vector.load %arg3[%c0_268, %c104, %c0_269] : memref<1x196x8xf32, #tpu.memory_space<vmem>>, vector<1x1x8xf32>
    %478 = vector.shape_cast %477 : vector<1x1x8xf32> to vector<1x8xf32>
    %479 = arith.mulf %478, %4 : vector<1x8xf32>
    %480 = arith.addf %476, %479 : vector<1x8xf32>
    %c0_270 = arith.constant 0 : index
    %c105 = arith.constant 105 : index
    %c0_271 = arith.constant 0 : index
    %481 = vector.load %arg3[%c0_270, %c105, %c0_271] : memref<1x196x8xf32, #tpu.memory_space<vmem>>, vector<1x1x8xf32>
    %482 = vector.shape_cast %481 : vector<1x1x8xf32> to vector<1x8xf32>
    %483 = arith.mulf %482, %5 : vector<1x8xf32>
    %484 = arith.addf %480, %483 : vector<1x8xf32>
    %c0_272 = arith.constant 0 : index
    %c106 = arith.constant 106 : index
    %c0_273 = arith.constant 0 : index
    %485 = vector.load %arg3[%c0_272, %c106, %c0_273] : memref<1x196x8xf32, #tpu.memory_space<vmem>>, vector<1x1x8xf32>
    %486 = vector.shape_cast %485 : vector<1x1x8xf32> to vector<1x8xf32>
    %487 = arith.mulf %486, %6 : vector<1x8xf32>
    %488 = arith.addf %484, %487 : vector<1x8xf32>
    %c0_274 = arith.constant 0 : index
    %c107 = arith.constant 107 : index
    %c0_275 = arith.constant 0 : index
    %489 = vector.load %arg3[%c0_274, %c107, %c0_275] : memref<1x196x8xf32, #tpu.memory_space<vmem>>, vector<1x1x8xf32>
    %490 = vector.shape_cast %489 : vector<1x1x8xf32> to vector<1x8xf32>
    %491 = arith.mulf %490, %7 : vector<1x8xf32>
    %492 = arith.addf %488, %491 : vector<1x8xf32>
    %c0_276 = arith.constant 0 : index
    %c108 = arith.constant 108 : index
    %c0_277 = arith.constant 0 : index
    %493 = vector.load %arg3[%c0_276, %c108, %c0_277] : memref<1x196x8xf32, #tpu.memory_space<vmem>>, vector<1x1x8xf32>
    %494 = vector.shape_cast %493 : vector<1x1x8xf32> to vector<1x8xf32>
    %495 = arith.mulf %494, %8 : vector<1x8xf32>
    %496 = arith.addf %492, %495 : vector<1x8xf32>
    %c0_278 = arith.constant 0 : index
    %c109 = arith.constant 109 : index
    %c0_279 = arith.constant 0 : index
    %497 = vector.load %arg3[%c0_278, %c109, %c0_279] : memref<1x196x8xf32, #tpu.memory_space<vmem>>, vector<1x1x8xf32>
    %498 = vector.shape_cast %497 : vector<1x1x8xf32> to vector<1x8xf32>
    %499 = arith.mulf %498, %9 : vector<1x8xf32>
    %500 = arith.addf %496, %499 : vector<1x8xf32>
    %c0_280 = arith.constant 0 : index
    %c110 = arith.constant 110 : index
    %c0_281 = arith.constant 0 : index
    %501 = vector.load %arg3[%c0_280, %c110, %c0_281] : memref<1x196x8xf32, #tpu.memory_space<vmem>>, vector<1x1x8xf32>
    %502 = vector.shape_cast %501 : vector<1x1x8xf32> to vector<1x8xf32>
    %503 = arith.mulf %502, %10 : vector<1x8xf32>
    %504 = arith.addf %500, %503 : vector<1x8xf32>
    %c0_282 = arith.constant 0 : index
    %c111 = arith.constant 111 : index
    %c0_283 = arith.constant 0 : index
    %505 = vector.load %arg3[%c0_282, %c111, %c0_283] : memref<1x196x8xf32, #tpu.memory_space<vmem>>, vector<1x1x8xf32>
    %506 = vector.shape_cast %505 : vector<1x1x8xf32> to vector<1x8xf32>
    %507 = arith.mulf %506, %189 : vector<1x8xf32>
    %508 = arith.addf %504, %507 : vector<1x8xf32>
    %c0_284 = arith.constant 0 : index
    %c112 = arith.constant 112 : index
    %c0_285 = arith.constant 0 : index
    %509 = vector.load %arg3[%c0_284, %c112, %c0_285] : memref<1x196x8xf32, #tpu.memory_space<vmem>>, vector<1x1x8xf32>
    %510 = vector.shape_cast %509 : vector<1x1x8xf32> to vector<1x8xf32>
    %511 = arith.mulf %510, %192 : vector<1x8xf32>
    %512 = arith.addf %508, %511 : vector<1x8xf32>
    %c0_286 = arith.constant 0 : index
    %c113 = arith.constant 113 : index
    %c0_287 = arith.constant 0 : index
    %513 = vector.load %arg3[%c0_286, %c113, %c0_287] : memref<1x196x8xf32, #tpu.memory_space<vmem>>, vector<1x1x8xf32>
    %514 = vector.shape_cast %513 : vector<1x1x8xf32> to vector<1x8xf32>
    %515 = arith.mulf %514, %197 : vector<1x8xf32>
    %516 = arith.addf %512, %515 : vector<1x8xf32>
    %c0_288 = arith.constant 0 : index
    %c114 = arith.constant 114 : index
    %c0_289 = arith.constant 0 : index
    %517 = vector.load %arg3[%c0_288, %c114, %c0_289] : memref<1x196x8xf32, #tpu.memory_space<vmem>>, vector<1x1x8xf32>
    %518 = vector.shape_cast %517 : vector<1x1x8xf32> to vector<1x8xf32>
    %519 = arith.mulf %518, %180 : vector<1x8xf32>
    %520 = arith.addf %516, %519 : vector<1x8xf32>
    %c0_290 = arith.constant 0 : index
    %c115 = arith.constant 115 : index
    %c0_291 = arith.constant 0 : index
    %521 = vector.load %arg3[%c0_290, %c115, %c0_291] : memref<1x196x8xf32, #tpu.memory_space<vmem>>, vector<1x1x8xf32>
    %522 = vector.shape_cast %521 : vector<1x1x8xf32> to vector<1x8xf32>
    %523 = arith.mulf %522, %398 : vector<1x8xf32>
    %524 = arith.addf %520, %523 : vector<1x8xf32>
    %c0_292 = arith.constant 0 : index
    %c116 = arith.constant 116 : index
    %c0_293 = arith.constant 0 : index
    %525 = vector.load %arg3[%c0_292, %c116, %c0_293] : memref<1x196x8xf32, #tpu.memory_space<vmem>>, vector<1x1x8xf32>
    %526 = vector.shape_cast %525 : vector<1x1x8xf32> to vector<1x8xf32>
    %527 = arith.mulf %526, %399 : vector<1x8xf32>
    %528 = arith.addf %524, %527 : vector<1x8xf32>
    %c0_294 = arith.constant 0 : index
    %c117 = arith.constant 117 : index
    %c0_295 = arith.constant 0 : index
    %529 = vector.load %arg3[%c0_294, %c117, %c0_295] : memref<1x196x8xf32, #tpu.memory_space<vmem>>, vector<1x1x8xf32>
    %530 = vector.shape_cast %529 : vector<1x1x8xf32> to vector<1x8xf32>
    %531 = arith.mulf %530, %408 : vector<1x8xf32>
    %532 = arith.addf %528, %531 : vector<1x8xf32>
    %c0_296 = arith.constant 0 : index
    %c11_297 = arith.constant 11 : index
    %c0_298 = arith.constant 0 : index
    %533 = vector.load %arg4[%c0_296, %c11_297, %c0_298] : memref<1x16x8xf32, #tpu.memory_space<vmem>>, vector<1x1x8xf32>
    %534 = vector.shape_cast %533 : vector<1x1x8xf32> to vector<1x8xf32>
    %c0_299 = arith.constant 0 : index
    %c118 = arith.constant 118 : index
    %c0_300 = arith.constant 0 : index
    %535 = vector.load %arg3[%c0_299, %c118, %c0_300] : memref<1x196x8xf32, #tpu.memory_space<vmem>>, vector<1x1x8xf32>
    %536 = vector.shape_cast %535 : vector<1x1x8xf32> to vector<1x8xf32>
    %537 = arith.mulf %536, %3 : vector<1x8xf32>
    %538 = arith.addf %534, %537 : vector<1x8xf32>
    %c0_301 = arith.constant 0 : index
    %c119 = arith.constant 119 : index
    %c0_302 = arith.constant 0 : index
    %539 = vector.load %arg3[%c0_301, %c119, %c0_302] : memref<1x196x8xf32, #tpu.memory_space<vmem>>, vector<1x1x8xf32>
    %540 = vector.shape_cast %539 : vector<1x1x8xf32> to vector<1x8xf32>
    %541 = arith.mulf %540, %4 : vector<1x8xf32>
    %542 = arith.addf %538, %541 : vector<1x8xf32>
    %c0_303 = arith.constant 0 : index
    %c120 = arith.constant 120 : index
    %c0_304 = arith.constant 0 : index
    %543 = vector.load %arg3[%c0_303, %c120, %c0_304] : memref<1x196x8xf32, #tpu.memory_space<vmem>>, vector<1x1x8xf32>
    %544 = vector.shape_cast %543 : vector<1x1x8xf32> to vector<1x8xf32>
    %545 = arith.mulf %544, %5 : vector<1x8xf32>
    %546 = arith.addf %542, %545 : vector<1x8xf32>
    %c0_305 = arith.constant 0 : index
    %c121 = arith.constant 121 : index
    %c0_306 = arith.constant 0 : index
    %547 = vector.load %arg3[%c0_305, %c121, %c0_306] : memref<1x196x8xf32, #tpu.memory_space<vmem>>, vector<1x1x8xf32>
    %548 = vector.shape_cast %547 : vector<1x1x8xf32> to vector<1x8xf32>
    %549 = arith.mulf %548, %6 : vector<1x8xf32>
    %550 = arith.addf %546, %549 : vector<1x8xf32>
    %c0_307 = arith.constant 0 : index
    %c122 = arith.constant 122 : index
    %c0_308 = arith.constant 0 : index
    %551 = vector.load %arg3[%c0_307, %c122, %c0_308] : memref<1x196x8xf32, #tpu.memory_space<vmem>>, vector<1x1x8xf32>
    %552 = vector.shape_cast %551 : vector<1x1x8xf32> to vector<1x8xf32>
    %553 = arith.mulf %552, %7 : vector<1x8xf32>
    %554 = arith.addf %550, %553 : vector<1x8xf32>
    %c0_309 = arith.constant 0 : index
    %c123 = arith.constant 123 : index
    %c0_310 = arith.constant 0 : index
    %555 = vector.load %arg3[%c0_309, %c123, %c0_310] : memref<1x196x8xf32, #tpu.memory_space<vmem>>, vector<1x1x8xf32>
    %556 = vector.shape_cast %555 : vector<1x1x8xf32> to vector<1x8xf32>
    %557 = arith.mulf %556, %8 : vector<1x8xf32>
    %558 = arith.addf %554, %557 : vector<1x8xf32>
    %c0_311 = arith.constant 0 : index
    %c124 = arith.constant 124 : index
    %c0_312 = arith.constant 0 : index
    %559 = vector.load %arg3[%c0_311, %c124, %c0_312] : memref<1x196x8xf32, #tpu.memory_space<vmem>>, vector<1x1x8xf32>
    %560 = vector.shape_cast %559 : vector<1x1x8xf32> to vector<1x8xf32>
    %561 = arith.mulf %560, %9 : vector<1x8xf32>
    %562 = arith.addf %558, %561 : vector<1x8xf32>
    %c0_313 = arith.constant 0 : index
    %c125 = arith.constant 125 : index
    %c0_314 = arith.constant 0 : index
    %563 = vector.load %arg3[%c0_313, %c125, %c0_314] : memref<1x196x8xf32, #tpu.memory_space<vmem>>, vector<1x1x8xf32>
    %564 = vector.shape_cast %563 : vector<1x1x8xf32> to vector<1x8xf32>
    %565 = arith.mulf %564, %10 : vector<1x8xf32>
    %566 = arith.addf %562, %565 : vector<1x8xf32>
    %c0_315 = arith.constant 0 : index
    %c126 = arith.constant 126 : index
    %c0_316 = arith.constant 0 : index
    %567 = vector.load %arg3[%c0_315, %c126, %c0_316] : memref<1x196x8xf32, #tpu.memory_space<vmem>>, vector<1x1x8xf32>
    %568 = vector.shape_cast %567 : vector<1x1x8xf32> to vector<1x8xf32>
    %569 = arith.mulf %568, %189 : vector<1x8xf32>
    %570 = arith.addf %566, %569 : vector<1x8xf32>
    %c0_317 = arith.constant 0 : index
    %c127 = arith.constant 127 : index
    %c0_318 = arith.constant 0 : index
    %571 = vector.load %arg3[%c0_317, %c127, %c0_318] : memref<1x196x8xf32, #tpu.memory_space<vmem>>, vector<1x1x8xf32>
    %572 = vector.shape_cast %571 : vector<1x1x8xf32> to vector<1x8xf32>
    %573 = arith.mulf %572, %192 : vector<1x8xf32>
    %574 = arith.addf %570, %573 : vector<1x8xf32>
    %c0_319 = arith.constant 0 : index
    %c128 = arith.constant 128 : index
    %c0_320 = arith.constant 0 : index
    %575 = vector.load %arg3[%c0_319, %c128, %c0_320] : memref<1x196x8xf32, #tpu.memory_space<vmem>>, vector<1x1x8xf32>
    %576 = vector.shape_cast %575 : vector<1x1x8xf32> to vector<1x8xf32>
    %577 = arith.mulf %576, %197 : vector<1x8xf32>
    %578 = arith.addf %574, %577 : vector<1x8xf32>
    %c0_321 = arith.constant 0 : index
    %c129 = arith.constant 129 : index
    %c0_322 = arith.constant 0 : index
    %579 = vector.load %arg3[%c0_321, %c129, %c0_322] : memref<1x196x8xf32, #tpu.memory_space<vmem>>, vector<1x1x8xf32>
    %580 = vector.shape_cast %579 : vector<1x1x8xf32> to vector<1x8xf32>
    %581 = arith.mulf %580, %180 : vector<1x8xf32>
    %582 = arith.addf %578, %581 : vector<1x8xf32>
    %c0_323 = arith.constant 0 : index
    %c130 = arith.constant 130 : index
    %c0_324 = arith.constant 0 : index
    %583 = vector.load %arg3[%c0_323, %c130, %c0_324] : memref<1x196x8xf32, #tpu.memory_space<vmem>>, vector<1x1x8xf32>
    %584 = vector.shape_cast %583 : vector<1x1x8xf32> to vector<1x8xf32>
    %585 = arith.mulf %584, %398 : vector<1x8xf32>
    %586 = arith.addf %582, %585 : vector<1x8xf32>
    %c0_325 = arith.constant 0 : index
    %c131 = arith.constant 131 : index
    %c0_326 = arith.constant 0 : index
    %587 = vector.load %arg3[%c0_325, %c131, %c0_326] : memref<1x196x8xf32, #tpu.memory_space<vmem>>, vector<1x1x8xf32>
    %588 = vector.shape_cast %587 : vector<1x1x8xf32> to vector<1x8xf32>
    %589 = arith.mulf %588, %399 : vector<1x8xf32>
    %590 = arith.addf %586, %589 : vector<1x8xf32>
    %c0_327 = arith.constant 0 : index
    %c132 = arith.constant 132 : index
    %c0_328 = arith.constant 0 : index
    %591 = vector.load %arg3[%c0_327, %c132, %c0_328] : memref<1x196x8xf32, #tpu.memory_space<vmem>>, vector<1x1x8xf32>
    %592 = vector.shape_cast %591 : vector<1x1x8xf32> to vector<1x8xf32>
    %593 = arith.mulf %592, %408 : vector<1x8xf32>
    %594 = arith.addf %590, %593 : vector<1x8xf32>
    %c0_329 = arith.constant 0 : index
    %c12_330 = arith.constant 12 : index
    %c0_331 = arith.constant 0 : index
    %595 = vector.load %arg4[%c0_329, %c12_330, %c0_331] : memref<1x16x8xf32, #tpu.memory_space<vmem>>, vector<1x1x8xf32>
    %596 = vector.shape_cast %595 : vector<1x1x8xf32> to vector<1x8xf32>
    %c0_332 = arith.constant 0 : index
    %c133 = arith.constant 133 : index
    %c0_333 = arith.constant 0 : index
    %597 = vector.load %arg3[%c0_332, %c133, %c0_333] : memref<1x196x8xf32, #tpu.memory_space<vmem>>, vector<1x1x8xf32>
    %598 = vector.shape_cast %597 : vector<1x1x8xf32> to vector<1x8xf32>
    %599 = arith.mulf %598, %3 : vector<1x8xf32>
    %600 = arith.addf %596, %599 : vector<1x8xf32>
    %c0_334 = arith.constant 0 : index
    %c134 = arith.constant 134 : index
    %c0_335 = arith.constant 0 : index
    %601 = vector.load %arg3[%c0_334, %c134, %c0_335] : memref<1x196x8xf32, #tpu.memory_space<vmem>>, vector<1x1x8xf32>
    %602 = vector.shape_cast %601 : vector<1x1x8xf32> to vector<1x8xf32>
    %603 = arith.mulf %602, %4 : vector<1x8xf32>
    %604 = arith.addf %600, %603 : vector<1x8xf32>
    %c0_336 = arith.constant 0 : index
    %c135 = arith.constant 135 : index
    %c0_337 = arith.constant 0 : index
    %605 = vector.load %arg3[%c0_336, %c135, %c0_337] : memref<1x196x8xf32, #tpu.memory_space<vmem>>, vector<1x1x8xf32>
    %606 = vector.shape_cast %605 : vector<1x1x8xf32> to vector<1x8xf32>
    %607 = arith.mulf %606, %5 : vector<1x8xf32>
    %608 = arith.addf %604, %607 : vector<1x8xf32>
    %c0_338 = arith.constant 0 : index
    %c136 = arith.constant 136 : index
    %c0_339 = arith.constant 0 : index
    %609 = vector.load %arg3[%c0_338, %c136, %c0_339] : memref<1x196x8xf32, #tpu.memory_space<vmem>>, vector<1x1x8xf32>
    %610 = vector.shape_cast %609 : vector<1x1x8xf32> to vector<1x8xf32>
    %611 = arith.mulf %610, %6 : vector<1x8xf32>
    %612 = arith.addf %608, %611 : vector<1x8xf32>
    %c0_340 = arith.constant 0 : index
    %c137 = arith.constant 137 : index
    %c0_341 = arith.constant 0 : index
    %613 = vector.load %arg3[%c0_340, %c137, %c0_341] : memref<1x196x8xf32, #tpu.memory_space<vmem>>, vector<1x1x8xf32>
    %614 = vector.shape_cast %613 : vector<1x1x8xf32> to vector<1x8xf32>
    %615 = arith.mulf %614, %7 : vector<1x8xf32>
    %616 = arith.addf %612, %615 : vector<1x8xf32>
    %c0_342 = arith.constant 0 : index
    %c138 = arith.constant 138 : index
    %c0_343 = arith.constant 0 : index
    %617 = vector.load %arg3[%c0_342, %c138, %c0_343] : memref<1x196x8xf32, #tpu.memory_space<vmem>>, vector<1x1x8xf32>
    %618 = vector.shape_cast %617 : vector<1x1x8xf32> to vector<1x8xf32>
    %619 = arith.mulf %618, %8 : vector<1x8xf32>
    %620 = arith.addf %616, %619 : vector<1x8xf32>
    %c0_344 = arith.constant 0 : index
    %c139 = arith.constant 139 : index
    %c0_345 = arith.constant 0 : index
    %621 = vector.load %arg3[%c0_344, %c139, %c0_345] : memref<1x196x8xf32, #tpu.memory_space<vmem>>, vector<1x1x8xf32>
    %622 = vector.shape_cast %621 : vector<1x1x8xf32> to vector<1x8xf32>
    %623 = arith.mulf %622, %9 : vector<1x8xf32>
    %624 = arith.addf %620, %623 : vector<1x8xf32>
    %c0_346 = arith.constant 0 : index
    %c140 = arith.constant 140 : index
    %c0_347 = arith.constant 0 : index
    %625 = vector.load %arg3[%c0_346, %c140, %c0_347] : memref<1x196x8xf32, #tpu.memory_space<vmem>>, vector<1x1x8xf32>
    %626 = vector.shape_cast %625 : vector<1x1x8xf32> to vector<1x8xf32>
    %627 = arith.mulf %626, %10 : vector<1x8xf32>
    %628 = arith.addf %624, %627 : vector<1x8xf32>
    %c0_348 = arith.constant 0 : index
    %c141 = arith.constant 141 : index
    %c0_349 = arith.constant 0 : index
    %629 = vector.load %arg3[%c0_348, %c141, %c0_349] : memref<1x196x8xf32, #tpu.memory_space<vmem>>, vector<1x1x8xf32>
    %630 = vector.shape_cast %629 : vector<1x1x8xf32> to vector<1x8xf32>
    %631 = arith.mulf %630, %189 : vector<1x8xf32>
    %632 = arith.addf %628, %631 : vector<1x8xf32>
    %c0_350 = arith.constant 0 : index
    %c142 = arith.constant 142 : index
    %c0_351 = arith.constant 0 : index
    %633 = vector.load %arg3[%c0_350, %c142, %c0_351] : memref<1x196x8xf32, #tpu.memory_space<vmem>>, vector<1x1x8xf32>
    %634 = vector.shape_cast %633 : vector<1x1x8xf32> to vector<1x8xf32>
    %635 = arith.mulf %634, %192 : vector<1x8xf32>
    %636 = arith.addf %632, %635 : vector<1x8xf32>
    %c0_352 = arith.constant 0 : index
    %c143 = arith.constant 143 : index
    %c0_353 = arith.constant 0 : index
    %637 = vector.load %arg3[%c0_352, %c143, %c0_353] : memref<1x196x8xf32, #tpu.memory_space<vmem>>, vector<1x1x8xf32>
    %638 = vector.shape_cast %637 : vector<1x1x8xf32> to vector<1x8xf32>
    %639 = arith.mulf %638, %197 : vector<1x8xf32>
    %640 = arith.addf %636, %639 : vector<1x8xf32>
    %c0_354 = arith.constant 0 : index
    %c144 = arith.constant 144 : index
    %c0_355 = arith.constant 0 : index
    %641 = vector.load %arg3[%c0_354, %c144, %c0_355] : memref<1x196x8xf32, #tpu.memory_space<vmem>>, vector<1x1x8xf32>
    %642 = vector.shape_cast %641 : vector<1x1x8xf32> to vector<1x8xf32>
    %643 = arith.mulf %642, %180 : vector<1x8xf32>
    %644 = arith.addf %640, %643 : vector<1x8xf32>
    %c0_356 = arith.constant 0 : index
    %c145 = arith.constant 145 : index
    %c0_357 = arith.constant 0 : index
    %645 = vector.load %arg3[%c0_356, %c145, %c0_357] : memref<1x196x8xf32, #tpu.memory_space<vmem>>, vector<1x1x8xf32>
    %646 = vector.shape_cast %645 : vector<1x1x8xf32> to vector<1x8xf32>
    %647 = arith.mulf %646, %398 : vector<1x8xf32>
    %648 = arith.addf %644, %647 : vector<1x8xf32>
    %c0_358 = arith.constant 0 : index
    %c146 = arith.constant 146 : index
    %c0_359 = arith.constant 0 : index
    %649 = vector.load %arg3[%c0_358, %c146, %c0_359] : memref<1x196x8xf32, #tpu.memory_space<vmem>>, vector<1x1x8xf32>
    %650 = vector.shape_cast %649 : vector<1x1x8xf32> to vector<1x8xf32>
    %651 = arith.mulf %650, %399 : vector<1x8xf32>
    %652 = arith.addf %648, %651 : vector<1x8xf32>
    %c0_360 = arith.constant 0 : index
    %c147 = arith.constant 147 : index
    %c0_361 = arith.constant 0 : index
    %653 = vector.load %arg3[%c0_360, %c147, %c0_361] : memref<1x196x8xf32, #tpu.memory_space<vmem>>, vector<1x1x8xf32>
    %654 = vector.shape_cast %653 : vector<1x1x8xf32> to vector<1x8xf32>
    %655 = arith.mulf %654, %408 : vector<1x8xf32>
    %656 = arith.addf %652, %655 : vector<1x8xf32>
    %c0_362 = arith.constant 0 : index
    %c13_363 = arith.constant 13 : index
    %c0_364 = arith.constant 0 : index
    %657 = vector.load %arg4[%c0_362, %c13_363, %c0_364] : memref<1x16x8xf32, #tpu.memory_space<vmem>>, vector<1x1x8xf32>
    %658 = vector.shape_cast %657 : vector<1x1x8xf32> to vector<1x8xf32>
    %c0_365 = arith.constant 0 : index
    %c148 = arith.constant 148 : index
    %c0_366 = arith.constant 0 : index
    %659 = vector.load %arg3[%c0_365, %c148, %c0_366] : memref<1x196x8xf32, #tpu.memory_space<vmem>>, vector<1x1x8xf32>
    %660 = vector.shape_cast %659 : vector<1x1x8xf32> to vector<1x8xf32>
    %661 = arith.mulf %660, %3 : vector<1x8xf32>
    %662 = arith.addf %658, %661 : vector<1x8xf32>
    %c0_367 = arith.constant 0 : index
    %c149 = arith.constant 149 : index
    %c0_368 = arith.constant 0 : index
    %663 = vector.load %arg3[%c0_367, %c149, %c0_368] : memref<1x196x8xf32, #tpu.memory_space<vmem>>, vector<1x1x8xf32>
    %664 = vector.shape_cast %663 : vector<1x1x8xf32> to vector<1x8xf32>
    %665 = arith.mulf %664, %4 : vector<1x8xf32>
    %666 = arith.addf %662, %665 : vector<1x8xf32>
    %c0_369 = arith.constant 0 : index
    %c150 = arith.constant 150 : index
    %c0_370 = arith.constant 0 : index
    %667 = vector.load %arg3[%c0_369, %c150, %c0_370] : memref<1x196x8xf32, #tpu.memory_space<vmem>>, vector<1x1x8xf32>
    %668 = vector.shape_cast %667 : vector<1x1x8xf32> to vector<1x8xf32>
    %669 = arith.mulf %668, %5 : vector<1x8xf32>
    %670 = arith.addf %666, %669 : vector<1x8xf32>
    %c0_371 = arith.constant 0 : index
    %c151 = arith.constant 151 : index
    %c0_372 = arith.constant 0 : index
    %671 = vector.load %arg3[%c0_371, %c151, %c0_372] : memref<1x196x8xf32, #tpu.memory_space<vmem>>, vector<1x1x8xf32>
    %672 = vector.shape_cast %671 : vector<1x1x8xf32> to vector<1x8xf32>
    %673 = arith.mulf %672, %6 : vector<1x8xf32>
    %674 = arith.addf %670, %673 : vector<1x8xf32>
    %c0_373 = arith.constant 0 : index
    %c152 = arith.constant 152 : index
    %c0_374 = arith.constant 0 : index
    %675 = vector.load %arg3[%c0_373, %c152, %c0_374] : memref<1x196x8xf32, #tpu.memory_space<vmem>>, vector<1x1x8xf32>
    %676 = vector.shape_cast %675 : vector<1x1x8xf32> to vector<1x8xf32>
    %677 = arith.mulf %676, %7 : vector<1x8xf32>
    %678 = arith.addf %674, %677 : vector<1x8xf32>
    %c0_375 = arith.constant 0 : index
    %c153 = arith.constant 153 : index
    %c0_376 = arith.constant 0 : index
    %679 = vector.load %arg3[%c0_375, %c153, %c0_376] : memref<1x196x8xf32, #tpu.memory_space<vmem>>, vector<1x1x8xf32>
    %680 = vector.shape_cast %679 : vector<1x1x8xf32> to vector<1x8xf32>
    %681 = arith.mulf %680, %8 : vector<1x8xf32>
    %682 = arith.addf %678, %681 : vector<1x8xf32>
    %c0_377 = arith.constant 0 : index
    %c154 = arith.constant 154 : index
    %c0_378 = arith.constant 0 : index
    %683 = vector.load %arg3[%c0_377, %c154, %c0_378] : memref<1x196x8xf32, #tpu.memory_space<vmem>>, vector<1x1x8xf32>
    %684 = vector.shape_cast %683 : vector<1x1x8xf32> to vector<1x8xf32>
    %685 = arith.mulf %684, %9 : vector<1x8xf32>
    %686 = arith.addf %682, %685 : vector<1x8xf32>
    %c0_379 = arith.constant 0 : index
    %c155 = arith.constant 155 : index
    %c0_380 = arith.constant 0 : index
    %687 = vector.load %arg3[%c0_379, %c155, %c0_380] : memref<1x196x8xf32, #tpu.memory_space<vmem>>, vector<1x1x8xf32>
    %688 = vector.shape_cast %687 : vector<1x1x8xf32> to vector<1x8xf32>
    %689 = arith.mulf %688, %10 : vector<1x8xf32>
    %690 = arith.addf %686, %689 : vector<1x8xf32>
    %c0_381 = arith.constant 0 : index
    %c156 = arith.constant 156 : index
    %c0_382 = arith.constant 0 : index
    %691 = vector.load %arg3[%c0_381, %c156, %c0_382] : memref<1x196x8xf32, #tpu.memory_space<vmem>>, vector<1x1x8xf32>
    %692 = vector.shape_cast %691 : vector<1x1x8xf32> to vector<1x8xf32>
    %693 = arith.mulf %692, %189 : vector<1x8xf32>
    %694 = arith.addf %690, %693 : vector<1x8xf32>
    %c0_383 = arith.constant 0 : index
    %c157 = arith.constant 157 : index
    %c0_384 = arith.constant 0 : index
    %695 = vector.load %arg3[%c0_383, %c157, %c0_384] : memref<1x196x8xf32, #tpu.memory_space<vmem>>, vector<1x1x8xf32>
    %696 = vector.shape_cast %695 : vector<1x1x8xf32> to vector<1x8xf32>
    %697 = arith.mulf %696, %192 : vector<1x8xf32>
    %698 = arith.addf %694, %697 : vector<1x8xf32>
    %c0_385 = arith.constant 0 : index
    %c158 = arith.constant 158 : index
    %c0_386 = arith.constant 0 : index
    %699 = vector.load %arg3[%c0_385, %c158, %c0_386] : memref<1x196x8xf32, #tpu.memory_space<vmem>>, vector<1x1x8xf32>
    %700 = vector.shape_cast %699 : vector<1x1x8xf32> to vector<1x8xf32>
    %701 = arith.mulf %700, %197 : vector<1x8xf32>
    %702 = arith.addf %698, %701 : vector<1x8xf32>
    %c0_387 = arith.constant 0 : index
    %c159 = arith.constant 159 : index
    %c0_388 = arith.constant 0 : index
    %703 = vector.load %arg3[%c0_387, %c159, %c0_388] : memref<1x196x8xf32, #tpu.memory_space<vmem>>, vector<1x1x8xf32>
    %704 = vector.shape_cast %703 : vector<1x1x8xf32> to vector<1x8xf32>
    %705 = arith.mulf %704, %180 : vector<1x8xf32>
    %706 = arith.addf %702, %705 : vector<1x8xf32>
    %c0_389 = arith.constant 0 : index
    %c160 = arith.constant 160 : index
    %c0_390 = arith.constant 0 : index
    %707 = vector.load %arg3[%c0_389, %c160, %c0_390] : memref<1x196x8xf32, #tpu.memory_space<vmem>>, vector<1x1x8xf32>
    %708 = vector.shape_cast %707 : vector<1x1x8xf32> to vector<1x8xf32>
    %709 = arith.mulf %708, %398 : vector<1x8xf32>
    %710 = arith.addf %706, %709 : vector<1x8xf32>
    %c0_391 = arith.constant 0 : index
    %c161 = arith.constant 161 : index
    %c0_392 = arith.constant 0 : index
    %711 = vector.load %arg3[%c0_391, %c161, %c0_392] : memref<1x196x8xf32, #tpu.memory_space<vmem>>, vector<1x1x8xf32>
    %712 = vector.shape_cast %711 : vector<1x1x8xf32> to vector<1x8xf32>
    %713 = arith.mulf %712, %399 : vector<1x8xf32>
    %714 = arith.addf %710, %713 : vector<1x8xf32>
    %c0_393 = arith.constant 0 : index
    %c162 = arith.constant 162 : index
    %c0_394 = arith.constant 0 : index
    %715 = vector.load %arg3[%c0_393, %c162, %c0_394] : memref<1x196x8xf32, #tpu.memory_space<vmem>>, vector<1x1x8xf32>
    %716 = vector.shape_cast %715 : vector<1x1x8xf32> to vector<1x8xf32>
    %717 = arith.mulf %716, %408 : vector<1x8xf32>
    %718 = arith.addf %714, %717 : vector<1x8xf32>
    %c0_395 = arith.constant 0 : index
    %c14_396 = arith.constant 14 : index
    %c0_397 = arith.constant 0 : index
    %719 = vector.load %arg4[%c0_395, %c14_396, %c0_397] : memref<1x16x8xf32, #tpu.memory_space<vmem>>, vector<1x1x8xf32>
    %720 = vector.shape_cast %719 : vector<1x1x8xf32> to vector<1x8xf32>
    %c0_398 = arith.constant 0 : index
    %c163 = arith.constant 163 : index
    %c0_399 = arith.constant 0 : index
    %721 = vector.load %arg3[%c0_398, %c163, %c0_399] : memref<1x196x8xf32, #tpu.memory_space<vmem>>, vector<1x1x8xf32>
    %722 = vector.shape_cast %721 : vector<1x1x8xf32> to vector<1x8xf32>
    %723 = arith.mulf %722, %3 : vector<1x8xf32>
    %724 = arith.addf %720, %723 : vector<1x8xf32>
    %c0_400 = arith.constant 0 : index
    %c164 = arith.constant 164 : index
    %c0_401 = arith.constant 0 : index
    %725 = vector.load %arg3[%c0_400, %c164, %c0_401] : memref<1x196x8xf32, #tpu.memory_space<vmem>>, vector<1x1x8xf32>
    %726 = vector.shape_cast %725 : vector<1x1x8xf32> to vector<1x8xf32>
    %727 = arith.mulf %726, %4 : vector<1x8xf32>
    %728 = arith.addf %724, %727 : vector<1x8xf32>
    %c0_402 = arith.constant 0 : index
    %c165 = arith.constant 165 : index
    %c0_403 = arith.constant 0 : index
    %729 = vector.load %arg3[%c0_402, %c165, %c0_403] : memref<1x196x8xf32, #tpu.memory_space<vmem>>, vector<1x1x8xf32>
    %730 = vector.shape_cast %729 : vector<1x1x8xf32> to vector<1x8xf32>
    %731 = arith.mulf %730, %5 : vector<1x8xf32>
    %732 = arith.addf %728, %731 : vector<1x8xf32>
    %c0_404 = arith.constant 0 : index
    %c166 = arith.constant 166 : index
    %c0_405 = arith.constant 0 : index
    %733 = vector.load %arg3[%c0_404, %c166, %c0_405] : memref<1x196x8xf32, #tpu.memory_space<vmem>>, vector<1x1x8xf32>
    %734 = vector.shape_cast %733 : vector<1x1x8xf32> to vector<1x8xf32>
    %735 = arith.mulf %734, %6 : vector<1x8xf32>
    %736 = arith.addf %732, %735 : vector<1x8xf32>
    %c0_406 = arith.constant 0 : index
    %c167 = arith.constant 167 : index
    %c0_407 = arith.constant 0 : index
    %737 = vector.load %arg3[%c0_406, %c167, %c0_407] : memref<1x196x8xf32, #tpu.memory_space<vmem>>, vector<1x1x8xf32>
    %738 = vector.shape_cast %737 : vector<1x1x8xf32> to vector<1x8xf32>
    %739 = arith.mulf %738, %7 : vector<1x8xf32>
    %740 = arith.addf %736, %739 : vector<1x8xf32>
    %c0_408 = arith.constant 0 : index
    %c168 = arith.constant 168 : index
    %c0_409 = arith.constant 0 : index
    %741 = vector.load %arg3[%c0_408, %c168, %c0_409] : memref<1x196x8xf32, #tpu.memory_space<vmem>>, vector<1x1x8xf32>
    %742 = vector.shape_cast %741 : vector<1x1x8xf32> to vector<1x8xf32>
    %743 = arith.mulf %742, %8 : vector<1x8xf32>
    %744 = arith.addf %740, %743 : vector<1x8xf32>
    %c0_410 = arith.constant 0 : index
    %c169 = arith.constant 169 : index
    %c0_411 = arith.constant 0 : index
    %745 = vector.load %arg3[%c0_410, %c169, %c0_411] : memref<1x196x8xf32, #tpu.memory_space<vmem>>, vector<1x1x8xf32>
    %746 = vector.shape_cast %745 : vector<1x1x8xf32> to vector<1x8xf32>
    %747 = arith.mulf %746, %9 : vector<1x8xf32>
    %748 = arith.addf %744, %747 : vector<1x8xf32>
    %c0_412 = arith.constant 0 : index
    %c170 = arith.constant 170 : index
    %c0_413 = arith.constant 0 : index
    %749 = vector.load %arg3[%c0_412, %c170, %c0_413] : memref<1x196x8xf32, #tpu.memory_space<vmem>>, vector<1x1x8xf32>
    %750 = vector.shape_cast %749 : vector<1x1x8xf32> to vector<1x8xf32>
    %751 = arith.mulf %750, %10 : vector<1x8xf32>
    %752 = arith.addf %748, %751 : vector<1x8xf32>
    %c0_414 = arith.constant 0 : index
    %c171 = arith.constant 171 : index
    %c0_415 = arith.constant 0 : index
    %753 = vector.load %arg3[%c0_414, %c171, %c0_415] : memref<1x196x8xf32, #tpu.memory_space<vmem>>, vector<1x1x8xf32>
    %754 = vector.shape_cast %753 : vector<1x1x8xf32> to vector<1x8xf32>
    %755 = arith.mulf %754, %189 : vector<1x8xf32>
    %756 = arith.addf %752, %755 : vector<1x8xf32>
    %c0_416 = arith.constant 0 : index
    %c172 = arith.constant 172 : index
    %c0_417 = arith.constant 0 : index
    %757 = vector.load %arg3[%c0_416, %c172, %c0_417] : memref<1x196x8xf32, #tpu.memory_space<vmem>>, vector<1x1x8xf32>
    %758 = vector.shape_cast %757 : vector<1x1x8xf32> to vector<1x8xf32>
    %759 = arith.mulf %758, %192 : vector<1x8xf32>
    %760 = arith.addf %756, %759 : vector<1x8xf32>
    %c0_418 = arith.constant 0 : index
    %c173 = arith.constant 173 : index
    %c0_419 = arith.constant 0 : index
    %761 = vector.load %arg3[%c0_418, %c173, %c0_419] : memref<1x196x8xf32, #tpu.memory_space<vmem>>, vector<1x1x8xf32>
    %762 = vector.shape_cast %761 : vector<1x1x8xf32> to vector<1x8xf32>
    %763 = arith.mulf %762, %197 : vector<1x8xf32>
    %764 = arith.addf %760, %763 : vector<1x8xf32>
    %c0_420 = arith.constant 0 : index
    %c174 = arith.constant 174 : index
    %c0_421 = arith.constant 0 : index
    %765 = vector.load %arg3[%c0_420, %c174, %c0_421] : memref<1x196x8xf32, #tpu.memory_space<vmem>>, vector<1x1x8xf32>
    %766 = vector.shape_cast %765 : vector<1x1x8xf32> to vector<1x8xf32>
    %767 = arith.mulf %766, %180 : vector<1x8xf32>
    %768 = arith.addf %764, %767 : vector<1x8xf32>
    %c0_422 = arith.constant 0 : index
    %c175 = arith.constant 175 : index
    %c0_423 = arith.constant 0 : index
    %769 = vector.load %arg3[%c0_422, %c175, %c0_423] : memref<1x196x8xf32, #tpu.memory_space<vmem>>, vector<1x1x8xf32>
    %770 = vector.shape_cast %769 : vector<1x1x8xf32> to vector<1x8xf32>
    %771 = arith.mulf %770, %398 : vector<1x8xf32>
    %772 = arith.addf %768, %771 : vector<1x8xf32>
    %c0_424 = arith.constant 0 : index
    %c176 = arith.constant 176 : index
    %c0_425 = arith.constant 0 : index
    %773 = vector.load %arg3[%c0_424, %c176, %c0_425] : memref<1x196x8xf32, #tpu.memory_space<vmem>>, vector<1x1x8xf32>
    %774 = vector.shape_cast %773 : vector<1x1x8xf32> to vector<1x8xf32>
    %775 = arith.mulf %774, %399 : vector<1x8xf32>
    %776 = arith.addf %772, %775 : vector<1x8xf32>
    %c0_426 = arith.constant 0 : index
    %c177 = arith.constant 177 : index
    %c0_427 = arith.constant 0 : index
    %777 = vector.load %arg3[%c0_426, %c177, %c0_427] : memref<1x196x8xf32, #tpu.memory_space<vmem>>, vector<1x1x8xf32>
    %778 = vector.shape_cast %777 : vector<1x1x8xf32> to vector<1x8xf32>
    %779 = arith.mulf %778, %408 : vector<1x8xf32>
    %780 = arith.addf %776, %779 : vector<1x8xf32>
    %cst_428 = arith.constant -1.000000e+02 : f32
    %cst_429 = arith.constant 1.000000e+02 : f32
    %781 = vector.broadcast %cst_428 : f32 to vector<1x8xf32>
    %782 = arith.maximumf %781, %470 : vector<1x8xf32>
    %783 = vector.broadcast %cst_429 : f32 to vector<1x8xf32>
    %784 = arith.minimumf %783, %782 : vector<1x8xf32>
    %cst_430 = arith.constant -1.000000e+02 : f32
    %cst_431 = arith.constant 1.000000e+02 : f32
    %785 = vector.broadcast %cst_430 : f32 to vector<1x8xf32>
    %786 = arith.maximumf %785, %532 : vector<1x8xf32>
    %787 = vector.broadcast %cst_431 : f32 to vector<1x8xf32>
    %788 = arith.minimumf %787, %786 : vector<1x8xf32>
    %789 = arith.mulf %784, %788 : vector<1x8xf32>
    %790 = arith.negf %656 : vector<1x8xf32>
    %791 = math.exp %790 : vector<1x8xf32>
    %cst_432 = arith.constant 1.000000e+00 : f32
    %792 = vector.broadcast %cst_432 : f32 to vector<1x8xf32>
    %793 = arith.addf %792, %791 : vector<1x8xf32>
    %794 = arith.divf %792, %793 : vector<1x8xf32>
    %795 = arith.mulf %794, %718 : vector<1x8xf32>
    %cst_433 = arith.constant 1.000000e+00 : f32
    %796 = vector.broadcast %cst_433 : f32 to vector<1x8xf32>
    %797 = arith.subf %796, %794 : vector<1x8xf32>
    %798 = arith.mulf %797, %780 : vector<1x8xf32>
    %799 = arith.addf %795, %798 : vector<1x8xf32>
    %c0_434 = arith.constant 0 : index
    %c15_435 = arith.constant 15 : index
    %c0_436 = arith.constant 0 : index
    %800 = vector.load %arg4[%c0_434, %c15_435, %c0_436] : memref<1x16x8xf32, #tpu.memory_space<vmem>>, vector<1x1x8xf32>
    %801 = vector.shape_cast %800 : vector<1x1x8xf32> to vector<1x8xf32>
    %c0_437 = arith.constant 0 : index
    %c178 = arith.constant 178 : index
    %c0_438 = arith.constant 0 : index
    %802 = vector.load %arg3[%c0_437, %c178, %c0_438] : memref<1x196x8xf32, #tpu.memory_space<vmem>>, vector<1x1x8xf32>
    %803 = vector.shape_cast %802 : vector<1x1x8xf32> to vector<1x8xf32>
    %804 = arith.mulf %803, %3 : vector<1x8xf32>
    %805 = arith.addf %801, %804 : vector<1x8xf32>
    %c0_439 = arith.constant 0 : index
    %c179 = arith.constant 179 : index
    %c0_440 = arith.constant 0 : index
    %806 = vector.load %arg3[%c0_439, %c179, %c0_440] : memref<1x196x8xf32, #tpu.memory_space<vmem>>, vector<1x1x8xf32>
    %807 = vector.shape_cast %806 : vector<1x1x8xf32> to vector<1x8xf32>
    %808 = arith.mulf %807, %4 : vector<1x8xf32>
    %809 = arith.addf %805, %808 : vector<1x8xf32>
    %c0_441 = arith.constant 0 : index
    %c180 = arith.constant 180 : index
    %c0_442 = arith.constant 0 : index
    %810 = vector.load %arg3[%c0_441, %c180, %c0_442] : memref<1x196x8xf32, #tpu.memory_space<vmem>>, vector<1x1x8xf32>
    %811 = vector.shape_cast %810 : vector<1x1x8xf32> to vector<1x8xf32>
    %812 = arith.mulf %811, %5 : vector<1x8xf32>
    %813 = arith.addf %809, %812 : vector<1x8xf32>
    %c0_443 = arith.constant 0 : index
    %c181 = arith.constant 181 : index
    %c0_444 = arith.constant 0 : index
    %814 = vector.load %arg3[%c0_443, %c181, %c0_444] : memref<1x196x8xf32, #tpu.memory_space<vmem>>, vector<1x1x8xf32>
    %815 = vector.shape_cast %814 : vector<1x1x8xf32> to vector<1x8xf32>
    %816 = arith.mulf %815, %6 : vector<1x8xf32>
    %817 = arith.addf %813, %816 : vector<1x8xf32>
    %c0_445 = arith.constant 0 : index
    %c182 = arith.constant 182 : index
    %c0_446 = arith.constant 0 : index
    %818 = vector.load %arg3[%c0_445, %c182, %c0_446] : memref<1x196x8xf32, #tpu.memory_space<vmem>>, vector<1x1x8xf32>
    %819 = vector.shape_cast %818 : vector<1x1x8xf32> to vector<1x8xf32>
    %820 = arith.mulf %819, %7 : vector<1x8xf32>
    %821 = arith.addf %817, %820 : vector<1x8xf32>
    %c0_447 = arith.constant 0 : index
    %c183 = arith.constant 183 : index
    %c0_448 = arith.constant 0 : index
    %822 = vector.load %arg3[%c0_447, %c183, %c0_448] : memref<1x196x8xf32, #tpu.memory_space<vmem>>, vector<1x1x8xf32>
    %823 = vector.shape_cast %822 : vector<1x1x8xf32> to vector<1x8xf32>
    %824 = arith.mulf %823, %8 : vector<1x8xf32>
    %825 = arith.addf %821, %824 : vector<1x8xf32>
    %c0_449 = arith.constant 0 : index
    %c184 = arith.constant 184 : index
    %c0_450 = arith.constant 0 : index
    %826 = vector.load %arg3[%c0_449, %c184, %c0_450] : memref<1x196x8xf32, #tpu.memory_space<vmem>>, vector<1x1x8xf32>
    %827 = vector.shape_cast %826 : vector<1x1x8xf32> to vector<1x8xf32>
    %828 = arith.mulf %827, %9 : vector<1x8xf32>
    %829 = arith.addf %825, %828 : vector<1x8xf32>
    %c0_451 = arith.constant 0 : index
    %c185 = arith.constant 185 : index
    %c0_452 = arith.constant 0 : index
    %830 = vector.load %arg3[%c0_451, %c185, %c0_452] : memref<1x196x8xf32, #tpu.memory_space<vmem>>, vector<1x1x8xf32>
    %831 = vector.shape_cast %830 : vector<1x1x8xf32> to vector<1x8xf32>
    %832 = arith.mulf %831, %10 : vector<1x8xf32>
    %833 = arith.addf %829, %832 : vector<1x8xf32>
    %c0_453 = arith.constant 0 : index
    %c186 = arith.constant 186 : index
    %c0_454 = arith.constant 0 : index
    %834 = vector.load %arg3[%c0_453, %c186, %c0_454] : memref<1x196x8xf32, #tpu.memory_space<vmem>>, vector<1x1x8xf32>
    %835 = vector.shape_cast %834 : vector<1x1x8xf32> to vector<1x8xf32>
    %836 = arith.mulf %835, %189 : vector<1x8xf32>
    %837 = arith.addf %833, %836 : vector<1x8xf32>
    %c0_455 = arith.constant 0 : index
    %c187 = arith.constant 187 : index
    %c0_456 = arith.constant 0 : index
    %838 = vector.load %arg3[%c0_455, %c187, %c0_456] : memref<1x196x8xf32, #tpu.memory_space<vmem>>, vector<1x1x8xf32>
    %839 = vector.shape_cast %838 : vector<1x1x8xf32> to vector<1x8xf32>
    %840 = arith.mulf %839, %192 : vector<1x8xf32>
    %841 = arith.addf %837, %840 : vector<1x8xf32>
    %c0_457 = arith.constant 0 : index
    %c188 = arith.constant 188 : index
    %c0_458 = arith.constant 0 : index
    %842 = vector.load %arg3[%c0_457, %c188, %c0_458] : memref<1x196x8xf32, #tpu.memory_space<vmem>>, vector<1x1x8xf32>
    %843 = vector.shape_cast %842 : vector<1x1x8xf32> to vector<1x8xf32>
    %844 = arith.mulf %843, %197 : vector<1x8xf32>
    %845 = arith.addf %841, %844 : vector<1x8xf32>
    %c0_459 = arith.constant 0 : index
    %c189 = arith.constant 189 : index
    %c0_460 = arith.constant 0 : index
    %846 = vector.load %arg3[%c0_459, %c189, %c0_460] : memref<1x196x8xf32, #tpu.memory_space<vmem>>, vector<1x1x8xf32>
    %847 = vector.shape_cast %846 : vector<1x1x8xf32> to vector<1x8xf32>
    %848 = arith.mulf %847, %180 : vector<1x8xf32>
    %849 = arith.addf %845, %848 : vector<1x8xf32>
    %c0_461 = arith.constant 0 : index
    %c190 = arith.constant 190 : index
    %c0_462 = arith.constant 0 : index
    %850 = vector.load %arg3[%c0_461, %c190, %c0_462] : memref<1x196x8xf32, #tpu.memory_space<vmem>>, vector<1x1x8xf32>
    %851 = vector.shape_cast %850 : vector<1x1x8xf32> to vector<1x8xf32>
    %852 = arith.mulf %851, %398 : vector<1x8xf32>
    %853 = arith.addf %849, %852 : vector<1x8xf32>
    %c0_463 = arith.constant 0 : index
    %c191 = arith.constant 191 : index
    %c0_464 = arith.constant 0 : index
    %854 = vector.load %arg3[%c0_463, %c191, %c0_464] : memref<1x196x8xf32, #tpu.memory_space<vmem>>, vector<1x1x8xf32>
    %855 = vector.shape_cast %854 : vector<1x1x8xf32> to vector<1x8xf32>
    %856 = arith.mulf %855, %399 : vector<1x8xf32>
    %857 = arith.addf %853, %856 : vector<1x8xf32>
    %c0_465 = arith.constant 0 : index
    %c192 = arith.constant 192 : index
    %c0_466 = arith.constant 0 : index
    %858 = vector.load %arg3[%c0_465, %c192, %c0_466] : memref<1x196x8xf32, #tpu.memory_space<vmem>>, vector<1x1x8xf32>
    %859 = vector.shape_cast %858 : vector<1x1x8xf32> to vector<1x8xf32>
    %860 = arith.mulf %859, %408 : vector<1x8xf32>
    %861 = arith.addf %857, %860 : vector<1x8xf32>
    %c0_467 = arith.constant 0 : index
    %c193 = arith.constant 193 : index
    %c0_468 = arith.constant 0 : index
    %862 = vector.load %arg3[%c0_467, %c193, %c0_468] : memref<1x196x8xf32, #tpu.memory_space<vmem>>, vector<1x1x8xf32>
    %863 = vector.shape_cast %862 : vector<1x1x8xf32> to vector<1x8xf32>
    %864 = arith.mulf %863, %789 : vector<1x8xf32>
    %865 = arith.addf %861, %864 : vector<1x8xf32>
    %c0_469 = arith.constant 0 : index
    %c194 = arith.constant 194 : index
    %c0_470 = arith.constant 0 : index
    %866 = vector.load %arg3[%c0_469, %c194, %c0_470] : memref<1x196x8xf32, #tpu.memory_space<vmem>>, vector<1x1x8xf32>
    %867 = vector.shape_cast %866 : vector<1x1x8xf32> to vector<1x8xf32>
    %868 = arith.mulf %867, %594 : vector<1x8xf32>
    %869 = arith.addf %865, %868 : vector<1x8xf32>
    %c0_471 = arith.constant 0 : index
    %c195 = arith.constant 195 : index
    %c0_472 = arith.constant 0 : index
    %870 = vector.load %arg3[%c0_471, %c195, %c0_472] : memref<1x196x8xf32, #tpu.memory_space<vmem>>, vector<1x1x8xf32>
    %871 = vector.shape_cast %870 : vector<1x1x8xf32> to vector<1x8xf32>
    %872 = arith.mulf %871, %799 : vector<1x8xf32>
    %873 = arith.addf %869, %872 : vector<1x8xf32>
    %cst_473 = arith.constant -1.000000e+10 : f32
    %cst_474 = arith.constant 1.000000e+10 : f32
    %874 = vector.broadcast %cst_473 : f32 to vector<1x8xf32>
    %875 = arith.maximumf %874, %873 : vector<1x8xf32>
    %876 = vector.broadcast %cst_474 : f32 to vector<1x8xf32>
    %877 = arith.minimumf %876, %875 : vector<1x8xf32>
    %878 = math.tanh %877 : vector<1x8xf32>
    %879 = tpu.concatenate %877, %878 in 0 : vector<1x8xf32>, vector<1x8xf32> -> vector<2x8xf32>
    %c0_475 = arith.constant 0 : index
    %c0_476 = arith.constant 0 : index
    %c0_477 = arith.constant 0 : index
    %880 = vector.load %arg13[%c0_475, %c0_476, %c0_477] : memref<1x2x8xf32, #tpu.memory_space<vmem>>, vector<1x2x8xf32>
    %881 = vector.shape_cast %880 : vector<1x2x8xf32> to vector<2x8xf32>
    %882 = vector.shape_cast %879 : vector<2x8xf32> to vector<1x2x8xf32>
    tpu.vector_store %arg13[%c0_475, %c0_476, %c0_477], %882 {strides = array<i32>} : memref<1x2x8xf32, #tpu.memory_space<vmem>>, vector<1x2x8xf32>,
    return
  }
  func.func @transform_0(%arg0: i32, %arg1: i32) -> (i32, i32) {
    %c0_i32 = arith.constant 0 : i32
    %c0_i32_0 = arith.constant 0 : i32
    return %c0_i32, %arg0 : i32, i32
  }
  func.func @transform_1(%arg0: i32, %arg1: i32) -> (i32, i32, i32) {
    %c0_i32 = arith.constant 0 : i32
    %c0_i32_0 = arith.constant 0 : i32
    return %arg1, %c0_i32, %arg0 : i32, i32, i32
  }
  func.func @transform_2(%arg0: i32, %arg1: i32) -> (i32, i32, i32) {
    %c0_i32 = arith.constant 0 : i32
    %c0_i32_0 = arith.constant 0 : i32
    return %arg1, %c0_i32, %arg0 : i32, i32, i32
  }
  func.func @transform_3(%arg0: i32, %arg1: i32) -> (i32, i32) {
    %c0_i32 = arith.constant 0 : i32
    %c0_i32_0 = arith.constant 0 : i32
    %c0_i32_1 = arith.constant 0 : i32
    return %c0_i32, %c0_i32_0 : i32, i32
  }
  func.func @transform_4(%arg0: i32, %arg1: i32) -> (i32, i32) {
    %c0_i32 = arith.constant 0 : i32
    %c0_i32_0 = arith.constant 0 : i32
    %c0_i32_1 = arith.constant 0 : i32
    return %c0_i32, %c0_i32_0 : i32, i32
  }
  func.func @transform_5(%arg0: i32, %arg1: i32) -> (i32, i32) {
    %c0_i32 = arith.constant 0 : i32
    %c0_i32_0 = arith.constant 0 : i32
    %c0_i32_1 = arith.constant 0 : i32
    return %c0_i32, %c0_i32_0 : i32, i32
  }
  func.func @transform_6(%arg0: i32, %arg1: i32) -> (i32, i32) {
    %c0_i32 = arith.constant 0 : i32
    %c0_i32_0 = arith.constant 0 : i32
    %c0_i32_1 = arith.constant 0 : i32
    return %c0_i32, %c0_i32_0 : i32, i32
  }
  func.func @transform_7(%arg0: i32, %arg1: i32) -> (i32, i32) {
    %c0_i32 = arith.constant 0 : i32
    %c0_i32_0 = arith.constant 0 : i32
    %c0_i32_1 = arith.constant 0 : i32
    return %c0_i32, %c0_i32_0 : i32, i32
  }
  func.func @transform_8(%arg0: i32, %arg1: i32) -> (i32, i32) {
    %c0_i32 = arith.constant 0 : i32
    %c0_i32_0 = arith.constant 0 : i32
    %c0_i32_1 = arith.constant 0 : i32
    return %c0_i32, %c0_i32_0 : i32, i32
  }
  func.func @transform_9(%arg0: i32, %arg1: i32) -> (i32, i32) {
    %c0_i32 = arith.constant 0 : i32
    %c0_i32_0 = arith.constant 0 : i32
    %c0_i32_1 = arith.constant 0 : i32
    return %c0_i32, %c0_i32_0 : i32, i32
  }
  func.func @transform_10(%arg0: i32, %arg1: i32) -> (i32, i32) {
    %c0_i32 = arith.constant 0 : i32
    %c0_i32_0 = arith.constant 0 : i32
    %c0_i32_1 = arith.constant 0 : i32
    return %c0_i32, %c0_i32_0 : i32, i32
  }
  func.func @transform_11(%arg0: i32, %arg1: i32) -> (i32, i32, i32) {
    %c0_i32 = arith.constant 0 : i32
    %c0_i32_0 = arith.constant 0 : i32
    return %arg1, %c0_i32, %arg0 : i32, i32, i32
  }
  func.func @transform_12(%arg0: i32, %arg1: i32) -> (i32, i32) {
    %c0_i32 = arith.constant 0 : i32
    %c0_i32_0 = arith.constant 0 : i32
    return %c0_i32, %arg0 : i32, i32
  }
}

</mosaic_0001>

<llo_original>
// kernel: tpu_custom_call.1
$region0: #{tpu_custom_call.1}
  #allocation0 [shape = 'u32[]', space=smem, size = 0x4, offset = 0x4, fixed_abs, tag = 'smem constant byte address 0x4 - core index']
  #allocation1 [shape = 'u32[72,128]{1,0:T(1,128)}', space=vmem, size = 0x9000, scoped, tag = 'internal scratch']
  %s0 = inlined_call_operand.vmem [shape: f32[12,8], index: 0, kind: input, shape index: {}]
  %s1 = inlined_call_operand.vmem [shape: f32[3,196,8], index: 1, kind: input, shape index: {}]
  %s2 = inlined_call_operand.vmem [shape: f32[3,16,8], index: 2, kind: input, shape index: {}]
  %s3 = inlined_call_operand.vmem [shape: f32[32,12], index: 3, kind: input, shape index: {}]
  %s4 = inlined_call_operand.vmem [shape: f32[32,1], index: 4, kind: input, shape index: {}]
  %s5 = inlined_call_operand.vmem [shape: f32[32,32], index: 5, kind: input, shape index: {}]
  %s6 = inlined_call_operand.vmem [shape: f32[32,1], index: 6, kind: input, shape index: {}]
  %s7 = inlined_call_operand.vmem [shape: f32[32,32], index: 7, kind: input, shape index: {}]
  %s8 = inlined_call_operand.vmem [shape: f32[32,1], index: 8, kind: input, shape index: {}]
  %s9 = inlined_call_operand.vmem [shape: f32[3,32], index: 9, kind: input, shape index: {}]
  %s10 = inlined_call_operand.vmem [shape: f32[3,1], index: 10, kind: input, shape index: {}]
  %s11 = inlined_call_operand.hbm [shape: f32[3,2,8], index: 11, kind: output, shape index: {0}]
  %s12 = inlined_call_operand.hbm [shape: f32[6,8], index: 12, kind: output, shape index: {1}]
  %13 = xla_tuple %s11, %s12
  %s14 = sld [smem:[#allocation0]]
  $region89: #{tpu_custom_call.1} parent=0
    _
  %s16 = ssub.s32 1, %s14
  %s17 = scalar_select 0, %s16, %s14
  $region1: #{tpu_custom_call.1} parent=0
    #allocation2 [shape = 'u8[2048]{0}', space=vmem, size = 0x800, scoped, tag = 'output window, operand 0']
    #allocation3 [shape = 's32[2]{0}', space=sflag, size = 0x8, scoped, tag = 'scoped memory for tpu_custom_call.1']
    #allocation4 [shape = 'u8[4096]{0}', space=vmem, size = 0x1000, scoped, tag = 'output window, operand 1, single buffered']
    #allocation5 [shape = 's32[1]{0}', space=sflag, size = 0x4, scoped, tag = 'scoped memory for tpu_custom_call.1']
    %18 = vsyncpa [#allocation3], 0
    %s19 = scalar_lea.sflag [#allocation3], 1
    %20 = vsyncpa %s19, 0
    %21 = vsyncpa [#allocation5], 0
    loop: start=0, step=1, limit=5
    $region2: #{tpu_custom_call.1} parent=1 // loop_pre_header
      _
    $region3: #{tpu_custom_call.1} parent=1 // loop_header
      %s23 = sphi 0, %s27
      %p24 = scmp.ge.s32.totalorder %s23, 5
      %s30 = sphi 0, %s42
      %s31 = sphi 0, %s38
      %s32 = sphi 0, %s30
      %s33 = sphi 0, %s31
      %s34 = sphi 0, %s32
      %s35 = sphi 0, %s33
      %s45 = sphi 0, %s47
      %s48 = sphi 0, %s45
      %s49 = sphi 0, %s48
      %s65 = sphi 0, %s49
      %s73 = sphi 0, %s75
      %s76 = sphi 0, %s73
      %s77 = sphi 0, %s76
      %s93 = sphi 0, %s77
      %s101 = sphi 0, %s103
      %s104 = sphi 0, %s101
      %s105 = sphi 0, %s104
      %s121 = sphi 0, %s105
      %s125 = sphi 0, %s125
      %s127 = sphi 0, %s125
      %s128 = sphi 0, %s127
      %s142 = sphi 0, %s128
      %s146 = sphi 0, %s146
      %s148 = sphi 0, %s146
      %s149 = sphi 0, %s148
      %s163 = sphi 0, %s149
      %s167 = sphi 0, %s167
      %s169 = sphi 0, %s167
      %s170 = sphi 0, %s169
      %s184 = sphi 0, %s170
      %s188 = sphi 0, %s188
      %s190 = sphi 0, %s188
      %s191 = sphi 0, %s190
      %s205 = sphi 0, %s191
      %s209 = sphi 0, %s209
      %s211 = sphi 0, %s209
      %s212 = sphi 0, %s211
      %s226 = sphi 0, %s212
      %s230 = sphi 0, %s230
      %s232 = sphi 0, %s230
      %s233 = sphi 0, %s232
      %s247 = sphi 0, %s233
      %s251 = sphi 0, %s251
      %s253 = sphi 0, %s251
      %s254 = sphi 0, %s253
      %s268 = sphi 0, %s254
      %s272 = sphi 0, %s272
      %s274 = sphi 0, %s272
      %s275 = sphi 0, %s274
      %s289 = sphi 0, %s275
      %s297 = sphi 0, %s299
      %s300 = sphi 0, %s297
      %s301 = sphi 0, %s300
      %s317 = sphi 0, %s301
      %s323 = sphi 0, %s325
      %s326 = sphi 0, %s323
      %s327 = sphi 0, %s326
      %s343 = sphi 0, %s327
    $region4: #{tpu_custom_call.1} parent=1 // loop_header_branch
      %26 = sbr.rel (%p24) target = $region8
    $region5: #{tpu_custom_call.1} parent=1 // loop_body
      %s28 = ssub.s32 %s23, 1
      %s29 = ssub.s32 %s23, 2
      %s36 = sadd.s32 1, %s31
      %p37 = scmp.ge.s32.totalorder %s36, 3
      %s38 = scalar_select %p37, 0, %s36
      %s39 = sadd.s32 1, %s30
      %s40 = scalar_select %p37, %s39, %s30
      %p41 = scmp.ge.s32.totalorder %s40, 1
      %s42 = scalar_select %p41, 0, %s40
      %s43 = ssub.s32 %s30, %s42
      %p44 = scmp.eq.s32.totalorder %s43, 0
      %s46 = sadd.s32 %s45, 1
      %s47 = scalar_select %p44, %s45, %s46
      %p50 = pneg %p44
      %p51 = scmp.eq.s32.totalorder %s23, 2
      %p52 = por %p50, %p51
      %p53 = scmp.ne.s32.totalorder %s45, %s48
      %p54 = scmp.eq.s32.totalorder %s23, 0
      %p55 = por %p53, %p54
      %p56 = scmp.ne.s32.totalorder %s45, %s48
      %p57 = scmp.eq.s32.totalorder %s28, 2
      %p58 = por %p56, %p57
      %p59 = scmp.ne.s32.totalorder %s48, %s49
      %p60 = scmp.eq.s32.totalorder %s28, 0
      %p61 = por %p59, %p60
      %p62 = scmp.ne.s32.totalorder %s48, %s49
      %p63 = scmp.eq.s32.totalorder %s29, 2
      %p64 = por %p62, %p63
      %p66 = scmp.ne.s32.totalorder %s49, %s65
      %p67 = scmp.eq.s32.totalorder %s29, 0
      %p68 = por %p66, %p67
      %s69 = ssub.s32 %s31, %s38
      %s70 = ssub.s32 %s30, %s42
      %s71 = sor.u32 %s69, %s70
      %p72 = scmp.eq.s32.totalorder %s71, 0
      %s74 = sadd.s32 %s73, 1
      %s75 = scalar_select %p72, %s73, %s74
      %p78 = pneg %p72
      %p79 = scmp.eq.s32.totalorder %s23, 2
      %p80 = por %p78, %p79
      %p81 = scmp.ne.s32.totalorder %s73, %s76
      %p82 = scmp.eq.s32.totalorder %s23, 0
      %p83 = por %p81, %p82
      %p84 = scmp.ne.s32.totalorder %s73, %s76
      %p85 = scmp.eq.s32.totalorder %s28, 2
      %p86 = por %p84, %p85
      %p87 = scmp.ne.s32.totalorder %s76, %s77
      %p88 = scmp.eq.s32.totalorder %s28, 0
      %p89 = por %p87, %p88
      %p90 = scmp.ne.s32.totalorder %s76, %s77
      %p91 = scmp.eq.s32.totalorder %s29, 2
      %p92 = por %p90, %p91
      %p94 = scmp.ne.s32.totalorder %s77, %s93
      %p95 = scmp.eq.s32.totalorder %s29, 0
      %p96 = por %p94, %p95
      %s97 = ssub.s32 %s31, %s38
      %s98 = ssub.s32 %s30, %s42
      %s99 = sor.u32 %s97, %s98
      %p100 = scmp.eq.s32.totalorder %s99, 0
      %s102 = sadd.s32 %s101, 1
      %s103 = scalar_select %p100, %s101, %s102
      %p106 = pneg %p100
      %p107 = scmp.eq.s32.totalorder %s23, 2
      %p108 = por %p106, %p107
      %p109 = scmp.ne.s32.totalorder %s101, %s104
      %p110 = scmp.eq.s32.totalorder %s23, 0
      %p111 = por %p109, %p110
      %p112 = scmp.ne.s32.totalorder %s101, %s104
      %p113 = scmp.eq.s32.totalorder %s28, 2
      %p114 = por %p112, %p113
      %p115 = scmp.ne.s32.totalorder %s104, %s105
      %p116 = scmp.eq.s32.totalorder %s28, 0
      %p117 = por %p115, %p116
      %p118 = scmp.ne.s32.totalorder %s104, %s105
      %p119 = scmp.eq.s32.totalorder %s29, 2
      %p120 = por %p118, %p119
      %p122 = scmp.ne.s32.totalorder %s105, %s121
      %p123 = scmp.eq.s32.totalorder %s29, 0
      %p124 = por %p122, %p123
      %s126 = sadd.s32 %s125, 1
      %p129 = scmp.eq.s32.totalorder %s23, 2
      %p130 = scmp.ne.s32.totalorder %s125, %s127
      %p131 = scmp.eq.s32.totalorder %s23, 0
      %p132 = por %p130, %p131
      %p133 = scmp.ne.s32.totalorder %s125, %s127
      %p134 = scmp.eq.s32.totalorder %s28, 2
      %p135 = por %p133, %p134
      %p136 = scmp.ne.s32.totalorder %s127, %s128
      %p137 = scmp.eq.s32.totalorder %s28, 0
      %p138 = por %p136, %p137
      %p139 = scmp.ne.s32.totalorder %s127, %s128
      %p140 = scmp.eq.s32.totalorder %s29, 2
      %p141 = por %p139, %p140
      %p143 = scmp.ne.s32.totalorder %s128, %s142
      %p144 = scmp.eq.s32.totalorder %s29, 0
      %p145 = por %p143, %p144
      %s147 = sadd.s32 %s146, 1
      %p150 = scmp.eq.s32.totalorder %s23, 2
      %p151 = scmp.ne.s32.totalorder %s146, %s148
      %p152 = scmp.eq.s32.totalorder %s23, 0
      %p153 = por %p151, %p152
      %p154 = scmp.ne.s32.totalorder %s146, %s148
      %p155 = scmp.eq.s32.totalorder %s28, 2
      %p156 = por %p154, %p155
      %p157 = scmp.ne.s32.totalorder %s148, %s149
      %p158 = scmp.eq.s32.totalorder %s28, 0
      %p159 = por %p157, %p158
      %p160 = scmp.ne.s32.totalorder %s148, %s149
      %p161 = scmp.eq.s32.totalorder %s29, 2
      %p162 = por %p160, %p161
      %p164 = scmp.ne.s32.totalorder %s149, %s163
      %p165 = scmp.eq.s32.totalorder %s29, 0
      %p166 = por %p164, %p165
      %s168 = sadd.s32 %s167, 1
      %p171 = scmp.eq.s32.totalorder %s23, 2
      %p172 = scmp.ne.s32.totalorder %s167, %s169
      %p173 = scmp.eq.s32.totalorder %s23, 0
      %p174 = por %p172, %p173
      %p175 = scmp.ne.s32.totalorder %s167, %s169
      %p176 = scmp.eq.s32.totalorder %s28, 2
      %p177 = por %p175, %p176
      %p178 = scmp.ne.s32.totalorder %s169, %s170
      %p179 = scmp.eq.s32.totalorder %s28, 0
      %p180 = por %p178, %p179
      %p181 = scmp.ne.s32.totalorder %s169, %s170
      %p182 = scmp.eq.s32.totalorder %s29, 2
      %p183 = por %p181, %p182
      %p185 = scmp.ne.s32.totalorder %s170, %s184
      %p186 = scmp.eq.s32.totalorder %s29, 0
      %p187 = por %p185, %p186
      %s189 = sadd.s32 %s188, 1
      %p192 = scmp.eq.s32.totalorder %s23, 2
      %p193 = scmp.ne.s32.totalorder %s188, %s190
      %p194 = scmp.eq.s32.totalorder %s23, 0
      %p195 = por %p193, %p194
      %p196 = scmp.ne.s32.totalorder %s188, %s190
      %p197 = scmp.eq.s32.totalorder %s28, 2
      %p198 = por %p196, %p197
      %p199 = scmp.ne.s32.totalorder %s190, %s191
      %p200 = scmp.eq.s32.totalorder %s28, 0
      %p201 = por %p199, %p200
      %p202 = scmp.ne.s32.totalorder %s190, %s191
      %p203 = scmp.eq.s32.totalorder %s29, 2
      %p204 = por %p202, %p203
      %p206 = scmp.ne.s32.totalorder %s191, %s205
      %p207 = scmp.eq.s32.totalorder %s29, 0
      %p208 = por %p206, %p207
      %s210 = sadd.s32 %s209, 1
      %p213 = scmp.eq.s32.totalorder %s23, 2
      %p214 = scmp.ne.s32.totalorder %s209, %s211
      %p215 = scmp.eq.s32.totalorder %s23, 0
      %p216 = por %p214, %p215
      %p217 = scmp.ne.s32.totalorder %s209, %s211
      %p218 = scmp.eq.s32.totalorder %s28, 2
      %p219 = por %p217, %p218
      %p220 = scmp.ne.s32.totalorder %s211, %s212
      %p221 = scmp.eq.s32.totalorder %s28, 0
      %p222 = por %p220, %p221
      %p223 = scmp.ne.s32.totalorder %s211, %s212
      %p224 = scmp.eq.s32.totalorder %s29, 2
      %p225 = por %p223, %p224
      %p227 = scmp.ne.s32.totalorder %s212, %s226
      %p228 = scmp.eq.s32.totalorder %s29, 0
      %p229 = por %p227, %p228
      %s231 = sadd.s32 %s230, 1
      %p234 = scmp.eq.s32.totalorder %s23, 2
      %p235 = scmp.ne.s32.totalorder %s230, %s232
      %p236 = scmp.eq.s32.totalorder %s23, 0
      %p237 = por %p235, %p236
      %p238 = scmp.ne.s32.totalorder %s230, %s232
      %p239 = scmp.eq.s32.totalorder %s28, 2
      %p240 = por %p238, %p239
      %p241 = scmp.ne.s32.totalorder %s232, %s233
      %p242 = scmp.eq.s32.totalorder %s28, 0
      %p243 = por %p241, %p242
      %p244 = scmp.ne.s32.totalorder %s232, %s233
      %p245 = scmp.eq.s32.totalorder %s29, 2
      %p246 = por %p244, %p245
      %p248 = scmp.ne.s32.totalorder %s233, %s247
      %p249 = scmp.eq.s32.totalorder %s29, 0
      %p250 = por %p248, %p249
      %s252 = sadd.s32 %s251, 1
      %p255 = scmp.eq.s32.totalorder %s23, 2
      %p256 = scmp.ne.s32.totalorder %s251, %s253
      %p257 = scmp.eq.s32.totalorder %s23, 0
      %p258 = por %p256, %p257
      %p259 = scmp.ne.s32.totalorder %s251, %s253
      %p260 = scmp.eq.s32.totalorder %s28, 2
      %p261 = por %p259, %p260
      %p262 = scmp.ne.s32.totalorder %s253, %s254
      %p263 = scmp.eq.s32.totalorder %s28, 0
      %p264 = por %p262, %p263
      %p265 = scmp.ne.s32.totalorder %s253, %s254
      %p266 = scmp.eq.s32.totalorder %s29, 2
      %p267 = por %p265, %p266
      %p269 = scmp.ne.s32.totalorder %s254, %s268
      %p270 = scmp.eq.s32.totalorder %s29, 0
      %p271 = por %p269, %p270
      %s273 = sadd.s32 %s272, 1
      %p276 = scmp.eq.s32.totalorder %s23, 2
      %p277 = scmp.ne.s32.totalorder %s272, %s274
      %p278 = scmp.eq.s32.totalorder %s23, 0
      %p279 = por %p277, %p278
      %p280 = scmp.ne.s32.totalorder %s272, %s274
      %p281 = scmp.eq.s32.totalorder %s28, 2
      %p282 = por %p280, %p281
      %p283 = scmp.ne.s32.totalorder %s274, %s275
      %p284 = scmp.eq.s32.totalorder %s28, 0
      %p285 = por %p283, %p284
      %p286 = scmp.ne.s32.totalorder %s274, %s275
      %p287 = scmp.eq.s32.totalorder %s29, 2
      %p288 = por %p286, %p287
      %p290 = scmp.ne.s32.totalorder %s275, %s289
      %p291 = scmp.eq.s32.totalorder %s29, 0
      %p292 = por %p290, %p291
      %s293 = ssub.s32 %s31, %s38
      %s294 = ssub.s32 %s30, %s42
      %s295 = sor.u32 %s293, %s294
      %p296 = scmp.eq.s32.totalorder %s295, 0
      %s298 = sadd.s32 %s297, 1
      %s299 = scalar_select %p296, %s297, %s298
      %p302 = pneg %p296
      %p303 = scmp.eq.s32.totalorder %s23, 2
      %p304 = por %p302, %p303
      %p305 = scmp.ne.s32.totalorder %s297, %s300
      %p306 = scmp.eq.s32.totalorder %s23, 0
      %p307 = por %p305, %p306
      %p308 = scmp.ne.s32.totalorder %s297, %s300
      %p309 = scmp.eq.s32.totalorder %s28, 2
      %p310 = por %p308, %p309
      %p311 = scmp.ne.s32.totalorder %s300, %s301
      %p312 = scmp.eq.s32.totalorder %s28, 0
      %p313 = por %p311, %p312
      %p314 = scmp.ne.s32.totalorder %s300, %s301
      %p315 = scmp.eq.s32.totalorder %s29, 2
      %p316 = por %p314, %p315
      %p318 = scmp.ne.s32.totalorder %s301, %s317
      %p319 = scmp.eq.s32.totalorder %s29, 0
      %p320 = por %p318, %p319
      %s321 = ssub.s32 %s30, %s42
      %p322 = scmp.eq.s32.totalorder %s321, 0
      %s324 = sadd.s32 %s323, 1
      %s325 = scalar_select %p322, %s323, %s324
      %p328 = pneg %p322
      %p329 = scmp.eq.s32.totalorder %s23, 2
      %p330 = por %p328, %p329
      %p331 = scmp.ne.s32.totalorder %s323, %s326
      %p332 = scmp.eq.s32.totalorder %s23, 0
      %p333 = por %p331, %p332
      %p334 = scmp.ne.s32.totalorder %s323, %s326
      %p335 = scmp.eq.s32.totalorder %s28, 2
      %p336 = por %p334, %p335
      %p337 = scmp.ne.s32.totalorder %s326, %s327
      %p338 = scmp.eq.s32.totalorder %s28, 0
      %p339 = por %p337, %p338
      %p340 = scmp.ne.s32.totalorder %s326, %s327
      %p341 = scmp.eq.s32.totalorder %s29, 2
      %p342 = por %p340, %p341
      %p344 = scmp.ne.s32.totalorder %s327, %s343
      %p345 = scmp.eq.s32.totalorder %s29, 0
      %p346 = por %p344, %p345
      %p347 = scmp.le.s32.totalorder 1, %s23
      %p348 = scmp.lt.s32.totalorder %s23, 4
      %p349 = pnand %p347, %p348
      %p350 = pneg %p349
      // Predicated region
      $region9: #{tpu_custom_call.1} parent=5 // pred_check
        _
      $region10: #{tpu_custom_call.1} parent=5 // pred_check_branch
        %352 = sbr.rel (%p349) target = $region12
      $region11: #{tpu_custom_call.1} parent=5 // pred_region
        %s353 = ssub.s32 %s23, 1
        // Predicated region
        $region13: #{tpu_custom_call.1} parent=11 // pred_check
          %p354 = pneg %p61
        $region14: #{tpu_custom_call.1} parent=11 // pred_check_branch
          %356 = sbr.rel (%p354) target = $region16
        $region15: #{tpu_custom_call.1} parent=11 // pred_region
          %p357 = scmp.lt.s32.totalorder %s32, 0
          %s358 = scalar_select %p357, %s32, 0
          %s359 = smul.addr %s358, 8
          %s360 = scalar_lea.vmem %s0, %s359
        $region16: #{tpu_custom_call.1} parent=11 // pred_fallthru
          _
        // Predicated region
        $region17: #{tpu_custom_call.1} parent=11 // pred_check
          %p361 = pneg %p138
        $region18: #{tpu_custom_call.1} parent=11 // pred_check_branch
          %363 = sbr.rel (%p361) target = $region20
        $region19: #{tpu_custom_call.1} parent=11 // pred_region
          _
        $region20: #{tpu_custom_call.1} parent=11 // pred_fallthru
          _
        // Predicated region
        $region21: #{tpu_custom_call.1} parent=11 // pred_check
          %p364 = pneg %p159
        $region22: #{tpu_custom_call.1} parent=11 // pred_check_branch
          %366 = sbr.rel (%p364) target = $region24
        $region23: #{tpu_custom_call.1} parent=11 // pred_region
          _
        $region24: #{tpu_custom_call.1} parent=11 // pred_fallthru
          _
        // Predicated region
        $region25: #{tpu_custom_call.1} parent=11 // pred_check
          %p367 = pneg %p180
        $region26: #{tpu_custom_call.1} parent=11 // pred_check_branch
          %369 = sbr.rel (%p367) target = $region28
        $region27: #{tpu_custom_call.1} parent=11 // pred_region
          _
        $region28: #{tpu_custom_call.1} parent=11 // pred_fallthru
          _
        // Predicated region
        $region29: #{tpu_custom_call.1} parent=11 // pred_check
          %p370 = pneg %p201
        $region30: #{tpu_custom_call.1} parent=11 // pred_check_branch
          %372 = sbr.rel (%p370) target = $region32
        $region31: #{tpu_custom_call.1} parent=11 // pred_region
          _
        $region32: #{tpu_custom_call.1} parent=11 // pred_fallthru
          _
        // Predicated region
        $region33: #{tpu_custom_call.1} parent=11 // pred_check
          %p373 = pneg %p222
        $region34: #{tpu_custom_call.1} parent=11 // pred_check_branch
          %375 = sbr.rel (%p373) target = $region36
        $region35: #{tpu_custom_call.1} parent=11 // pred_region
          _
        $region36: #{tpu_custom_call.1} parent=11 // pred_fallthru
          _
        // Predicated region
        $region37: #{tpu_custom_call.1} parent=11 // pred_check
          %p376 = pneg %p243
        $region38: #{tpu_custom_call.1} parent=11 // pred_check_branch
          %378 = sbr.rel (%p376) target = $region40
        $region39: #{tpu_custom_call.1} parent=11 // pred_region
          _
        $region40: #{tpu_custom_call.1} parent=11 // pred_fallthru
          _
        // Predicated region
        $region41: #{tpu_custom_call.1} parent=11 // pred_check
          %p379 = pneg %p264
        $region42: #{tpu_custom_call.1} parent=11 // pred_check_branch
          %381 = sbr.rel (%p379) target = $region44
        $region43: #{tpu_custom_call.1} parent=11 // pred_region
          _
        $region44: #{tpu_custom_call.1} parent=11 // pred_fallthru
          _
        // Predicated region
        $region45: #{tpu_custom_call.1} parent=11 // pred_check
          %p382 = pneg %p285
        $region46: #{tpu_custom_call.1} parent=11 // pred_check_branch
          %384 = sbr.rel (%p382) target = $region48
        $region47: #{tpu_custom_call.1} parent=11 // pred_region
          _
        $region48: #{tpu_custom_call.1} parent=11 // pred_fallthru
          _
      $region12: #{tpu_custom_call.1} parent=5 // pred_fallthru
        _
      %p385 = scmp.lt.s32.totalorder %s23, 3
      // Predicated region
      $region49: #{tpu_custom_call.1} parent=5 // pred_check
        %p386 = pneg %p385
      $region50: #{tpu_custom_call.1} parent=5 // pred_check_branch
        %388 = sbr.rel (%p386) target = $region52
      $region51: #{tpu_custom_call.1} parent=5 // pred_region
        // Predicated region
        $region53: #{tpu_custom_call.1} parent=51 // pred_check
          %p389 = pneg %p83
        $region54: #{tpu_custom_call.1} parent=51 // pred_check_branch
          %391 = sbr.rel (%p389) target = $region56
        $region55: #{tpu_custom_call.1} parent=51 // pred_region
          %p392 = scmp.lt.s32.totalorder %s31, 2
          %s393 = scalar_select %p392, %s31, 2
          %p394 = scmp.lt.s32.totalorder %s30, 0
          %s395 = scalar_select %p394, %s30, 0
          %s396 = smul.addr %s393, 25
          %s397 = sadd.s32 %s395, %s396
          %s398 = smul.addr %s397, 8
          %s399 = scalar_lea.vmem %s1, %s398
        $region56: #{tpu_custom_call.1} parent=51 // pred_fallthru
          _
        // Predicated region
        $region57: #{tpu_custom_call.1} parent=51 // pred_check
          %p400 = pneg %p111
        $region58: #{tpu_custom_call.1} parent=51 // pred_check_branch
          %402 = sbr.rel (%p400) target = $region60
        $region59: #{tpu_custom_call.1} parent=51 // pred_region
          %p403 = scmp.lt.s32.totalorder %s31, 2
          %s404 = scalar_select %p403, %s31, 2
          %p405 = scmp.lt.s32.totalorder %s30, 0
          %s406 = scalar_select %p405, %s30, 0
          %s407 = smul.addr %s404, 2
          %s408 = sadd.s32 %s406, %s407
          %s409 = smul.addr %s408, 8
          %s410 = scalar_lea.vmem %s2, %s409
        $region60: #{tpu_custom_call.1} parent=51 // pred_fallthru
          _
      $region52: #{tpu_custom_call.1} parent=5 // pred_fallthru
        _
      %p411 = scmp.le.s32.totalorder 1, %s23
      %p412 = scmp.lt.s32.totalorder %s23, 4
      %p413 = pnand %p411, %p412
      %p414 = pneg %p413
      // Predicated region
      $region61: #{tpu_custom_call.1} parent=5 // pred_check
        _
      $region62: #{tpu_custom_call.1} parent=5 // pred_check_branch
        %416 = sbr.rel (%p413) target = $region64
      $region63: #{tpu_custom_call.1} parent=5 // pred_region
        %s417 = ssub.s32 %s23, 1
        %p418 = scmp.lt.s32.totalorder %s32, 0
        %s419 = scalar_select %p418, %s32, 0
        %s420 = smul.addr %s419, 8
        %s421 = scalar_lea.vmem %s0, %s420
        %p422 = pneg %p61
        %p423 = pneg %p58
        %p424 = scmp.lt.s32.totalorder %s33, 2
        %s425 = scalar_select %p424, %s33, 2
        %p426 = scmp.lt.s32.totalorder %s32, 0
        %s427 = scalar_select %p426, %s32, 0
        %s428 = smul.addr %s425, 25
        %s429 = sadd.s32 %s427, %s428
        %s430 = smul.addr %s429, 8
        %s431 = scalar_lea.vmem %s1, %s430
        %p432 = pneg %p89
        %p433 = pneg %p86
        %p434 = scmp.lt.s32.totalorder %s33, 2
        %s435 = scalar_select %p434, %s33, 2
        %p436 = scmp.lt.s32.totalorder %s32, 0
        %s437 = scalar_select %p436, %s32, 0
        %s438 = smul.addr %s435, 2
        %s439 = sadd.s32 %s437, %s438
        %s440 = smul.addr %s439, 8
        %s441 = scalar_lea.vmem %s2, %s440
        %p442 = pneg %p117
        %p443 = pneg %p114
        %p444 = pneg %p138
        %p445 = pneg %p135
        %p446 = pneg %p159
        %p447 = pneg %p156
        %p448 = pneg %p180
        %p449 = pneg %p177
        %p450 = pneg %p201
        %p451 = pneg %p198
        %p452 = pneg %p222
        %p453 = pneg %p219
        %p454 = pneg %p243
        %p455 = pneg %p240
        %p456 = pneg %p264
        %p457 = pneg %p261
        %p458 = pneg %p285
        %p459 = pneg %p282
        %p460 = pneg %p313
        %p461 = pneg %p310
        %s462 = sand.u32 %s300, 1
        %s463 = scalar_lea.sflag [#allocation3], %s462
        %s464 = sand.u32 %s300, 1
        %s465 = smul.addr %s464, 2
        %s466 = scalar_lea.vmem [#allocation2], %s465
        %p467 = pneg %p339
        %p468 = pneg %p336
        %p469 = scmp.lt.s32.totalorder %s32, 0
        %s470 = scalar_select %p469, %s32, 0
        %s471 = smul.addr %s470, 8
        %s472 = scalar_lea.vmem %s0, %s471
        %p473 = scmp.lt.s32.totalorder %s33, 2
        %s474 = scalar_select %p473, %s33, 2
        %p475 = scmp.lt.s32.totalorder %s32, 0
        %s476 = scalar_select %p475, %s32, 0
        %s477 = smul.addr %s474, 25
        %s478 = sadd.s32 %s476, %s477
        %s479 = smul.addr %s478, 8
        %s480 = scalar_lea.vmem %s1, %s479
        %p481 = scmp.lt.s32.totalorder %s33, 2
        %s482 = scalar_select %p481, %s33, 2
        %p483 = scmp.lt.s32.totalorder %s32, 0
        %s484 = scalar_select %p483, %s32, 0
        %s485 = smul.addr %s482, 2
        %s486 = sadd.s32 %s484, %s485
        %s487 = smul.addr %s486, 8
        %s488 = scalar_lea.vmem %s2, %s487
        %p489 = scmp.eq.s32.totalorder %s33, 0
        // Predicated region
        $region65: #{tpu_custom_call.1} parent=63 // pred_check
          %p490 = pneg %p489
        $region66: #{tpu_custom_call.1} parent=63 // pred_check_branch
          %492 = sbr.rel (%p490) target = $region68
        $region67: #{tpu_custom_call.1} parent=63 // pred_region
          %v493 = vld [vmem:[%s472] sm:$0xff]
          %v494 = vld [vmem:[%s472 + $0x8] sm:$0xf]
          %v495 = vld [vmem:[%s3] sm:$0xff]
          %v496 = vld [vmem:[%s3 + $0x8] sm:$0xff]
          %v497 = vld [vmem:[%s3 + $0x10] sm:$0xff]
          %v498 = vld [vmem:[%s3 + $0x18] sm:$0xff]
          %v499 = vld [vmem:[%s4] sm:$0xff]
          %v500 = vld [vmem:[%s4 + $0x8] sm:$0xff]
          %v501 = vld [vmem:[%s4 + $0x10] sm:$0xff]
          %v502 = vld [vmem:[%s4 + $0x18] sm:$0xff]
          %504 = vset.pattern.permute.xlu0 0
          %505 = vperm.xlu0 %504, %v499
          %v506 = vpop.permute.xlu0 %505
          %509 = vset.pattern.permute.xlu0 0
          %510 = vperm.xlu0 %509, %v500
          %v511 = vpop.permute.xlu0 %510
          %514 = vset.pattern.permute.xlu0 0
          %515 = vperm.xlu0 %514, %v501
          %v516 = vpop.permute.xlu0 %515
          %519 = vset.pattern.permute.xlu0 0
          %520 = vperm.xlu0 %519, %v502
          %v521 = vpop.permute.xlu0 %520
          %vm523 = vcmask 97280
          %v525 = vsel %vm523, %v495, 0
          %v528 = vsel %vm523, %v496, 0
          %v531 = vsel %vm523, %v497, 0
          %v534 = vsel %vm523, %v498, 0
          %vm536 = vcmask 1043456
          %v538 = vsel %vm536, %v494, 0
          %540 = vmatpush.msra.mxu0 0.0
          %541 = vmatpush.msra.mxu0 0.0
          %542 = vmatpush.msra.mxu0 0.0
          %543 = vmatpush.msra.mxu0 0.0
          %544 = vmatpush.msra.mxu0 0.0
          %545 = vmatpush.msra.mxu0 0.0
          %546 = vmatpush.msra.mxu0 0.0
          %547 = vmatpush.msra.mxu0 0.0
          %548 = vmatpush.msra.mxu0 0.0
          %549 = vmatpush.msra.mxu0 0.0
          %550 = vmatpush.msra.mxu0 0.0
          %551 = vmatpush.msra.mxu0 0.0
          %552 = vmatpush.msra.mxu0 0.0
          %553 = vmatpush.msra.mxu0 0.0
          %554 = vmatpush.msra.mxu0 %v538
          %555 = vmatpush.msra.mxu0 %v493
          %556 = vmatmul.f32.gmra.mxu0 %v525
          %v557 = vpop.f32.mrf.mxu0
          %v558 = vadd.f32 %v506, %v557
          %559 = vmatmul.f32.gmra.mxu0 %v528
          %v560 = vpop.f32.mrf.mxu0
          %v561 = vadd.f32 %v511, %v560
          %562 = vmatmul.f32.gmra.mxu0 %v531
          %v563 = vpop.f32.mrf.mxu0
          %v564 = vadd.f32 %v516, %v563
          %565 = vmatmul.f32.gmra.mxu0 %v534
          %v566 = vpop.f32.mrf.mxu0
          %v567 = vadd.f32 %v521, %v566
          %568 = vdwg.mxu0
          %v569 = vmax.f32 %v558, 0.0
          %v570 = vmax.f32 %v561, 0.0
          %v571 = vmax.f32 %v564, 0.0
          %v572 = vmax.f32 %v567, 0.0
          %v573 = vld [vmem:[%s5] sm:$0xff]
          %v574 = vld [vmem:[%s5 + $0x8] sm:$0xff]
          %v575 = vld [vmem:[%s5 + $0x10] sm:$0xff]
          %v576 = vld [vmem:[%s5 + $0x18] sm:$0xff]
          %v577 = vld [vmem:[%s6] sm:$0xff]
          %v578 = vld [vmem:[%s6 + $0x8] sm:$0xff]
          %v579 = vld [vmem:[%s6 + $0x10] sm:$0xff]
          %v580 = vld [vmem:[%s6 + $0x18] sm:$0xff]
          %582 = vset.pattern.permute.xlu0 0
          %583 = vperm.xlu0 %582, %v577
          %v584 = vpop.permute.xlu0 %583
          %587 = vset.pattern.permute.xlu0 0
          %588 = vperm.xlu0 %587, %v578
          %v589 = vpop.permute.xlu0 %588
          %592 = vset.pattern.permute.xlu0 0
          %593 = vperm.xlu0 %592, %v579
          %v594 = vpop.permute.xlu0 %593
          %597 = vset.pattern.permute.xlu0 0
          %598 = vperm.xlu0 %597, %v580
          %v599 = vpop.permute.xlu0 %598
          %vm601 = vcmask 261120
          %v603 = vsel %vm601, %v573, 0
          %v606 = vsel %vm601, %v574, 0
          %v609 = vsel %vm601, %v575, 0
          %v612 = vsel %vm601, %v576, 0
          %614 = vmatpush.msra.mxu0 0.0
          %615 = vmatpush.msra.mxu0 0.0
          %616 = vmatpush.msra.mxu0 0.0
          %617 = vmatpush.msra.mxu0 0.0
          %618 = vmatpush.msra.mxu0 0.0
          %619 = vmatpush.msra.mxu0 0.0
          %620 = vmatpush.msra.mxu0 0.0
          %621 = vmatpush.msra.mxu0 0.0
          %622 = vmatpush.msra.mxu0 0.0
          %623 = vmatpush.msra.mxu0 0.0
          %624 = vmatpush.msra.mxu0 0.0
          %625 = vmatpush.msra.mxu0 0.0
          %626 = vmatpush.msra.mxu0 %v572
          %627 = vmatpush.msra.mxu0 %v571
          %628 = vmatpush.msra.mxu0 %v570
          %629 = vmatpush.msra.mxu0 %v569
          %630 = vmatmul.f32.gmra.mxu0 %v603
          %v631 = vpop.f32.mrf.mxu0
          %v632 = vadd.f32 %v584, %v631
          %633 = vmatmul.f32.gmra.mxu0 %v606
          %v634 = vpop.f32.mrf.mxu0
          %v635 = vadd.f32 %v589, %v634
          %636 = vmatmul.f32.gmra.mxu0 %v609
          %v637 = vpop.f32.mrf.mxu0
          %v638 = vadd.f32 %v594, %v637
          %639 = vmatmul.f32.gmra.mxu0 %v612
          %v640 = vpop.f32.mrf.mxu0
          %v641 = vadd.f32 %v599, %v640
          %642 = vdwg.mxu0
          %v643 = vmax.f32 %v632, 0.0
          %v644 = vmax.f32 %v635, 0.0
          %v645 = vmax.f32 %v638, 0.0
          %v646 = vmax.f32 %v641, 0.0
          %v647 = vld [vmem:[%s7] sm:$0xff]
          %v648 = vld [vmem:[%s7 + $0x8] sm:$0xff]
          %v649 = vld [vmem:[%s7 + $0x10] sm:$0xff]
          %v650 = vld [vmem:[%s7 + $0x18] sm:$0xff]
          %v651 = vld [vmem:[%s8] sm:$0xff]
          %v652 = vld [vmem:[%s8 + $0x8] sm:$0xff]
          %v653 = vld [vmem:[%s8 + $0x10] sm:$0xff]
          %v654 = vld [vmem:[%s8 + $0x18] sm:$0xff]
          %656 = vset.pattern.permute.xlu0 0
          %657 = vperm.xlu0 %656, %v651
          %v658 = vpop.permute.xlu0 %657
          %661 = vset.pattern.permute.xlu0 0
          %662 = vperm.xlu0 %661, %v652
          %v663 = vpop.permute.xlu0 %662
          %666 = vset.pattern.permute.xlu0 0
          %667 = vperm.xlu0 %666, %v653
          %v668 = vpop.permute.xlu0 %667
          %671 = vset.pattern.permute.xlu0 0
          %672 = vperm.xlu0 %671, %v654
          %v673 = vpop.permute.xlu0 %672
          %v676 = vsel %vm601, %v647, 0
          %v679 = vsel %vm601, %v648, 0
          %v682 = vsel %vm601, %v649, 0
          %v685 = vsel %vm601, %v650, 0
          %687 = vmatpush.msra.mxu0 0.0
          %688 = vmatpush.msra.mxu0 0.0
          %689 = vmatpush.msra.mxu0 0.0
          %690 = vmatpush.msra.mxu0 0.0
          %691 = vmatpush.msra.mxu0 0.0
          %692 = vmatpush.msra.mxu0 0.0
          %693 = vmatpush.msra.mxu0 0.0
          %694 = vmatpush.msra.mxu0 0.0
          %695 = vmatpush.msra.mxu0 0.0
          %696 = vmatpush.msra.mxu0 0.0
          %697 = vmatpush.msra.mxu0 0.0
          %698 = vmatpush.msra.mxu0 0.0
          %699 = vmatpush.msra.mxu0 %v646
          %700 = vmatpush.msra.mxu0 %v645
          %701 = vmatpush.msra.mxu0 %v644
          %702 = vmatpush.msra.mxu0 %v643
          %703 = vmatmul.f32.gmra.mxu0 %v676
          %v704 = vpop.f32.mrf.mxu0
          %v705 = vadd.f32 %v658, %v704
          %706 = vmatmul.f32.gmra.mxu0 %v679
          %v707 = vpop.f32.mrf.mxu0
          %v708 = vadd.f32 %v663, %v707
          %709 = vmatmul.f32.gmra.mxu0 %v682
          %v710 = vpop.f32.mrf.mxu0
          %v711 = vadd.f32 %v668, %v710
          %712 = vmatmul.f32.gmra.mxu0 %v685
          %v713 = vpop.f32.mrf.mxu0
          %v714 = vadd.f32 %v673, %v713
          %715 = vdwg.mxu0
          %v716 = vmax.f32 %v705, 0.0
          %v717 = vmax.f32 %v708, 0.0
          %v718 = vmax.f32 %v711, 0.0
          %v719 = vmax.f32 %v714, 0.0
          %v720 = vld [vmem:[%s9] sm:$0x7]
          %v721 = vld [vmem:[%s10] sm:$0x7]
          %723 = vset.pattern.permute.xlu0 0
          %724 = vperm.xlu0 %723, %v721
          %v725 = vpop.permute.xlu0 %724
          %v728 = vsel %vm601, %v720, 0
          %730 = vmatpush.msra.mxu0 0.0
          %731 = vmatpush.msra.mxu0 0.0
          %732 = vmatpush.msra.mxu0 0.0
          %733 = vmatpush.msra.mxu0 0.0
          %734 = vmatpush.msra.mxu0 0.0
          %735 = vmatpush.msra.mxu0 0.0
          %736 = vmatpush.msra.mxu0 0.0
          %737 = vmatpush.msra.mxu0 0.0
          %738 = vmatpush.msra.mxu0 0.0
          %739 = vmatpush.msra.mxu0 0.0
          %740 = vmatpush.msra.mxu0 0.0
          %741 = vmatpush.msra.mxu0 0.0
          %742 = vmatpush.msra.mxu0 %v719
          %743 = vmatpush.msra.mxu0 %v718
          %744 = vmatpush.msra.mxu0 %v717
          %745 = vmatpush.msra.mxu0 %v716
          %746 = vmatmul.f32.gmra.mxu0 %v728
          %v747 = vpop.f32.mrf.mxu0
          %v748 = vadd.f32 %v725, %v747
          %749 = vdwg.mxu0
          %v750 = vmax.f32 %v748, -20.0
          %v751 = vmin.f32 %v750, 2.0
          %v752 = vmul.f32 %v751, 1.442695
          %v753 = vpow.pop %v752
          %v755 = vrot.slane %v753, 5
          %vm757 = vcmask 1042432
          %v758 = vsel %vm757, %v751, %v755
          %vm759 = vcmask 62464
          %760 = vst.msk [vmem:[#allocation4] sm:$0x3f] %vm759, %v758
        $region68: #{tpu_custom_call.1} parent=63 // pred_fallthru
          _
        %v761 = vld [vmem:[%s472] sm:$0x1]
        %v762 = vld [vmem:[%s472 + $0x1] sm:$0x1]
        %v763 = vld [vmem:[%s472 + $0x2] sm:$0x1]
        %v764 = vld [vmem:[%s472 + $0x3] sm:$0x1]
        %v765 = vld [vmem:[%s472 + $0x4] sm:$0x1]
        %v766 = vld [vmem:[%s472 + $0x5] sm:$0x1]
        %v767 = vld [vmem:[%s472 + $0x6] sm:$0x1]
        %v768 = vld [vmem:[%s472 + $0x7] sm:$0x1]
        %v769 = vld [vmem:[%s488] sm:$0x1]
        %v770 = vld [vmem:[%s480] sm:$0x1]
        %v771 = vmul.f32 %v770, %v761
        %v772 = vadd.f32 %v769, %v771
        %v773 = vld [vmem:[%s480 + $0x1] sm:$0x1]
        %v774 = vmul.f32 %v773, %v762
        %v775 = vadd.f32 %v772, %v774
        %v776 = vld [vmem:[%s480 + $0x2] sm:$0x1]
        %v777 = vmul.f32 %v776, %v763
        %v778 = vadd.f32 %v775, %v777
        %v779 = vld [vmem:[%s480 + $0x3] sm:$0x1]
        %v780 = vmul.f32 %v779, %v764
        %v781 = vadd.f32 %v778, %v780
        %v782 = vld [vmem:[%s480 + $0x4] sm:$0x1]
        %v783 = vmul.f32 %v782, %v765
        %v784 = vadd.f32 %v781, %v783
        %v785 = vld [vmem:[%s480 + $0x5] sm:$0x1]
        %v786 = vmul.f32 %v785, %v766
        %v787 = vadd.f32 %v784, %v786
        %v788 = vld [vmem:[%s480 + $0x6] sm:$0x1]
        %v789 = vmul.f32 %v788, %v767
        %v790 = vadd.f32 %v787, %v789
        %v791 = vld [vmem:[%s480 + $0x7] sm:$0x1]
        %v792 = vmul.f32 %v791, %v768
        %v793 = vadd.f32 %v790, %v792
        %v794 = vld [vmem:[%s488 + $0x1] sm:$0x1]
        %v795 = vld [vmem:[%s480 + $0x8] sm:$0x1]
        %v796 = vmul.f32 %v795, %v761
        %v797 = vadd.f32 %v794, %v796
        %v798 = vld [vmem:[%s480 + $0x9] sm:$0x1]
        %v799 = vmul.f32 %v798, %v762
        %v800 = vadd.f32 %v797, %v799
        %v801 = vld [vmem:[%s480 + $0xa] sm:$0x1]
        %v802 = vmul.f32 %v801, %v763
        %v803 = vadd.f32 %v800, %v802
        %v804 = vld [vmem:[%s480 + $0xb] sm:$0x1]
        %v805 = vmul.f32 %v804, %v764
        %v806 = vadd.f32 %v803, %v805
        %v807 = vld [vmem:[%s480 + $0xc] sm:$0x1]
        %v808 = vmul.f32 %v807, %v765
        %v809 = vadd.f32 %v806, %v808
        %v810 = vld [vmem:[%s480 + $0xd] sm:$0x1]
        %v811 = vmul.f32 %v810, %v766
        %v812 = vadd.f32 %v809, %v811
        %v813 = vld [vmem:[%s480 + $0xe] sm:$0x1]
        %v814 = vmul.f32 %v813, %v767
        %v815 = vadd.f32 %v812, %v814
        %v816 = vld [vmem:[%s480 + $0xf] sm:$0x1]
        %v817 = vmul.f32 %v816, %v768
        %v818 = vadd.f32 %v815, %v817
        %v819 = vld [vmem:[%s488 + $0x2] sm:$0x1]
        %v820 = vld [vmem:[%s480 + $0x10] sm:$0x1]
        %v821 = vmul.f32 %v820, %v761
        %v822 = vadd.f32 %v819, %v821
        %v823 = vld [vmem:[%s480 + $0x11] sm:$0x1]
        %v824 = vmul.f32 %v823, %v762
        %v825 = vadd.f32 %v822, %v824
        %v826 = vld [vmem:[%s480 + $0x12] sm:$0x1]
        %v827 = vmul.f32 %v826, %v763
        %v828 = vadd.f32 %v825, %v827
        %v829 = vld [vmem:[%s480 + $0x13] sm:$0x1]
        %v830 = vmul.f32 %v829, %v764
        %v831 = vadd.f32 %v828, %v830
        %v832 = vld [vmem:[%s480 + $0x14] sm:$0x1]
        %v833 = vmul.f32 %v832, %v765
        %v834 = vadd.f32 %v831, %v833
        %v835 = vld [vmem:[%s480 + $0x15] sm:$0x1]
        %v836 = vmul.f32 %v835, %v766
        %v837 = vadd.f32 %v834, %v836
        %v838 = vld [vmem:[%s480 + $0x16] sm:$0x1]
        %v839 = vmul.f32 %v838, %v767
        %v840 = vadd.f32 %v837, %v839
        %v841 = vld [vmem:[%s480 + $0x17] sm:$0x1]
        %v842 = vmul.f32 %v841, %v768
        %v843 = vadd.f32 %v840, %v842
        %v844 = vld [vmem:[%s488 + $0x3] sm:$0x1]
        %v845 = vld [vmem:[%s480 + $0x18] sm:$0x1]
        %v846 = vmul.f32 %v845, %v761
        %v847 = vadd.f32 %v844, %v846
        %v848 = vld [vmem:[%s480 + $0x19] sm:$0x1]
        %v849 = vmul.f32 %v848, %v762
        %v850 = vadd.f32 %v847, %v849
        %v851 = vld [vmem:[%s480 + $0x1a] sm:$0x1]
        %v852 = vmul.f32 %v851, %v763
        %v853 = vadd.f32 %v850, %v852
        %v854 = vld [vmem:[%s480 + $0x1b] sm:$0x1]
        %v855 = vmul.f32 %v854, %v764
        %v856 = vadd.f32 %v853, %v855
        %v857 = vld [vmem:[%s480 + $0x1c] sm:$0x1]
        %v858 = vmul.f32 %v857, %v765
        %v859 = vadd.f32 %v856, %v858
        %v860 = vld [vmem:[%s480 + $0x1d] sm:$0x1]
        %v861 = vmul.f32 %v860, %v766
        %v862 = vadd.f32 %v859, %v861
        %v863 = vld [vmem:[%s480 + $0x1e] sm:$0x1]
        %v864 = vmul.f32 %v863, %v767
        %v865 = vadd.f32 %v862, %v864
        %v866 = vld [vmem:[%s480 + $0x1f] sm:$0x1]
        %v867 = vmul.f32 %v866, %v768
        %v868 = vadd.f32 %v865, %v867
        %v869 = vld [vmem:[%s488 + $0x4] sm:$0x1]
        %v870 = vld [vmem:[%s480 + $0x20] sm:$0x1]
        %v871 = vmul.f32 %v870, %v761
        %v872 = vadd.f32 %v869, %v871
        %v873 = vld [vmem:[%s480 + $0x21] sm:$0x1]
        %v874 = vmul.f32 %v873, %v762
        %v875 = vadd.f32 %v872, %v874
        %v876 = vld [vmem:[%s480 + $0x22] sm:$0x1]
        %v877 = vmul.f32 %v876, %v763
        %v878 = vadd.f32 %v875, %v877
        %v879 = vld [vmem:[%s480 + $0x23] sm:$0x1]
        %v880 = vmul.f32 %v879, %v764
        %v881 = vadd.f32 %v878, %v880
        %v882 = vld [vmem:[%s480 + $0x24] sm:$0x1]
        %v883 = vmul.f32 %v882, %v765
        %v884 = vadd.f32 %v881, %v883
        %v885 = vld [vmem:[%s480 + $0x25] sm:$0x1]
        %v886 = vmul.f32 %v885, %v766
        %v887 = vadd.f32 %v884, %v886
        %v888 = vld [vmem:[%s480 + $0x26] sm:$0x1]
        %v889 = vmul.f32 %v888, %v767
        %v890 = vadd.f32 %v887, %v889
        %v891 = vld [vmem:[%s480 + $0x27] sm:$0x1]
        %v892 = vmul.f32 %v891, %v768
        %v893 = vadd.f32 %v890, %v892
        %v894 = vmax.f32 %v793, -100.0
        %v895 = vmin.f32 %v894, 100.0
        %v896 = vmax.f32 %v818, -100.0
        %v897 = vmin.f32 %v896, 100.0
        %v898 = vmul.f32 %v895, %v897
        %v899 = vmax.f32 %v843, 0.001
        %v900 = vlog2.pop %v899
        %v901 = vmul.f32 %v900, 0.6931472
        %v902 = vmax.f32 %v868, -10.0
        %v903 = vmin.f32 %v902, 4.0
        %v904 = vmul.f32 %v903, 1.442695
        %v905 = vpow.pop %v904
        %v906 = vld [vmem:[%s488 + $0x5] sm:$0x1]
        %v907 = vld [vmem:[%s480 + $0x28] sm:$0x1]
        %v908 = vmul.f32 %v907, %v761
        %v909 = vadd.f32 %v906, %v908
        %v910 = vld [vmem:[%s480 + $0x29] sm:$0x1]
        %v911 = vmul.f32 %v910, %v762
        %v912 = vadd.f32 %v909, %v911
        %v913 = vld [vmem:[%s480 + $0x2a] sm:$0x1]
        %v914 = vmul.f32 %v913, %v763
        %v915 = vadd.f32 %v912, %v914
        %v916 = vld [vmem:[%s480 + $0x2b] sm:$0x1]
        %v917 = vmul.f32 %v916, %v764
        %v918 = vadd.f32 %v915, %v917
        %v919 = vld [vmem:[%s480 + $0x2c] sm:$0x1]
        %v920 = vmul.f32 %v919, %v765
        %v921 = vadd.f32 %v918, %v920
        %v922 = vld [vmem:[%s480 + $0x2d] sm:$0x1]
        %v923 = vmul.f32 %v922, %v766
        %v924 = vadd.f32 %v921, %v923
        %v925 = vld [vmem:[%s480 + $0x2e] sm:$0x1]
        %v926 = vmul.f32 %v925, %v767
        %v927 = vadd.f32 %v924, %v926
        %v928 = vld [vmem:[%s480 + $0x2f] sm:$0x1]
        %v929 = vmul.f32 %v928, %v768
        %v930 = vadd.f32 %v927, %v929
        %v931 = vld [vmem:[%s480 + $0x30] sm:$0x1]
        %v932 = vmul.f32 %v931, %v898
        %v933 = vadd.f32 %v930, %v932
        %v934 = vld [vmem:[%s480 + $0x31] sm:$0x1]
        %v935 = vmul.f32 %v934, %v901
        %v936 = vadd.f32 %v933, %v935
        %v937 = vld [vmem:[%s480 + $0x32] sm:$0x1]
        %v938 = vmul.f32 %v937, %v905
        %v939 = vadd.f32 %v936, %v938
        %v940 = vld [vmem:[%s480 + $0x33] sm:$0x1]
        %v941 = vmul.f32 %v940, %v893
        %v942 = vadd.f32 %v939, %v941
        %v943 = vld [vmem:[%s488 + $0x6] sm:$0x1]
        %v944 = vld [vmem:[%s480 + $0x34] sm:$0x1]
        %v945 = vmul.f32 %v944, %v761
        %v946 = vadd.f32 %v943, %v945
        %v947 = vld [vmem:[%s480 + $0x35] sm:$0x1]
        %v948 = vmul.f32 %v947, %v762
        %v949 = vadd.f32 %v946, %v948
        %v950 = vld [vmem:[%s480 + $0x36] sm:$0x1]
        %v951 = vmul.f32 %v950, %v763
        %v952 = vadd.f32 %v949, %v951
        %v953 = vld [vmem:[%s480 + $0x37] sm:$0x1]
        %v954 = vmul.f32 %v953, %v764
        %v955 = vadd.f32 %v952, %v954
        %v956 = vld [vmem:[%s480 + $0x38] sm:$0x1]
        %v957 = vmul.f32 %v956, %v765
        %v958 = vadd.f32 %v955, %v957
        %v959 = vld [vmem:[%s480 + $0x39] sm:$0x1]
        %v960 = vmul.f32 %v959, %v766
        %v961 = vadd.f32 %v958, %v960
        %v962 = vld [vmem:[%s480 + $0x3a] sm:$0x1]
        %v963 = vmul.f32 %v962, %v767
        %v964 = vadd.f32 %v961, %v963
        %v965 = vld [vmem:[%s480 + $0x3b] sm:$0x1]
        %v966 = vmul.f32 %v965, %v768
        %v967 = vadd.f32 %v964, %v966
        %v968 = vld [vmem:[%s480 + $0x3c] sm:$0x1]
        %v969 = vmul.f32 %v968, %v898
        %v970 = vadd.f32 %v967, %v969
        %v971 = vld [vmem:[%s480 + $0x3d] sm:$0x1]
        %v972 = vmul.f32 %v971, %v901
        %v973 = vadd.f32 %v970, %v972
        %v974 = vld [vmem:[%s480 + $0x3e] sm:$0x1]
        %v975 = vmul.f32 %v974, %v905
        %v976 = vadd.f32 %v973, %v975
        %v977 = vld [vmem:[%s480 + $0x3f] sm:$0x1]
        %v978 = vmul.f32 %v977, %v893
        %v979 = vadd.f32 %v976, %v978
        %v980 = vld [vmem:[%s488 + $0x7] sm:$0x1]
        %v981 = vld [vmem:[%s480 + $0x40] sm:$0x1]
        %v982 = vmul.f32 %v981, %v761
        %v983 = vadd.f32 %v980, %v982
        %v984 = vld [vmem:[%s480 + $0x41] sm:$0x1]
        %v985 = vmul.f32 %v984, %v762
        %v986 = vadd.f32 %v983, %v985
        %v987 = vld [vmem:[%s480 + $0x42] sm:$0x1]
        %v988 = vmul.f32 %v987, %v763
        %v989 = vadd.f32 %v986, %v988
        %v990 = vld [vmem:[%s480 + $0x43] sm:$0x1]
        %v991 = vmul.f32 %v990, %v764
        %v992 = vadd.f32 %v989, %v991
        %v993 = vld [vmem:[%s480 + $0x44] sm:$0x1]
        %v994 = vmul.f32 %v993, %v765
        %v995 = vadd.f32 %v992, %v994
        %v996 = vld [vmem:[%s480 + $0x45] sm:$0x1]
        %v997 = vmul.f32 %v996, %v766
        %v998 = vadd.f32 %v995, %v997
        %v999 = vld [vmem:[%s480 + $0x46] sm:$0x1]
        %v1000 = vmul.f32 %v999, %v767
        %v1001 = vadd.f32 %v998, %v1000
        %v1002 = vld [vmem:[%s480 + $0x47] sm:$0x1]
        %v1003 = vmul.f32 %v1002, %v768
        %v1004 = vadd.f32 %v1001, %v1003
        %v1005 = vld [vmem:[%s480 + $0x48] sm:$0x1]
        %v1006 = vmul.f32 %v1005, %v898
        %v1007 = vadd.f32 %v1004, %v1006
        %v1008 = vld [vmem:[%s480 + $0x49] sm:$0x1]
        %v1009 = vmul.f32 %v1008, %v901
        %v1010 = vadd.f32 %v1007, %v1009
        %v1011 = vld [vmem:[%s480 + $0x4a] sm:$0x1]
        %v1012 = vmul.f32 %v1011, %v905
        %v1013 = vadd.f32 %v1010, %v1012
        %v1014 = vld [vmem:[%s480 + $0x4b] sm:$0x1]
        %v1015 = vmul.f32 %v1014, %v893
        %v1016 = vadd.f32 %v1013, %v1015
        %v1017 = vld [vmem:[%s488 + $0x8] sm:$0x1]
        %v1018 = vld [vmem:[%s480 + $0x4c] sm:$0x1]
        %v1019 = vmul.f32 %v1018, %v761
        %v1020 = vadd.f32 %v1017, %v1019
        %v1021 = vld [vmem:[%s480 + $0x4d] sm:$0x1]
        %v1022 = vmul.f32 %v1021, %v762
        %v1023 = vadd.f32 %v1020, %v1022
        %v1024 = vld [vmem:[%s480 + $0x4e] sm:$0x1]
        %v1025 = vmul.f32 %v1024, %v763
        %v1026 = vadd.f32 %v1023, %v1025
        %v1027 = vld [vmem:[%s480 + $0x4f] sm:$0x1]
        %v1028 = vmul.f32 %v1027, %v764
        %v1029 = vadd.f32 %v1026, %v1028
        %v1030 = vld [vmem:[%s480 + $0x50] sm:$0x1]
        %v1031 = vmul.f32 %v1030, %v765
        %v1032 = vadd.f32 %v1029, %v1031
        %v1033 = vld [vmem:[%s480 + $0x51] sm:$0x1]
        %v1034 = vmul.f32 %v1033, %v766
        %v1035 = vadd.f32 %v1032, %v1034
        %v1036 = vld [vmem:[%s480 + $0x52] sm:$0x1]
        %v1037 = vmul.f32 %v1036, %v767
        %v1038 = vadd.f32 %v1035, %v1037
        %v1039 = vld [vmem:[%s480 + $0x53] sm:$0x1]
        %v1040 = vmul.f32 %v1039, %v768
        %v1041 = vadd.f32 %v1038, %v1040
        %v1042 = vld [vmem:[%s480 + $0x54] sm:$0x1]
        %v1043 = vmul.f32 %v1042, %v898
        %v1044 = vadd.f32 %v1041, %v1043
        %v1045 = vld [vmem:[%s480 + $0x55] sm:$0x1]
        %v1046 = vmul.f32 %v1045, %v901
        %v1047 = vadd.f32 %v1044, %v1046
        %v1048 = vld [vmem:[%s480 + $0x56] sm:$0x1]
        %v1049 = vmul.f32 %v1048, %v905
        %v1050 = vadd.f32 %v1047, %v1049
        %v1051 = vld [vmem:[%s480 + $0x57] sm:$0x1]
        %v1052 = vmul.f32 %v1051, %v893
        %v1053 = vadd.f32 %v1050, %v1052
        %v1054 = vand.u32 2147483647, %v942
        %vm1055 = vcmp.le.f32.partialorder %v1054, 0.7853982
        %vm1056 = vcmp.lt.s32.totalorder %v942, 0
        %v1057 = vand.u32 %v942, 2139095040
        %v1058 = vshrl.u32 %v1057, 23
        %v1059 = vsub.s32 %v1058, 127
        %v1060 = vand.u32 2147483647, %v942
        %v1061 = vand.u32 %v1060, 8388607
        %v1062 = vor.u32 %v1061, 8388608
        %v1063 = vsub.s32 0, %v1062
        %v1064 = vadd.s32 %v1059, 1
        %vm1065 = vcmp.gt.s32.totalorder %v1064, 0
        %v1066 = vsel %vm1065, %v1064, 0
        %v1067 = vshrl.u32 %v1066, 5
        %v1068 = vand.u32 %v1066, 31
        %v1069 = vsub.s32 32, %v1068
        %v1070 = vshrl.u32 683565275, %v1069
        %v1071 = vshll.u32 683565275, %v1068
        %v1072 = vshrl.u32 2475754826, %v1069
        %v1073 = vor.u32 %v1071, %v1072
        %v1074 = vshll.u32 2475754826, %v1068
        %v1075 = vshrl.u32 2131351028, %v1069
        %v1076 = vor.u32 %v1074, %v1075
        %v1077 = vshll.u32 2131351028, %v1068
        %v1078 = vshrl.u32 2102212464, %v1069
        %v1079 = vor.u32 %v1077, %v1078
        %v1080 = vshll.u32 2102212464, %v1068
        %v1081 = vshrl.u32 920167782, %v1069
        %v1082 = vor.u32 %v1080, %v1081
        %v1083 = vshll.u32 920167782, %v1068
        %v1084 = vshrl.u32 1326507024, %v1069
        %v1085 = vor.u32 %v1083, %v1084
        %vm1086 = vcmp.lt.s32.totalorder %v1067, 1
        %vm1087 = vcmp.lt.s32.totalorder %v1067, 2
        %vm1088 = vcmp.lt.s32.totalorder %v1067, 3
        %vm1089 = vcmp.lt.s32.totalorder %v1067, 4
        %v1090 = vsel %vm1086, %v1070, %v1073
        %v1091 = vsel %vm1089, %v1079, 2102212464
        %v1092 = vsel %vm1088, %v1076, %v1091
        %v1093 = vsel %vm1087, %v1090, %v1092
        %v1094 = vsel %vm1086, %v1073, %v1076
        %v1095 = vsel %vm1089, %v1082, 920167782
        %v1096 = vsel %vm1088, %v1079, %v1095
        %v1097 = vsel %vm1087, %v1094, %v1096
        %v1098 = vsel %vm1086, %v1076, %v1079
        %v1099 = vsel %vm1089, %v1085, 1326507024
        %v1100 = vsel %vm1088, %v1082, %v1099
        %v1101 = vsel %vm1087, %v1098, %v1100
        %v1102 = vshll.u32 %v1062, 8
        %v1103 = vand.u32 %v1102, 65535
        %v1104 = vshrl.u32 %v1102, 16
        %v1105 = vand.u32 %v1101, 65535
        %v1106 = vshrl.u32 %v1101, 16
        %v1107 = vmul.u32 %v1103, %v1105
        %v1108 = vmul.u32 %v1103, %v1106
        %v1109 = vmul.u32 %v1104, %v1105
        %v1110 = vmul.u32 %v1104, %v1106
        %v1111 = vshll.u32 %v1108, 16
        %v1112 = vshrl.u32 %v1108, 16
        %v1113 = vshll.u32 %v1109, 16
        %v1114 = vshrl.u32 %v1109, 16
        %vm1115 = vc.u32 %v1107, %v1111
        %v1116 = vsel %vm1115, 1, 0
        %v1117 = vadd.s32 %v1107, %v1111
        %v1118 = vadd.s32 %v1110, %v1116
        %vm1119 = vc.u32 %v1117, %v1113
        %v1120 = vsel %vm1119, 1, 0
        %v1121 = vadd.s32 %v1117, %v1113
        %v1122 = vadd.s32 %v1118, %v1120
        %v1123 = vadd.s32 %v1122, %v1112
        %v1124 = vadd.s32 %v1123, %v1114
        %v1125 = vand.u32 %v1102, 65535
        %v1126 = vshrl.u32 %v1102, 16
        %v1127 = vand.u32 %v1097, 65535
        %v1128 = vshrl.u32 %v1097, 16
        %v1129 = vmul.u32 %v1125, %v1127
        %v1130 = vmul.u32 %v1125, %v1128
        %v1131 = vmul.u32 %v1126, %v1127
        %v1132 = vmul.u32 %v1126, %v1128
        %v1133 = vshll.u32 %v1130, 16
        %v1134 = vshrl.u32 %v1130, 16
        %v1135 = vshll.u32 %v1131, 16
        %v1136 = vshrl.u32 %v1131, 16
        %vm1137 = vc.u32 %v1129, %v1133
        %v1138 = vsel %vm1137, 1, 0
        %v1139 = vadd.s32 %v1129, %v1133
        %v1140 = vadd.s32 %v1132, %v1138
        %vm1141 = vc.u32 %v1139, %v1135
        %v1142 = vsel %vm1141, 1, 0
        %v1143 = vadd.s32 %v1139, %v1135
        %v1144 = vadd.s32 %v1140, %v1142
        %v1145 = vadd.s32 %v1144, %v1134
        %v1146 = vadd.s32 %v1145, %v1136
        %v1147 = vmul.u32 %v1102, %v1093
        %v1148 = vadd.s32 %v1124, %v1143
        %vm1149 = vc.u32 %v1124, %v1143
        %v1150 = vadd.s32 %v1146, 1
        %v1151 = vsel %vm1149, %v1150, %v1146
        %v1152 = vadd.s32 %v1147, %v1151
        %v1153 = vadd.s32 %v1152, 536870912
        %v1154 = vshrl.u32 %v1153, 30
        %v1155 = vshll.u32 %v1154, 30
        %v1156 = vsub.s32 %v1152, %v1155
        %vm1157 = vcmp.lt.s32.totalorder %v1156, 0
        %v1158 = vsub.s32 0, %v1156
        %v1159 = vsel %vm1157, %v1158, %v1156
        %v1160 = vclz %v1159
        %v1161 = vsub.s32 %v1160, 2
        %vm1162 = vcmp.gt.s32.totalorder 0, %v1161
        %v1163 = vsel %vm1162, 0, %v1161
        %v1164 = vsub.s32 32, %v1163
        %v1165 = vshll.u32 %v1156, %v1163
        %v1166 = vshrl.u32 %v1148, %v1164
        %v1167 = vor.u32 %v1165, %v1166
        %v1168 = vsub.s32 4294967266, %v1163
        %v1169 = vadd.s32 %v1168, 127
        %v1170 = vshll.u32 %v1169, 23
        %v1171 = vor.u32 4788187, %v1170
        %v1172 = vand.u32 2147483647, %v1171
        %v1174 = vcvt.s32.f32 %v1167
        %v1175 = vmul.f32 %v1174, %v1172
        %v1176 = vxor.u32 %v1175, 2147483648
        %v1177 = vsel %vm1056, %v1176, %v1175
        %v1178 = vsub.s32 4, %v1154
        %v1179 = vsel %vm1056, %v1178, %v1154
        %v1180 = vsel %vm1055, %v942, %v1177
        %v1181 = vsel %vm1055, 0, %v1179
        %v1182 = vmul.f32 %v1180, %v1180
        %v1183 = vmul.f32 %v1182, -0.001358992
        %v1184 = vadd.f32 %v1183, 0.041655596
        %v1185 = vmul.f32 %v1182, %v1184
        %v1186 = vadd.f32 %v1185, -0.4999988
        %v1187 = vmul.f32 %v1182, %v1186
        %v1188 = vadd.f32 1.0, %v1187
        %v1189 = vmul.f32 %v1180, %v1180
        %v1190 = vmul.f32 %v1189, -0.00019511016
        %v1191 = vadd.f32 %v1190, 0.008332121
        %v1192 = vmul.f32 %v1189, %v1191
        %v1193 = vadd.f32 %v1192, -0.16666654
        %v1194 = vmul.f32 %v1189, %v1193
        %v1195 = vadd.f32 %v1194, 1.0
        %v1196 = vmul.f32 %v1195, %v1180
        %vm1197 = vweird.f32 %v942
        %v1198 = vadd.s32 %v1181, 3
        %v1199 = vand.u32 %v1198, 3
        %vm1200 = vcmp.lt.s32.totalorder %v1199, 2
        %vm1201 = vcmp.eq.s32.totalorder %v1199, 0
        %v1202 = vxor.u32 %v1196, 2147483648
        %v1203 = vsel %vm1201, %v1188, %v1202
        %vm1204 = vcmp.eq.s32.totalorder %v1199, 2
        %v1205 = vxor.u32 %v1188, 2147483648
        %v1206 = vsel %vm1204, %v1205, %v1196
        %v1207 = vsel %vm1200, %v1203, %v1206
        %v1208 = vsel %vm1197, nan, %v1207
        %v1209 = vand.u32 2147483647, %v979
        %vm1210 = vcmp.le.f32.partialorder %v1209, 0.7853982
        %vm1211 = vcmp.lt.s32.totalorder %v979, 0
        %v1212 = vand.u32 %v979, 2139095040
        %v1213 = vshrl.u32 %v1212, 23
        %v1214 = vsub.s32 %v1213, 127
        %v1215 = vand.u32 2147483647, %v979
        %v1216 = vand.u32 %v1215, 8388607
        %v1217 = vor.u32 %v1216, 8388608
        %v1218 = vsub.s32 0, %v1217
        %v1219 = vadd.s32 %v1214, 1
        %vm1220 = vcmp.gt.s32.totalorder %v1219, 0
        %v1221 = vsel %vm1220, %v1219, 0
        %v1222 = vshrl.u32 %v1221, 5
        %v1223 = vand.u32 %v1221, 31
        %v1224 = vsub.s32 32, %v1223
        %v1225 = vshrl.u32 683565275, %v1224
        %v1226 = vshll.u32 683565275, %v1223
        %v1227 = vshrl.u32 2475754826, %v1224
        %v1228 = vor.u32 %v1226, %v1227
        %v1229 = vshll.u32 2475754826, %v1223
        %v1230 = vshrl.u32 2131351028, %v1224
        %v1231 = vor.u32 %v1229, %v1230
        %v1232 = vshll.u32 2131351028, %v1223
        %v1233 = vshrl.u32 2102212464, %v1224
        %v1234 = vor.u32 %v1232, %v1233
        %v1235 = vshll.u32 2102212464, %v1223
        %v1236 = vshrl.u32 920167782, %v1224
        %v1237 = vor.u32 %v1235, %v1236
        %v1238 = vshll.u32 920167782, %v1223
        %v1239 = vshrl.u32 1326507024, %v1224
        %v1240 = vor.u32 %v1238, %v1239
        %vm1241 = vcmp.lt.s32.totalorder %v1222, 1
        %vm1242 = vcmp.lt.s32.totalorder %v1222, 2
        %vm1243 = vcmp.lt.s32.totalorder %v1222, 3
        %vm1244 = vcmp.lt.s32.totalorder %v1222, 4
        %v1245 = vsel %vm1241, %v1225, %v1228
        %v1246 = vsel %vm1244, %v1234, 2102212464
        %v1247 = vsel %vm1243, %v1231, %v1246
        %v1248 = vsel %vm1242, %v1245, %v1247
        %v1249 = vsel %vm1241, %v1228, %v1231
        %v1250 = vsel %vm1244, %v1237, 920167782
        %v1251 = vsel %vm1243, %v1234, %v1250
        %v1252 = vsel %vm1242, %v1249, %v1251
        %v1253 = vsel %vm1241, %v1231, %v1234
        %v1254 = vsel %vm1244, %v1240, 1326507024
        %v1255 = vsel %vm1243, %v1237, %v1254
        %v1256 = vsel %vm1242, %v1253, %v1255
        %v1257 = vshll.u32 %v1217, 8
        %v1258 = vand.u32 %v1257, 65535
        %v1259 = vshrl.u32 %v1257, 16
        %v1260 = vand.u32 %v1256, 65535
        %v1261 = vshrl.u32 %v1256, 16
        %v1262 = vmul.u32 %v1258, %v1260
        %v1263 = vmul.u32 %v1258, %v1261
        %v1264 = vmul.u32 %v1259, %v1260
        %v1265 = vmul.u32 %v1259, %v1261
        %v1266 = vshll.u32 %v1263, 16
        %v1267 = vshrl.u32 %v1263, 16
        %v1268 = vshll.u32 %v1264, 16
        %v1269 = vshrl.u32 %v1264, 16
        %vm1270 = vc.u32 %v1262, %v1266
        %v1271 = vsel %vm1270, 1, 0
        %v1272 = vadd.s32 %v1262, %v1266
        %v1273 = vadd.s32 %v1265, %v1271
        %vm1274 = vc.u32 %v1272, %v1268
        %v1275 = vsel %vm1274, 1, 0
        %v1276 = vadd.s32 %v1272, %v1268
        %v1277 = vadd.s32 %v1273, %v1275
        %v1278 = vadd.s32 %v1277, %v1267
        %v1279 = vadd.s32 %v1278, %v1269
        %v1280 = vand.u32 %v1257, 65535
        %v1281 = vshrl.u32 %v1257, 16
        %v1282 = vand.u32 %v1252, 65535
        %v1283 = vshrl.u32 %v1252, 16
        %v1284 = vmul.u32 %v1280, %v1282
        %v1285 = vmul.u32 %v1280, %v1283
        %v1286 = vmul.u32 %v1281, %v1282
        %v1287 = vmul.u32 %v1281, %v1283
        %v1288 = vshll.u32 %v1285, 16
        %v1289 = vshrl.u32 %v1285, 16
        %v1290 = vshll.u32 %v1286, 16
        %v1291 = vshrl.u32 %v1286, 16
        %vm1292 = vc.u32 %v1284, %v1288
        %v1293 = vsel %vm1292, 1, 0
        %v1294 = vadd.s32 %v1284, %v1288
        %v1295 = vadd.s32 %v1287, %v1293
        %vm1296 = vc.u32 %v1294, %v1290
        %v1297 = vsel %vm1296, 1, 0
        %v1298 = vadd.s32 %v1294, %v1290
        %v1299 = vadd.s32 %v1295, %v1297
        %v1300 = vadd.s32 %v1299, %v1289
        %v1301 = vadd.s32 %v1300, %v1291
        %v1302 = vmul.u32 %v1257, %v1248
        %v1303 = vadd.s32 %v1279, %v1298
        %vm1304 = vc.u32 %v1279, %v1298
        %v1305 = vadd.s32 %v1301, 1
        %v1306 = vsel %vm1304, %v1305, %v1301
        %v1307 = vadd.s32 %v1302, %v1306
        %v1308 = vadd.s32 %v1307, 536870912
        %v1309 = vshrl.u32 %v1308, 30
        %v1310 = vshll.u32 %v1309, 30
        %v1311 = vsub.s32 %v1307, %v1310
        %vm1312 = vcmp.lt.s32.totalorder %v1311, 0
        %v1313 = vsub.s32 0, %v1311
        %v1314 = vsel %vm1312, %v1313, %v1311
        %v1315 = vclz %v1314
        %v1316 = vsub.s32 %v1315, 2
        %vm1317 = vcmp.gt.s32.totalorder 0, %v1316
        %v1318 = vsel %vm1317, 0, %v1316
        %v1319 = vsub.s32 32, %v1318
        %v1320 = vshll.u32 %v1311, %v1318
        %v1321 = vshrl.u32 %v1303, %v1319
        %v1322 = vor.u32 %v1320, %v1321
        %v1323 = vsub.s32 4294967266, %v1318
        %v1324 = vadd.s32 %v1323, 127
        %v1325 = vshll.u32 %v1324, 23
        %v1326 = vor.u32 4788187, %v1325
        %v1327 = vand.u32 2147483647, %v1326
        %v1329 = vcvt.s32.f32 %v1322
        %v1330 = vmul.f32 %v1329, %v1327
        %v1331 = vxor.u32 %v1330, 2147483648
        %v1332 = vsel %vm1211, %v1331, %v1330
        %v1333 = vsub.s32 4, %v1309
        %v1334 = vsel %vm1211, %v1333, %v1309
        %v1335 = vsel %vm1210, %v979, %v1332
        %v1336 = vsel %vm1210, 0, %v1334
        %v1337 = vmul.f32 %v1335, %v1335
        %v1338 = vmul.f32 %v1337, -0.001358992
        %v1339 = vadd.f32 %v1338, 0.041655596
        %v1340 = vmul.f32 %v1337, %v1339
        %v1341 = vadd.f32 %v1340, -0.4999988
        %v1342 = vmul.f32 %v1337, %v1341
        %v1343 = vadd.f32 1.0, %v1342
        %v1344 = vmul.f32 %v1335, %v1335
        %v1345 = vmul.f32 %v1344, -0.00019511016
        %v1346 = vadd.f32 %v1345, 0.008332121
        %v1347 = vmul.f32 %v1344, %v1346
        %v1348 = vadd.f32 %v1347, -0.16666654
        %v1349 = vmul.f32 %v1344, %v1348
        %v1350 = vadd.f32 %v1349, 1.0
        %v1351 = vmul.f32 %v1350, %v1335
        %vm1352 = vweird.f32 %v979
        %v1353 = vand.u32 %v1336, 3
        %vm1354 = vcmp.lt.s32.totalorder %v1353, 2
        %vm1355 = vcmp.eq.s32.totalorder %v1353, 0
        %v1356 = vxor.u32 %v1351, 2147483648
        %v1357 = vsel %vm1355, %v1343, %v1356
        %vm1358 = vcmp.eq.s32.totalorder %v1353, 2
        %v1359 = vxor.u32 %v1343, 2147483648
        %v1360 = vsel %vm1358, %v1359, %v1351
        %v1361 = vsel %vm1354, %v1357, %v1360
        %v1362 = vsel %vm1352, nan, %v1361
        %vm1363 = vcmp.lt.f32.partialorder %v1053, 0.01
        %v1364 = vsel %vm1363, 0.01, %v1053
        %v1365 = vrcp.pop %v1364
        %v1366 = vmul.f32 %v1364, %v1365
        %v1367 = vsub.f32 1.0, %v1366
        %v1368 = vmul.f32 %v1365, %v1367
        %v1369 = vadd.f32 %v1365, %v1368
        %vm1370 = vweird.f32 %v1364
        %vm1371 = vweird.f32 %v1365
        %vm1372 = vmor %vm1370, %vm1371
        %v1373 = vsel %vm1372, %v1365, %v1369
        %v1374 = vand.u32 2147483647, %v1364
        %vm1375 = vcmp.eq.f32.partialorder %v1374, 8.507059e+37
        %v1376 = vand.u32 %v1364, 2147483648
        %v1377 = vor.u32 1.1754944e-38, %v1376
        %v1378 = vsel %vm1375, %v1377, %v1373
        %v1379 = vmul.f32 %v1016, %v1378
        %v1380 = vsel %vm1363, 0.0, %v1379
        %v1381 = vld [vmem:[%s488 + $0x9] sm:$0x1]
        %v1382 = vld [vmem:[%s480 + $0x58] sm:$0x1]
        %v1383 = vmul.f32 %v1382, %v761
        %v1384 = vadd.f32 %v1381, %v1383
        %v1385 = vld [vmem:[%s480 + $0x59] sm:$0x1]
        %v1386 = vmul.f32 %v1385, %v762
        %v1387 = vadd.f32 %v1384, %v1386
        %v1388 = vld [vmem:[%s480 + $0x5a] sm:$0x1]
        %v1389 = vmul.f32 %v1388, %v763
        %v1390 = vadd.f32 %v1387, %v1389
        %v1391 = vld [vmem:[%s480 + $0x5b] sm:$0x1]
        %v1392 = vmul.f32 %v1391, %v764
        %v1393 = vadd.f32 %v1390, %v1392
        %v1394 = vld [vmem:[%s480 + $0x5c] sm:$0x1]
        %v1395 = vmul.f32 %v1394, %v765
        %v1396 = vadd.f32 %v1393, %v1395
        %v1397 = vld [vmem:[%s480 + $0x5d] sm:$0x1]
        %v1398 = vmul.f32 %v1397, %v766
        %v1399 = vadd.f32 %v1396, %v1398
        %v1400 = vld [vmem:[%s480 + $0x5e] sm:$0x1]
        %v1401 = vmul.f32 %v1400, %v767
        %v1402 = vadd.f32 %v1399, %v1401
        %v1403 = vld [vmem:[%s480 + $0x5f] sm:$0x1]
        %v1404 = vmul.f32 %v1403, %v768
        %v1405 = vadd.f32 %v1402, %v1404
        %v1406 = vld [vmem:[%s480 + $0x60] sm:$0x1]
        %v1407 = vmul.f32 %v1406, %v898
        %v1408 = vadd.f32 %v1405, %v1407
        %v1409 = vld [vmem:[%s480 + $0x61] sm:$0x1]
        %v1410 = vmul.f32 %v1409, %v901
        %v1411 = vadd.f32 %v1408, %v1410
        %v1412 = vld [vmem:[%s480 + $0x62] sm:$0x1]
        %v1413 = vmul.f32 %v1412, %v905
        %v1414 = vadd.f32 %v1411, %v1413
        %v1415 = vld [vmem:[%s480 + $0x63] sm:$0x1]
        %v1416 = vmul.f32 %v1415, %v893
        %v1417 = vadd.f32 %v1414, %v1416
        %v1418 = vld [vmem:[%s480 + $0x64] sm:$0x1]
        %v1419 = vmul.f32 %v1418, %v1208
        %v1420 = vadd.f32 %v1417, %v1419
        %v1421 = vld [vmem:[%s480 + $0x65] sm:$0x1]
        %v1422 = vmul.f32 %v1421, %v1362
        %v1423 = vadd.f32 %v1420, %v1422
        %v1424 = vld [vmem:[%s480 + $0x66] sm:$0x1]
        %v1425 = vmul.f32 %v1424, %v1380
        %v1426 = vadd.f32 %v1423, %v1425
        %v1427 = vld [vmem:[%s488 + $0xa] sm:$0x1]
        %v1428 = vld [vmem:[%s480 + $0x67] sm:$0x1]
        %v1429 = vmul.f32 %v1428, %v761
        %v1430 = vadd.f32 %v1427, %v1429
        %v1431 = vld [vmem:[%s480 + $0x68] sm:$0x1]
        %v1432 = vmul.f32 %v1431, %v762
        %v1433 = vadd.f32 %v1430, %v1432
        %v1434 = vld [vmem:[%s480 + $0x69] sm:$0x1]
        %v1435 = vmul.f32 %v1434, %v763
        %v1436 = vadd.f32 %v1433, %v1435
        %v1437 = vld [vmem:[%s480 + $0x6a] sm:$0x1]
        %v1438 = vmul.f32 %v1437, %v764
        %v1439 = vadd.f32 %v1436, %v1438
        %v1440 = vld [vmem:[%s480 + $0x6b] sm:$0x1]
        %v1441 = vmul.f32 %v1440, %v765
        %v1442 = vadd.f32 %v1439, %v1441
        %v1443 = vld [vmem:[%s480 + $0x6c] sm:$0x1]
        %v1444 = vmul.f32 %v1443, %v766
        %v1445 = vadd.f32 %v1442, %v1444
        %v1446 = vld [vmem:[%s480 + $0x6d] sm:$0x1]
        %v1447 = vmul.f32 %v1446, %v767
        %v1448 = vadd.f32 %v1445, %v1447
        %v1449 = vld [vmem:[%s480 + $0x6e] sm:$0x1]
        %v1450 = vmul.f32 %v1449, %v768
        %v1451 = vadd.f32 %v1448, %v1450
        %v1452 = vld [vmem:[%s480 + $0x6f] sm:$0x1]
        %v1453 = vmul.f32 %v1452, %v898
        %v1454 = vadd.f32 %v1451, %v1453
        %v1455 = vld [vmem:[%s480 + $0x70] sm:$0x1]
        %v1456 = vmul.f32 %v1455, %v901
        %v1457 = vadd.f32 %v1454, %v1456
        %v1458 = vld [vmem:[%s480 + $0x71] sm:$0x1]
        %v1459 = vmul.f32 %v1458, %v905
        %v1460 = vadd.f32 %v1457, %v1459
        %v1461 = vld [vmem:[%s480 + $0x72] sm:$0x1]
        %v1462 = vmul.f32 %v1461, %v893
        %v1463 = vadd.f32 %v1460, %v1462
        %v1464 = vld [vmem:[%s480 + $0x73] sm:$0x1]
        %v1465 = vmul.f32 %v1464, %v1208
        %v1466 = vadd.f32 %v1463, %v1465
        %v1467 = vld [vmem:[%s480 + $0x74] sm:$0x1]
        %v1468 = vmul.f32 %v1467, %v1362
        %v1469 = vadd.f32 %v1466, %v1468
        %v1470 = vld [vmem:[%s480 + $0x75] sm:$0x1]
        %v1471 = vmul.f32 %v1470, %v1380
        %v1472 = vadd.f32 %v1469, %v1471
        %v1473 = vld [vmem:[%s488 + $0xb] sm:$0x1]
        %v1474 = vld [vmem:[%s480 + $0x76] sm:$0x1]
        %v1475 = vmul.f32 %v1474, %v761
        %v1476 = vadd.f32 %v1473, %v1475
        %v1477 = vld [vmem:[%s480 + $0x77] sm:$0x1]
        %v1478 = vmul.f32 %v1477, %v762
        %v1479 = vadd.f32 %v1476, %v1478
        %v1480 = vld [vmem:[%s480 + $0x78] sm:$0x1]
        %v1481 = vmul.f32 %v1480, %v763
        %v1482 = vadd.f32 %v1479, %v1481
        %v1483 = vld [vmem:[%s480 + $0x79] sm:$0x1]
        %v1484 = vmul.f32 %v1483, %v764
        %v1485 = vadd.f32 %v1482, %v1484
        %v1486 = vld [vmem:[%s480 + $0x7a] sm:$0x1]
        %v1487 = vmul.f32 %v1486, %v765
        %v1488 = vadd.f32 %v1485, %v1487
        %v1489 = vld [vmem:[%s480 + $0x7b] sm:$0x1]
        %v1490 = vmul.f32 %v1489, %v766
        %v1491 = vadd.f32 %v1488, %v1490
        %v1492 = vld [vmem:[%s480 + $0x7c] sm:$0x1]
        %v1493 = vmul.f32 %v1492, %v767
        %v1494 = vadd.f32 %v1491, %v1493
        %v1495 = vld [vmem:[%s480 + $0x7d] sm:$0x1]
        %v1496 = vmul.f32 %v1495, %v768
        %v1497 = vadd.f32 %v1494, %v1496
        %v1498 = vld [vmem:[%s480 + $0x7e] sm:$0x1]
        %v1499 = vmul.f32 %v1498, %v898
        %v1500 = vadd.f32 %v1497, %v1499
        %v1501 = vld [vmem:[%s480 + $0x7f] sm:$0x1]
        %v1502 = vmul.f32 %v1501, %v901
        %v1503 = vadd.f32 %v1500, %v1502
        %v1504 = vld [vmem:[%s480 + $0x80] sm:$0x1]
        %v1505 = vmul.f32 %v1504, %v905
        %v1506 = vadd.f32 %v1503, %v1505
        %v1507 = vld [vmem:[%s480 + $0x81] sm:$0x1]
        %v1508 = vmul.f32 %v1507, %v893
        %v1509 = vadd.f32 %v1506, %v1508
        %v1510 = vld [vmem:[%s480 + $0x82] sm:$0x1]
        %v1511 = vmul.f32 %v1510, %v1208
        %v1512 = vadd.f32 %v1509, %v1511
        %v1513 = vld [vmem:[%s480 + $0x83] sm:$0x1]
        %v1514 = vmul.f32 %v1513, %v1362
        %v1515 = vadd.f32 %v1512, %v1514
        %v1516 = vld [vmem:[%s480 + $0x84] sm:$0x1]
        %v1517 = vmul.f32 %v1516, %v1380
        %v1518 = vadd.f32 %v1515, %v1517
        %v1519 = vld [vmem:[%s488 + $0xc] sm:$0x1]
        %v1520 = vld [vmem:[%s480 + $0x85] sm:$0x1]
        %v1521 = vmul.f32 %v1520, %v761
        %v1522 = vadd.f32 %v1519, %v1521
        %v1523 = vld [vmem:[%s480 + $0x86] sm:$0x1]
        %v1524 = vmul.f32 %v1523, %v762
        %v1525 = vadd.f32 %v1522, %v1524
        %v1526 = vld [vmem:[%s480 + $0x87] sm:$0x1]
        %v1527 = vmul.f32 %v1526, %v763
        %v1528 = vadd.f32 %v1525, %v1527
        %v1529 = vld [vmem:[%s480 + $0x88] sm:$0x1]
        %v1530 = vmul.f32 %v1529, %v764
        %v1531 = vadd.f32 %v1528, %v1530
        %v1532 = vld [vmem:[%s480 + $0x89] sm:$0x1]
        %v1533 = vmul.f32 %v1532, %v765
        %v1534 = vadd.f32 %v1531, %v1533
        %v1535 = vld [vmem:[%s480 + $0x8a] sm:$0x1]
        %v1536 = vmul.f32 %v1535, %v766
        %v1537 = vadd.f32 %v1534, %v1536
        %v1538 = vld [vmem:[%s480 + $0x8b] sm:$0x1]
        %v1539 = vmul.f32 %v1538, %v767
        %v1540 = vadd.f32 %v1537, %v1539
        %v1541 = vld [vmem:[%s480 + $0x8c] sm:$0x1]
        %v1542 = vmul.f32 %v1541, %v768
        %v1543 = vadd.f32 %v1540, %v1542
        %v1544 = vld [vmem:[%s480 + $0x8d] sm:$0x1]
        %v1545 = vmul.f32 %v1544, %v898
        %v1546 = vadd.f32 %v1543, %v1545
        %v1547 = vld [vmem:[%s480 + $0x8e] sm:$0x1]
        %v1548 = vmul.f32 %v1547, %v901
        %v1549 = vadd.f32 %v1546, %v1548
        %v1550 = vld [vmem:[%s480 + $0x8f] sm:$0x1]
        %v1551 = vmul.f32 %v1550, %v905
        %v1552 = vadd.f32 %v1549, %v1551
        %v1553 = vld [vmem:[%s480 + $0x90] sm:$0x1]
        %v1554 = vmul.f32 %v1553, %v893
        %v1555 = vadd.f32 %v1552, %v1554
        %v1556 = vld [vmem:[%s480 + $0x91] sm:$0x1]
        %v1557 = vmul.f32 %v1556, %v1208
        %v1558 = vadd.f32 %v1555, %v1557
        %v1559 = vld [vmem:[%s480 + $0x92] sm:$0x1]
        %v1560 = vmul.f32 %v1559, %v1362
        %v1561 = vadd.f32 %v1558, %v1560
        %v1562 = vld [vmem:[%s480 + $0x93] sm:$0x1]
        %v1563 = vmul.f32 %v1562, %v1380
        %v1564 = vadd.f32 %v1561, %v1563
        %v1565 = vld [vmem:[%s488 + $0xd] sm:$0x1]
        %v1566 = vld [vmem:[%s480 + $0x94] sm:$0x1]
        %v1567 = vmul.f32 %v1566, %v761
        %v1568 = vadd.f32 %v1565, %v1567
        %v1569 = vld [vmem:[%s480 + $0x95] sm:$0x1]
        %v1570 = vmul.f32 %v1569, %v762
        %v1571 = vadd.f32 %v1568, %v1570
        %v1572 = vld [vmem:[%s480 + $0x96] sm:$0x1]
        %v1573 = vmul.f32 %v1572, %v763
        %v1574 = vadd.f32 %v1571, %v1573
        %v1575 = vld [vmem:[%s480 + $0x97] sm:$0x1]
        %v1576 = vmul.f32 %v1575, %v764
        %v1577 = vadd.f32 %v1574, %v1576
        %v1578 = vld [vmem:[%s480 + $0x98] sm:$0x1]
        %v1579 = vmul.f32 %v1578, %v765
        %v1580 = vadd.f32 %v1577, %v1579
        %v1581 = vld [vmem:[%s480 + $0x99] sm:$0x1]
        %v1582 = vmul.f32 %v1581, %v766
        %v1583 = vadd.f32 %v1580, %v1582
        %v1584 = vld [vmem:[%s480 + $0x9a] sm:$0x1]
        %v1585 = vmul.f32 %v1584, %v767
        %v1586 = vadd.f32 %v1583, %v1585
        %v1587 = vld [vmem:[%s480 + $0x9b] sm:$0x1]
        %v1588 = vmul.f32 %v1587, %v768
        %v1589 = vadd.f32 %v1586, %v1588
        %v1590 = vld [vmem:[%s480 + $0x9c] sm:$0x1]
        %v1591 = vmul.f32 %v1590, %v898
        %v1592 = vadd.f32 %v1589, %v1591
        %v1593 = vld [vmem:[%s480 + $0x9d] sm:$0x1]
        %v1594 = vmul.f32 %v1593, %v901
        %v1595 = vadd.f32 %v1592, %v1594
        %v1596 = vld [vmem:[%s480 + $0x9e] sm:$0x1]
        %v1597 = vmul.f32 %v1596, %v905
        %v1598 = vadd.f32 %v1595, %v1597
        %v1599 = vld [vmem:[%s480 + $0x9f] sm:$0x1]
        %v1600 = vmul.f32 %v1599, %v893
        %v1601 = vadd.f32 %v1598, %v1600
        %v1602 = vld [vmem:[%s480 + $0xa0] sm:$0x1]
        %v1603 = vmul.f32 %v1602, %v1208
        %v1604 = vadd.f32 %v1601, %v1603
        %v1605 = vld [vmem:[%s480 + $0xa1] sm:$0x1]
        %v1606 = vmul.f32 %v1605, %v1362
        %v1607 = vadd.f32 %v1604, %v1606
        %v1608 = vld [vmem:[%s480 + $0xa2] sm:$0x1]
        %v1609 = vmul.f32 %v1608, %v1380
        %v1610 = vadd.f32 %v1607, %v1609
        %v1611 = vld [vmem:[%s488 + $0xe] sm:$0x1]
        %v1612 = vld [vmem:[%s480 + $0xa3] sm:$0x1]
        %v1613 = vmul.f32 %v1612, %v761
        %v1614 = vadd.f32 %v1611, %v1613
        %v1615 = vld [vmem:[%s480 + $0xa4] sm:$0x1]
        %v1616 = vmul.f32 %v1615, %v762
        %v1617 = vadd.f32 %v1614, %v1616
        %v1618 = vld [vmem:[%s480 + $0xa5] sm:$0x1]
        %v1619 = vmul.f32 %v1618, %v763
        %v1620 = vadd.f32 %v1617, %v1619
        %v1621 = vld [vmem:[%s480 + $0xa6] sm:$0x1]
        %v1622 = vmul.f32 %v1621, %v764
        %v1623 = vadd.f32 %v1620, %v1622
        %v1624 = vld [vmem:[%s480 + $0xa7] sm:$0x1]
        %v1625 = vmul.f32 %v1624, %v765
        %v1626 = vadd.f32 %v1623, %v1625
        %v1627 = vld [vmem:[%s480 + $0xa8] sm:$0x1]
        %v1628 = vmul.f32 %v1627, %v766
        %v1629 = vadd.f32 %v1626, %v1628
        %v1630 = vld [vmem:[%s480 + $0xa9] sm:$0x1]
        %v1631 = vmul.f32 %v1630, %v767
        %v1632 = vadd.f32 %v1629, %v1631
        %v1633 = vld [vmem:[%s480 + $0xaa] sm:$0x1]
        %v1634 = vmul.f32 %v1633, %v768
        %v1635 = vadd.f32 %v1632, %v1634
        %v1636 = vld [vmem:[%s480 + $0xab] sm:$0x1]
        %v1637 = vmul.f32 %v1636, %v898
        %v1638 = vadd.f32 %v1635, %v1637
        %v1639 = vld [vmem:[%s480 + $0xac] sm:$0x1]
        %v1640 = vmul.f32 %v1639, %v901
        %v1641 = vadd.f32 %v1638, %v1640
        %v1642 = vld [vmem:[%s480 + $0xad] sm:$0x1]
        %v1643 = vmul.f32 %v1642, %v905
        %v1644 = vadd.f32 %v1641, %v1643
        %v1645 = vld [vmem:[%s480 + $0xae] sm:$0x1]
        %v1646 = vmul.f32 %v1645, %v893
        %v1647 = vadd.f32 %v1644, %v1646
        %v1648 = vld [vmem:[%s480 + $0xaf] sm:$0x1]
        %v1649 = vmul.f32 %v1648, %v1208
        %v1650 = vadd.f32 %v1647, %v1649
        %v1651 = vld [vmem:[%s480 + $0xb0] sm:$0x1]
        %v1652 = vmul.f32 %v1651, %v1362
        %v1653 = vadd.f32 %v1650, %v1652
        %v1654 = vld [vmem:[%s480 + $0xb1] sm:$0x1]
        %v1655 = vmul.f32 %v1654, %v1380
        %v1656 = vadd.f32 %v1653, %v1655
        %v1657 = vmax.f32 %v1426, -100.0
        %v1658 = vmin.f32 %v1657, 100.0
        %v1659 = vmax.f32 %v1472, -100.0
        %v1660 = vmin.f32 %v1659, 100.0
        %v1661 = vmul.f32 %v1658, %v1660
        %v1662 = vxor.u32 %v1564, 2147483648
        %v1663 = vmul.f32 %v1662, 1.442695
        %v1664 = vpow.pop %v1663
        %v1665 = vadd.f32 %v1664, 1.0
        %v1666 = vrcp.pop %v1665
        %v1667 = vmul.f32 %v1665, %v1666
        %v1668 = vsub.f32 1.0, %v1667
        %v1669 = vmul.f32 %v1666, %v1668
        %v1670 = vadd.f32 %v1666, %v1669
        %vm1671 = vweird.f32 %v1665
        %vm1672 = vweird.f32 %v1666
        %vm1673 = vmor %vm1671, %vm1672
        %v1674 = vsel %vm1673, %v1666, %v1670
        %v1675 = vand.u32 2147483647, %v1665
        %vm1676 = vcmp.eq.f32.partialorder %v1675, 8.507059e+37
        %v1677 = vand.u32 %v1665, 2147483648
        %v1678 = vor.u32 1.1754944e-38, %v1677
        %v1679 = vsel %vm1676, %v1678, %v1674
        %v1680 = vmul.f32 1.0, %v1679
        %v1681 = vmul.f32 %v1680, %v1610
        %v1682 = vsub.f32 1.0, %v1680
        %v1683 = vmul.f32 %v1682, %v1656
        %v1684 = vadd.f32 %v1681, %v1683
        %v1685 = vld [vmem:[%s488 + $0xf] sm:$0x1]
        %v1686 = vld [vmem:[%s480 + $0xb2] sm:$0x1]
        %v1687 = vmul.f32 %v1686, %v761
        %v1688 = vadd.f32 %v1685, %v1687
        %v1689 = vld [vmem:[%s480 + $0xb3] sm:$0x1]
        %v1690 = vmul.f32 %v1689, %v762
        %v1691 = vadd.f32 %v1688, %v1690
        %v1692 = vld [vmem:[%s480 + $0xb4] sm:$0x1]
        %v1693 = vmul.f32 %v1692, %v763
        %v1694 = vadd.f32 %v1691, %v1693
        %v1695 = vld [vmem:[%s480 + $0xb5] sm:$0x1]
        %v1696 = vmul.f32 %v1695, %v764
        %v1697 = vadd.f32 %v1694, %v1696
        %v1698 = vld [vmem:[%s480 + $0xb6] sm:$0x1]
        %v1699 = vmul.f32 %v1698, %v765
        %v1700 = vadd.f32 %v1697, %v1699
        %v1701 = vld [vmem:[%s480 + $0xb7] sm:$0x1]
        %v1702 = vmul.f32 %v1701, %v766
        %v1703 = vadd.f32 %v1700, %v1702
        %v1704 = vld [vmem:[%s480 + $0xb8] sm:$0x1]
        %v1705 = vmul.f32 %v1704, %v767
        %v1706 = vadd.f32 %v1703, %v1705
        %v1707 = vld [vmem:[%s480 + $0xb9] sm:$0x1]
        %v1708 = vmul.f32 %v1707, %v768
        %v1709 = vadd.f32 %v1706, %v1708
        %v1710 = vld [vmem:[%s480 + $0xba] sm:$0x1]
        %v1711 = vmul.f32 %v1710, %v898
        %v1712 = vadd.f32 %v1709, %v1711
        %v1713 = vld [vmem:[%s480 + $0xbb] sm:$0x1]
        %v1714 = vmul.f32 %v1713, %v901
        %v1715 = vadd.f32 %v1712, %v1714
        %v1716 = vld [vmem:[%s480 + $0xbc] sm:$0x1]
        %v1717 = vmul.f32 %v1716, %v905
        %v1718 = vadd.f32 %v1715, %v1717
        %v1719 = vld [vmem:[%s480 + $0xbd] sm:$0x1]
        %v1720 = vmul.f32 %v1719, %v893
        %v1721 = vadd.f32 %v1718, %v1720
        %v1722 = vld [vmem:[%s480 + $0xbe] sm:$0x1]
        %v1723 = vmul.f32 %v1722, %v1208
        %v1724 = vadd.f32 %v1721, %v1723
        %v1725 = vld [vmem:[%s480 + $0xbf] sm:$0x1]
        %v1726 = vmul.f32 %v1725, %v1362
        %v1727 = vadd.f32 %v1724, %v1726
        %v1728 = vld [vmem:[%s480 + $0xc0] sm:$0x1]
        %v1729 = vmul.f32 %v1728, %v1380
        %v1730 = vadd.f32 %v1727, %v1729
        %v1731 = vld [vmem:[%s480 + $0xc1] sm:$0x1]
        %v1732 = vmul.f32 %v1731, %v1661
        %v1733 = vadd.f32 %v1730, %v1732
        %v1734 = vld [vmem:[%s480 + $0xc2] sm:$0x1]
        %v1735 = vmul.f32 %v1734, %v1518
        %v1736 = vadd.f32 %v1733, %v1735
        %v1737 = vld [vmem:[%s480 + $0xc3] sm:$0x1]
        %v1738 = vmul.f32 %v1737, %v1684
        %v1739 = vadd.f32 %v1736, %v1738
        %v1740 = vmax.f32 %v1739, -1e+10
        %v1741 = vmin.f32 %v1740, 1e+10
        %v1742 = vtanh.pop %v1741
        %v1744 = vrot.slane %v1742, 7
        %vm1746 = vcmask 1040384
        %v1747 = vsel %vm1746, %v1741, %v1744
        %vm1748 = vcmask 58368
        %1749 = vst.msk [vmem:[%s466] sm:$0x3] %vm1748, %v1747
        %s1750 = sand.u32 %s300, 1
        %s1751 = scalar_lea.sflag [#allocation3], %s1750
        %s1752 = sand.u32 %s300, 1
        %s1753 = smul.addr %s1752, 2
        %s1754 = scalar_lea.vmem [#allocation2], %s1753
        // Predicated region
        $region69: #{tpu_custom_call.1} parent=63 // pred_check
          %p1755 = pneg %p310
        $region70: #{tpu_custom_call.1} parent=63 // pred_check_branch
          %1757 = sbr.rel (%p1755) target = $region72
        $region71: #{tpu_custom_call.1} parent=63 // pred_region
          %1759 = vsyncadd %s1751, 0
          %s1760 = sadd.s32 %s32, %s33
          %s1761 = smul.addr %s1760, 2
          %s1762 = scalar_lea.hbm %s11, %s1761
          %s1764 = sshll.u32 %s1754, 4
          %s1765 = int_to_ptr.vmem [resolvable:$true] %s1764
          %s1766 = sshll.u32 %s1762, 4
          %s1767 = int_to_ptr.hbm [resolvable:$true] %s1766
          %1769 = dma.vmem_to_hbm [thread:$0]  %s1765, 32, %s1767, %s1751
        $region72: #{tpu_custom_call.1} parent=63 // pred_fallthru
          _
        // Predicated region
        $region73: #{tpu_custom_call.1} parent=63 // pred_check
          %p1770 = pneg %p336
        $region74: #{tpu_custom_call.1} parent=63 // pred_check_branch
          %1772 = sbr.rel (%p1770) target = $region76
        $region75: #{tpu_custom_call.1} parent=63 // pred_region
          %1774 = vsyncadd [#allocation5], 0
          %s1775 = smul.addr %s32, 8
          %s1776 = scalar_lea.hbm %s12, %s1775
          %s1778 = sshll.u32 [#allocation4], 4
          %s1779 = int_to_ptr.vmem [resolvable:$true] %s1778
          %s1780 = sshll.u32 %s1776, 4
          %s1781 = int_to_ptr.hbm [resolvable:$true] %s1780
          %1783 = dma.vmem_to_hbm [thread:$0]  %s1779, 128, %s1781, [#allocation5]
        $region76: #{tpu_custom_call.1} parent=63 // pred_fallthru
          _
        // Predicated region
        $region77: #{tpu_custom_call.1} parent=63 // pred_check
          %p1784 = pneg %p336
        $region78: #{tpu_custom_call.1} parent=63 // pred_check_branch
          %1786 = sbr.rel (%p1784) target = $region80
        $region79: #{tpu_custom_call.1} parent=63 // pred_region
          %1788 = dma.done [#allocation5], 128
        $region80: #{tpu_custom_call.1} parent=63 // pred_fallthru
          _
      $region64: #{tpu_custom_call.1} parent=5 // pred_fallthru
        _
      %p1789 = scmp.le.s32.totalorder 2, %s23
      // Predicated region
      $region81: #{tpu_custom_call.1} parent=5 // pred_check
        %p1790 = pneg %p1789
      $region82: #{tpu_custom_call.1} parent=5 // pred_check_branch
        %1792 = sbr.rel (%p1790) target = $region84
      $region83: #{tpu_custom_call.1} parent=5 // pred_region
        %s1793 = ssub.s32 %s23, 2
        // Predicated region
        $region85: #{tpu_custom_call.1} parent=83 // pred_check
          %p1794 = pneg %p316
        $region86: #{tpu_custom_call.1} parent=83 // pred_check_branch
          %1796 = sbr.rel (%p1794) target = $region88
        $region87: #{tpu_custom_call.1} parent=83 // pred_region
          %s1797 = sand.u32 %s301, 1
          %s1798 = scalar_lea.sflag [#allocation3], %s1797
          %s1799 = sand.u32 %s301, 1
          %s1800 = smul.addr %s1799, 2
          %s1801 = scalar_lea.vmem [#allocation2], %s1800
          %1803 = dma.done %s1798, 32
        $region88: #{tpu_custom_call.1} parent=83 // pred_fallthru
          _
      $region84: #{tpu_custom_call.1} parent=5 // pred_fallthru
        _
    $region6: #{tpu_custom_call.1} parent=1 // loop_footer
      %s27 = sadd.s32 1, %s23
    $region7: #{tpu_custom_call.1} parent=1 // loop_footer_branch
      %22 = sbr.rel target = $region3
    $region8: #{tpu_custom_call.1} parent=1 // loop_exit
      _
    %1804 = vsyncpa [#allocation3], 1
    %s1805 = scalar_lea.sflag [#allocation3], 1
    %1806 = vsyncpa %s1805, 1
    %1807 = vsyncpa [#allocation5], 1

</llo_original>
